<compile_context>
chip_gen: v7x
topology: tpu7x:2x2x1
jax: 0.10.0
libtpu: 0.0.40
codegen_flags: <defaults>
</compile_context>

<pallas_src>
import functools

import jax
import jax.numpy as jnp
import numpy as np
from jax.experimental import pallas as pl
from jax.experimental.pallas import tpu as pltpu

EPS = 1e-5
NEG_PAD = -1e30          # max-pool pad sentinel (masked in-kernel)
PAD_THRESH = -1e29       # anything below this is a pad element
ACT_DTYPE = jnp.bfloat16
MAX_LANE_TILE = 512      # cout<=32 -> cout*tm <= 16K f32 elems (vreg budget)


# ---------------------------------------------------------------------------
# Tiling helpers
# ---------------------------------------------------------------------------
def _pick_lane_tile(m, max_tile=MAX_LANE_TILE):
    """Lane-axis tile: full slab if small, else a 128-multiple that divides it."""
    if m <= max_tile:
        return m
    for t in (512, 384, 256, 128):
        if m % t == 0:
            return t
    return m   # ragged fallback: one full block (block == full dim stays legal)


def _split_outer(n_tiles):
    """Split the M tiles into (parallel outer, arbitrary inner) so v7x's two
    TensorCores always see >=2 parallel blocks when there is enough work."""
    for mo in (4, 2):
        if n_tiles >= mo and n_tiles % mo == 0:
            return mo, n_tiles // mo
    return 1, n_tiles


# ---------------------------------------------------------------------------
# Fused conv (+ optional previous-layer BN/ReLU) + per-group stats kernel
# ---------------------------------------------------------------------------
def _conv_core(w_ref, x, y_ref, s_ref, q_ref):
    # (C, K) @ (K, tm) -> (C, tm): lane-dense output tile on the MXU.
    y = jnp.dot(w_ref[...], x, preferred_element_type=jnp.float32)
    y_ref[...] = y[None].astype(y_ref.dtype)          # bf16 store (HBM bytes /2)

    @pl.when(pl.program_id(2) == 0)                    # first inner M tile
    def _():
        s_ref[...] = jnp.zeros_like(s_ref)
        q_ref[...] = jnp.zeros_like(q_ref)

    c = y.shape[0]
    s_ref[...] += jnp.broadcast_to(jnp.sum(y, axis=1, keepdims=True),
                                   (c, 128))[None, None]
    q_ref[...] += jnp.broadcast_to(jnp.sum(y * y, axis=1, keepdims=True),
                                   (c, 128))[None, None]


def _conv_kernel_plain(w_ref, x_ref, y_ref, s_ref, q_ref):
    _conv_core(w_ref, x_ref[0].astype(jnp.float32), y_ref, s_ref, q_ref)


def _conv_kernel_fused(w_ref, x_ref, sc_ref, sh_ref, y_ref, s_ref, q_ref):
    # Previous layer's BN affine + ReLU applied on the fly (no HBM round trip).
    x = jnp.maximum(x_ref[0].astype(jnp.float32) * sc_ref[0] + sh_ref[0], 0.0)
    _conv_core(w_ref, x, y_ref, s_ref, q_ref)


def conv_stats(w_mat, x, pre_scale=None, pre_shift=None, use_pallas=True):
    """Fused conv (+ optional pre-activation) + channel statistics.

    w_mat: (C, K) f32;  x: (G, K, M) bf16 activations.  G is the stats-group
    axis (G = N for the InstanceNorm stem, G = 1 with batch folded into M for
    BatchNorm stages).  pre_scale / pre_shift: optional (1, K, 1) f32 affine of
    the previous layer (ReLU applied after it, inside the kernel).
    Returns y: (G, C, M) bf16 raw conv output and per-group channel
    sum / sum-of-squares: (G, C) f32 each."""
    g, k, m = x.shape
    c = w_mat.shape[0]
    fuse = pre_scale is not None

    if not use_pallas:   # pure-jnp reference of the identical math
        xf = x.astype(jnp.float32)
        if fuse:
            xf = jnp.maximum(xf * pre_scale + pre_shift, 0.0)
        y = jnp.einsum("ck,gkm->gcm", w_mat, xf)
        return y.astype(ACT_DTYPE), jnp.sum(y, axis=2), jnp.sum(y * y, axis=2)

    tm = _pick_lane_tile(m)
    n_m = m // tm
    mo, mi = _split_outer(n_m)

    def xmap(gi, o, i):
        return (gi, 0, o * mi + i)

    in_specs = [pl.BlockSpec((c, k), lambda gi, o, i: (0, 0)),     # W resident
                pl.BlockSpec((1, k, tm), xmap)]
    args = [w_mat, x]
    if fuse:
        sspec = pl.BlockSpec((1, k, 1), lambda gi, o, i: (0, 0, 0))
        in_specs += [sspec, sspec]
        args += [pre_scale, pre_shift]

    y, s_raw, q_raw = pl.pallas_call(
        _conv_kernel_fused if fuse else _conv_kernel_plain,
        out_shape=(jax.ShapeDtypeStruct((g, c, m), ACT_DTYPE),
                   jax.ShapeDtypeStruct((g, mo, c, 128), jnp.float32),
                   jax.ShapeDtypeStruct((g, mo, c, 128), jnp.float32)),
        grid=(g, mo, mi),
        in_specs=in_specs,
        out_specs=(pl.BlockSpec((1, c, tm), xmap),
                   pl.BlockSpec((1, 1, c, 128), lambda gi, o, i: (gi, o, 0, 0)),
                   pl.BlockSpec((1, 1, c, 128), lambda gi, o, i: (gi, o, 0, 0))),
        compiler_params=pltpu.CompilerParams(
            dimension_semantics=("parallel", "parallel", "arbitrary")),
    )(*args)
    # partial (per m_outer) sums -> (G, C) on the host (tiny arrays)
    return y, s_raw[..., 0].sum(axis=1), q_raw[..., 0].sum(axis=1)


def _affine_from_stats(ssum, ssq, count, gamma, beta):
    """Fold BN / IN (training-mode batch stats) into scale/shift per group."""
    mean = ssum / count
    var = jnp.maximum(ssq / count - mean * mean, 0.0)
    scale = gamma[None, :] * jax.lax.rsqrt(var + EPS)
    shift = beta[None, :] - mean * scale
    return scale[..., None], shift[..., None]          # (G, C, 1)


# ---------------------------------------------------------------------------
# Standalone normalize + ReLU epilogue (only needed for the final conv)
# ---------------------------------------------------------------------------
def _norm_relu_kernel(y_ref, sc_ref, sh_ref, o_ref):
    o_ref[...] = jnp.maximum(
        y_ref[...].astype(jnp.float32) * sc_ref[...] + sh_ref[...], 0.0)


def norm_relu(y, scale, shift, use_pallas=True):
    """y: (1, C, M) bf16; scale/shift: (1, C, 1) f32 -> (1, C, M) f32."""
    g, c, m = y.shape
    if not use_pallas:
        return jnp.maximum(y.astype(jnp.float32) * scale + shift, 0.0)
    tm = _pick_lane_tile(m)
    return pl.pallas_call(
        _norm_relu_kernel,
        out_shape=jax.ShapeDtypeStruct((g, c, m), jnp.float32),
        grid=(g, m // tm),
        in_specs=[pl.BlockSpec((1, c, tm), lambda i, j: (i, 0, j)),
                  pl.BlockSpec((1, c, 1), lambda i, j: (0, 0, 0)),
                  pl.BlockSpec((1, c, 1), lambda i, j: (0, 0, 0))],
        out_specs=pl.BlockSpec((1, c, tm), lambda i, j: (i, 0, j)),
        compiler_params=pltpu.CompilerParams(
            dimension_semantics=("parallel", "parallel")),
    )(y, scale, shift)


# ---------------------------------------------------------------------------
# Pooling kernel: window reduction with the previous conv's BN+ReLU fused in
# ---------------------------------------------------------------------------
def _make_pool_kernel(n_win, op, mask_pad):
    def kernel(v_ref, sc_ref, sh_ref, o_ref):
        sc = sc_ref[...]
        sh = sh_ref[...]

        def act(i):
            v = v_ref[i].astype(jnp.float32)            # one window slab at a time
            a = jnp.maximum(v * sc + sh, 0.0)
            if mask_pad:                                # pad -> 0 (post-ReLU max>=0)
                a = jnp.where(v <= PAD_THRESH, 0.0, a)
            return a

        acc = act(0)
        for i in range(1, n_win):                       # small static unroll
            a = act(i)
            acc = jnp.maximum(acc, a) if op == "max" else acc + a
        if op == "mean":
            acc = acc * (1.0 / n_win)
        o_ref[...] = acc.astype(o_ref.dtype)
    return kernel


def pool_reduce(views, scale_rows, shift_rows, op, mask_pad, use_pallas=True):
    """views: one stacked (n_win, R, L) slab of shifted window views (single
    input -> 1 DMA per grid step).  relu(v*scale+shift) is applied to every
    window element before reducing with 'max' / 'mean'."""
    n_win, r, l = views.shape
    if not use_pallas:   # pure-jnp reference
        v = views.astype(jnp.float32)
        a = jnp.maximum(v * scale_rows + shift_rows, 0.0)
        if mask_pad:
            a = jnp.where(v <= PAD_THRESH, 0.0, a)
        out = jnp.max(a, axis=0) if op == "max" else jnp.mean(a, axis=0)
        return out.astype(ACT_DTYPE)

    tl = _pick_lane_tile(l)
    return pl.pallas_call(
        _make_pool_kernel(n_win, op, mask_pad),
        out_shape=jax.ShapeDtypeStruct((r, l), ACT_DTYPE),
        grid=(l // tl,),
        in_specs=[pl.BlockSpec((n_win, r, tl), lambda i: (0, 0, i)),
                  pl.BlockSpec((r, 1), lambda i: (0, 0)),
                  pl.BlockSpec((r, 1), lambda i: (0, 0))],
        out_specs=pl.BlockSpec((r, tl), lambda i: (0, i)),
        compiler_params=pltpu.CompilerParams(dimension_semantics=("parallel",)),
    )(views, scale_rows, shift_rows)


def maxpool_3x3_s2_p1(y, scale, shift, n, c, h, w, use_pallas=True):
    """3x3/s2/p1 max-pool of relu(y*scale+shift) (conv1's IN+ReLU fused in).
    Pad positions are explicitly masked to 0 inside the kernel, which is exact
    for the post-ReLU max regardless of the sign of scale."""
    ho = (h + 2 - 3) // 2 + 1
    wo = (w + 2 - 3) // 2 + 1
    ysp = y.reshape(n * c, h, w)
    yp = jnp.pad(ysp, ((0, 0), (1, 1), (1, 1)), constant_values=NEG_PAD)
    # TODO(synk): extract the 9 windows with in-kernel strided slices of a
    # (rows, h+2, w+2) block instead of materializing the stacked views in HBM.
    views = jnp.stack(
        [yp[:, dy:dy + 2 * ho - 1:2, dx:dx + 2 * wo - 1:2].reshape(n * c, ho * wo)
         for dy in range(3) for dx in range(3)], axis=0)
    rows_sc = jnp.broadcast_to(scale, (n, c, 1)).reshape(n * c, 1)
    rows_sh = jnp.broadcast_to(shift, (n, c, 1)).reshape(n * c, 1)
    out = pool_reduce(views, rows_sc, rows_sh, "max", True, use_pallas)
    return out.reshape(n, c, ho * wo), ho, wo


def avgpool_2x2_s2(y, scale, shift, c, n, h, w, use_pallas=True):
    """2x2/s2 avg-pool of relu(y*scale+shift); y laid out (1, C, N*h*w) with
    batch folded into lanes, scale/shift per channel."""
    assert h % 2 == 0 and w % 2 == 0, "AvgPool2d(2,2) path expects even H, W"
    ho, wo = h // 2, w // 2
    ysp = y.reshape(c, n, h, w)
    views = jnp.stack(
        [ysp[:, :, dy::2, dx::2].reshape(c, n * ho * wo)
         for dy in range(2) for dx in range(2)], axis=0)
    out = pool_reduce(views, scale.reshape(c, 1), shift.reshape(c, 1),
                      "mean", False, use_pallas)
    return out[None], ho, wo                           # (1, C, N*ho*wo)


# ---------------------------------------------------------------------------
# 7x7 stem patch extraction (im2col)
# ---------------------------------------------------------------------------
def _im2col_stem(x, ksize, stride, pad):
    """(N, Cin, H, W) -> (N, ksize*ksize*Cin, Ho*Wo) bf16 patch matrix with row
    order (ky, kx, cin) matching the flattened weight layout.
    TODO(synk): build the patch matrix (or accumulate the 49 taps) inside the
    conv kernel from a padded input block to avoid this HBM materialization."""
    n, cin, h, w = x.shape
    ho = (h + 2 * pad - ksize) // stride + 1
    wo = (w + 2 * pad - ksize) // stride + 1
    xp = jnp.pad(x, ((0, 0), (0, 0), (pad, pad), (pad, pad)))
    cols = [xp[:, :, ky:ky + stride * (ho - 1) + 1:stride,
               kx:kx + stride * (wo - 1) + 1:stride]
            for ky in range(ksize) for kx in range(ksize)]
    a = jnp.stack(cols, axis=1).reshape(n, ksize * ksize * cin, ho * wo)
    return a.astype(ACT_DTYPE), ho, wo


# ---------------------------------------------------------------------------
# OSNet parameters + forward
# ---------------------------------------------------------------------------
def init_osnet_params(key, channels=(8, 16, 24, 32)):
    """Matches OSNet._init_params: Conv2d kaiming_normal(fan_out, relu),
    BN / IN weight=1, bias=0.  blocks = [[Conv1x1]] * 3."""
    c0, c1, c2, c3 = channels

    def kaiming(k, o, i, kh, kw):
        std = float(np.sqrt(2.0 / (o * kh * kw)))
        return jax.random.normal(k, (o, i, kh, kw), jnp.float32) * std

    names_and_shapes = [
        ("conv1", c0, 3, 7),     # ConvLayer(3, c0, 7, s2, p3, IN=True)
        ("conv2", c1, c0, 1),    # block: Conv1x1(c0, c1)
        ("pool2", c1, c1, 1),    # Conv1x1(c1, c1) before avgpool
        ("conv3", c2, c1, 1),    # block: Conv1x1(c1, c2)
        ("pool3", c2, c2, 1),    # Conv1x1(c2, c2) before avgpool
        ("conv4", c3, c2, 1),    # block: Conv1x1(c2, c3)
        ("conv5", c3, c3, 1),    # Conv1x1(c3, c3)
    ]
    keys = jax.random.split(key, len(names_and_shapes))
    params = {}
    for k, (name, o, i, ks) in zip(keys, names_and_shapes):
        params[name + "_w"] = kaiming(k, o, i, ks, ks)
        params[name + "_gamma"] = jnp.ones((o,), jnp.float32)
        params[name + "_beta"] = jnp.zeros((o,), jnp.float32)
    return params


def osnet_forward(x_nchw, params, use_pallas=True):
    """x: (N, 3, H, W) float32 -> (N, channels[-1], H/16, W/16) float32 (NCHW)."""
    up = use_pallas
    n = x_nchw.shape[0]
    c0 = params["conv1_w"].shape[0]
    c1 = params["conv2_w"].shape[0]
    c2 = params["conv3_w"].shape[0]
    c3 = params["conv4_w"].shape[0]

    def wmat(name):
        w = params[name + "_w"]                                    # (O, I, kh, kw)
        return w.transpose(0, 2, 3, 1).reshape(w.shape[0], -1)     # (O, K)

    def affine(name, ssum, ssq, count):
        return _affine_from_stats(ssum, ssq, count,
                                  params[name + "_gamma"],
                                  params[name + "_beta"])

    # --- conv1: 7x7/s2/p3 + InstanceNorm; its IN+ReLU epilogue fused into maxpool
    a1, h1, w1 = _im2col_stem(x_nchw.astype(jnp.float32), 7, 2, 3)  # (N,147,M1)
    y1, s1, q1 = conv_stats(wmat("conv1"), a1, use_pallas=up)
    sc1, sh1 = affine("conv1", s1, q1, h1 * w1)                     # per-image

    # --- maxpool 3x3/s2/p1 (applies conv1's IN + ReLU per window element)
    x2r, h2, w2 = maxpool_3x3_s2_p1(y1, sc1, sh1, n, c0, h1, w1, use_pallas=up)
    # Fold batch into the lane axis for the BatchNorm stages: (1, C, N*H*W).
    x2 = x2r.transpose(1, 0, 2).reshape(1, c0, n * h2 * w2)

    # --- conv2 (Conv1x1); its BN + ReLU epilogue fused into pool2's conv
    y2, s2, q2 = conv_stats(wmat("conv2"), x2, use_pallas=up)
    sc2, sh2 = affine("conv2", s2, q2, n * h2 * w2)

    # --- pool2: Conv1x1 (+ fused conv2 epilogue); its BN+ReLU fused into avgpool
    y2b, s2b, q2b = conv_stats(wmat("pool2"), y2, sc2, sh2, use_pallas=up)
    sc2b, sh2b = affine("pool2", s2b, q2b, n * h2 * w2)
    x3, h3, w3 = avgpool_2x2_s2(y2b, sc2b, sh2b, c1, n, h2, w2, use_pallas=up)

    # --- conv3
    y3, s3, q3 = conv_stats(wmat("conv3"), x3, use_pallas=up)
    sc3, sh3 = affine("conv3", s3, q3, n * h3 * w3)

    # --- pool3
    y3b, s3b, q3b = conv_stats(wmat("pool3"), y3, sc3, sh3, use_pallas=up)
    sc3b, sh3b = affine("pool3", s3b, q3b, n * h3 * w3)
    x4, h4, w4 = avgpool_2x2_s2(y3b, sc3b, sh3b, c2, n, h3, w3, use_pallas=up)

    # --- conv4
    y4, s4, q4 = conv_stats(wmat("conv4"), x4, use_pallas=up)
    sc4, sh4 = affine("conv4", s4, q4, n * h4 * w4)

    # --- conv5 (+ fused conv4 epilogue), then its own BN + ReLU epilogue
    y5, s5, q5 = conv_stats(wmat("conv5"), y4, sc4, sh4, use_pallas=up)
    sc5, sh5 = affine("conv5", s5, q5, n * h4 * w4)
    out = norm_relu(y5, sc5, sh5, use_pallas=up)        # (1, c3, N*h4*w4) f32

    return out.reshape(c3, n, h4, w4).transpose(1, 0, 2, 3)   # NCHW


# ---------------------------------------------------------------------------
if __name__ == "__main__":
    key = jax.random.PRNGKey(0)
    k_param, k_x = jax.random.split(key)

    channels = (8, 16, 24, 32)
    params = init_osnet_params(k_param, channels)

    # Small NCHW input consistent with the module (3 input channels).
    x = jax.random.normal(k_x, (2, 3, 32, 32), jnp.float32)

    fwd = jax.jit(functools.partial(osnet_forward, use_pallas=True))
    out = jax.block_until_ready(fwd(x, params))

    # Pure-jnp reference of the exact same math (validates the Pallas kernels).
    ref_fwd = jax.jit(functools.partial(osnet_forward, use_pallas=False))
    ref = jax.block_until_ready(ref_fwd(x, params))

    assert out.shape == (2, channels[-1], 2, 2), out.shape
    assert bool(jnp.all(jnp.isfinite(out)))
    np.testing.assert_allclose(np.asarray(out), np.asarray(ref),
                               rtol=5e-2, atol=5e-2)
    print("KERNEL_OK")
</pallas_src>

<mosaic_0001>
module attributes {stable_mosaic.version = 11 : i64} {
  func.func @_conv_kernel_plain(%arg0: i32, %arg1: i32, %arg2: i32, %arg3: memref<8x147xf32, #tpu.memory_space<vmem>>, %arg4: memref<1x147x256xbf16, #tpu.memory_space<vmem>>, %arg5: memref<1x8x256xbf16, #tpu.memory_space<vmem>>, %arg6: memref<1x1x8x128xf32, #tpu.memory_space<vmem>>, %arg7: memref<1x1x8x128xf32, #tpu.memory_space<vmem>>) attributes {dimension_semantics = [#tpu.dimension_semantics<parallel>, #tpu.dimension_semantics<parallel>, #tpu.dimension_semantics<arbitrary>], iteration_bounds = array<i64: 2, 1, 1>, scalar_prefetch = 0 : i64, scratch_operands = 0 : i64, tpu.core_type = #tpu.core_type<tc>, window_params = [{pipeline_mode = #tpu.pipeline_mode<synchronous>, transform_indices = @transform_0, window_bounds = array<i64: 8, 147>}, {transform_indices = @transform_1, window_bounds = array<i64: 1, 147, 256>}, {transform_indices = @transform_2, window_bounds = array<i64: 1, 8, 256>}, {transform_indices = @transform_3, window_bounds = array<i64: 1, 1, 8, 128>}, {transform_indices = @transform_4, window_bounds = array<i64: 1, 1, 8, 128>}]} {
    %c0 = arith.constant 0 : index
    %c0_0 = arith.constant 0 : index
    %c0_1 = arith.constant 0 : index
    %0 = vector.load %arg4[%c0, %c0_0, %c0_1] : memref<1x147x256xbf16, #tpu.memory_space<vmem>>, vector<1x147x256xbf16>
    %1 = vector.shape_cast %0 : vector<1x147x256xbf16> to vector<147x256xbf16>
    %2 = arith.extf %1 : vector<147x256xbf16> to vector<147x256xf32>
    %c0_2 = arith.constant 0 : index
    %c0_3 = arith.constant 0 : index
    %3 = vector.load %arg3[%c0_2, %c0_3] : memref<8x147xf32, #tpu.memory_space<vmem>>, vector<8x147xf32>
    %cst = arith.constant dense<0.000000e+00> : vector<8x256xf32>
    %4 = tpu.matmul %3, %2, %cst {dimension_numbers = #tpu.dot_dimension_numbers<[1], [0], [0], [1], [0, 0, 1, 1], [], []>} : vector<8x147xf32>, vector<147x256xf32>, vector<8x256xf32> -> vector<8x256xf32>
    %5 = vector.shape_cast %4 : vector<8x256xf32> to vector<1x8x256xf32>
    %6 = arith.truncf %5 : vector<1x8x256xf32> to vector<1x8x256xbf16>
    %c0_4 = arith.constant 0 : index
    %c0_5 = arith.constant 0 : index
    %c0_6 = arith.constant 0 : index
    %7 = vector.load %arg5[%c0_4, %c0_5, %c0_6] : memref<1x8x256xbf16, #tpu.memory_space<vmem>>, vector<1x8x256xbf16>
    tpu.vector_store %arg5[%c0_4, %c0_5, %c0_6], %6 {strides = array<i32>} : memref<1x8x256xbf16, #tpu.memory_space<vmem>>, vector<1x8x256xbf16>,
    %c0_i32 = arith.constant 0 : i32
    %8 = arith.cmpi eq, %arg2, %c0_i32 : i32
    %9 = arith.extui %8 : i1 to i32
    %c0_i32_7 = arith.constant 0 : i32
    %10 = arith.cmpi ne, %9, %c0_i32_7 : i32
    scf.if %10 {
      %cst_26 = arith.constant 0.000000e+00 : f32
      %28 = vector.broadcast %cst_26 : f32 to vector<1x1x8x128xf32>
      %c0_27 = arith.constant 0 : index
      %c0_28 = arith.constant 0 : index
      %c0_29 = arith.constant 0 : index
      %c0_30 = arith.constant 0 : index
      %29 = vector.load %arg6[%c0_27, %c0_28, %c0_29, %c0_30] : memref<1x1x8x128xf32, #tpu.memory_space<vmem>>, vector<1x1x8x128xf32>
      tpu.vector_store %arg6[%c0_27, %c0_28, %c0_29, %c0_30], %28 {strides = array<i32>} : memref<1x1x8x128xf32, #tpu.memory_space<vmem>>, vector<1x1x8x128xf32>,
      %cst_31 = arith.constant 0.000000e+00 : f32
      %30 = vector.broadcast %cst_31 : f32 to vector<1x1x8x128xf32>
      %c0_32 = arith.constant 0 : index
      %c0_33 = arith.constant 0 : index
      %c0_34 = arith.constant 0 : index
      %c0_35 = arith.constant 0 : index
      %31 = vector.load %arg7[%c0_32, %c0_33, %c0_34, %c0_35] : memref<1x1x8x128xf32, #tpu.memory_space<vmem>>, vector<1x1x8x128xf32>
      tpu.vector_store %arg7[%c0_32, %c0_33, %c0_34, %c0_35], %30 {strides = array<i32>} : memref<1x1x8x128xf32, #tpu.memory_space<vmem>>, vector<1x1x8x128xf32>,
    } else {
    }
    %c0_8 = arith.constant 0 : index
    %c0_9 = arith.constant 0 : index
    %c0_10 = arith.constant 0 : index
    %c0_11 = arith.constant 0 : index
    %11 = vector.load %arg6[%c0_8, %c0_9, %c0_10, %c0_11] : memref<1x1x8x128xf32, #tpu.memory_space<vmem>>, vector<1x1x8x128xf32>
    %cst_12 = arith.constant dense<0.000000e+00> : vector<8xf32>
    %12 = vector.multi_reduction <add>, %4, %cst_12 [1] : vector<8x256xf32> to vector<8xf32>
    %13 = vector.shape_cast %12 : vector<8xf32> to vector<8x1xf32>
    %14 = vector.shape_cast %13 : vector<8x1xf32> to vector<8x1xf32>
    %15 = vector.broadcast %14 : vector<8x1xf32> to vector<8x128xf32>
    %16 = vector.shape_cast %15 : vector<8x128xf32> to vector<1x1x8x128xf32>
    %17 = arith.addf %11, %16 : vector<1x1x8x128xf32>
    %c0_13 = arith.constant 0 : index
    %c0_14 = arith.constant 0 : index
    %c0_15 = arith.constant 0 : index
    %c0_16 = arith.constant 0 : index
    %18 = vector.load %arg6[%c0_13, %c0_14, %c0_15, %c0_16] : memref<1x1x8x128xf32, #tpu.memory_space<vmem>>, vector<1x1x8x128xf32>
    tpu.vector_store %arg6[%c0_13, %c0_14, %c0_15, %c0_16], %17 {strides = array<i32>} : memref<1x1x8x128xf32, #tpu.memory_space<vmem>>, vector<1x1x8x128xf32>,
    %c0_17 = arith.constant 0 : index
    %c0_18 = arith.constant 0 : index
    %c0_19 = arith.constant 0 : index
    %c0_20 = arith.constant 0 : index
    %19 = vector.load %arg7[%c0_17, %c0_18, %c0_19, %c0_20] : memref<1x1x8x128xf32, #tpu.memory_space<vmem>>, vector<1x1x8x128xf32>
    %20 = arith.mulf %4, %4 : vector<8x256xf32>
    %cst_21 = arith.constant dense<0.000000e+00> : vector<8xf32>
    %21 = vector.multi_reduction <add>, %20, %cst_21 [1] : vector<8x256xf32> to vector<8xf32>
    %22 = vector.shape_cast %21 : vector<8xf32> to vector<8x1xf32>
    %23 = vector.shape_cast %22 : vector<8x1xf32> to vector<8x1xf32>
    %24 = vector.broadcast %23 : vector<8x1xf32> to vector<8x128xf32>
    %25 = vector.shape_cast %24 : vector<8x128xf32> to vector<1x1x8x128xf32>
    %26 = arith.addf %19, %25 : vector<1x1x8x128xf32>
    %c0_22 = arith.constant 0 : index
    %c0_23 = arith.constant 0 : index
    %c0_24 = arith.constant 0 : index
    %c0_25 = arith.constant 0 : index
    %27 = vector.load %arg7[%c0_22, %c0_23, %c0_24, %c0_25] : memref<1x1x8x128xf32, #tpu.memory_space<vmem>>, vector<1x1x8x128xf32>
    tpu.vector_store %arg7[%c0_22, %c0_23, %c0_24, %c0_25], %26 {strides = array<i32>} : memref<1x1x8x128xf32, #tpu.memory_space<vmem>>, vector<1x1x8x128xf32>,
    return
  }
  func.func @transform_0(%arg0: i32, %arg1: i32, %arg2: i32) -> (i32, i32) {
    %c0_i32 = arith.constant 0 : i32
    %c0_i32_0 = arith.constant 0 : i32
    %c0_i32_1 = arith.constant 0 : i32
    return %c0_i32, %c0_i32_0 : i32, i32
  }
  func.func @transform_1(%arg0: i32, %arg1: i32, %arg2: i32) -> (i32, i32, i32) {
    %c1_i32 = arith.constant 1 : i32
    %0 = arith.muli %arg1, %c1_i32 : i32
    %1 = arith.addi %0, %arg2 : i32
    %c0_i32 = arith.constant 0 : i32
    %c0_i32_0 = arith.constant 0 : i32
    return %arg0, %c0_i32, %1 : i32, i32, i32
  }
  func.func @transform_2(%arg0: i32, %arg1: i32, %arg2: i32) -> (i32, i32, i32) {
    %c1_i32 = arith.constant 1 : i32
    %0 = arith.muli %arg1, %c1_i32 : i32
    %1 = arith.addi %0, %arg2 : i32
    %c0_i32 = arith.constant 0 : i32
    %c0_i32_0 = arith.constant 0 : i32
    return %arg0, %c0_i32, %1 : i32, i32, i32
  }
  func.func @transform_3(%arg0: i32, %arg1: i32, %arg2: i32) -> (i32, i32, i32, i32) {
    %c0_i32 = arith.constant 0 : i32
    %c0_i32_0 = arith.constant 0 : i32
    %c0_i32_1 = arith.constant 0 : i32
    return %arg0, %arg1, %c0_i32, %c0_i32_0 : i32, i32, i32, i32
  }
  func.func @transform_4(%arg0: i32, %arg1: i32, %arg2: i32) -> (i32, i32, i32, i32) {
    %c0_i32 = arith.constant 0 : i32
    %c0_i32_0 = arith.constant 0 : i32
    %c0_i32_1 = arith.constant 0 : i32
    return %arg0, %arg1, %c0_i32, %c0_i32_0 : i32, i32, i32, i32
  }
}

module attributes {stable_mosaic.version = 11 : i64} {
  func.func @_conv_kernel_plain(%arg0: i32, %arg1: i32, %arg2: i32, %arg3: memref<16x8xf32, #tpu.memory_space<vmem>>, %arg4: memref<1x8x128xbf16, #tpu.memory_space<vmem>>, %arg5: memref<1x16x128xbf16, #tpu.memory_space<vmem>>, %arg6: memref<1x1x16x128xf32, #tpu.memory_space<vmem>>, %arg7: memref<1x1x16x128xf32, #tpu.memory_space<vmem>>) attributes {dimension_semantics = [#tpu.dimension_semantics<parallel>, #tpu.dimension_semantics<parallel>, #tpu.dimension_semantics<arbitrary>], iteration_bounds = array<i64: 1, 1, 1>, scalar_prefetch = 0 : i64, scratch_operands = 0 : i64, tpu.core_type = #tpu.core_type<tc>, window_params = [{pipeline_mode = #tpu.pipeline_mode<synchronous>, transform_indices = @transform_0, window_bounds = array<i64: 16, 8>}, {transform_indices = @transform_1, window_bounds = array<i64: 1, 8, 128>}, {transform_indices = @transform_2, window_bounds = array<i64: 1, 16, 128>}, {transform_indices = @transform_3, window_bounds = array<i64: 1, 1, 16, 128>}, {transform_indices = @transform_4, window_bounds = array<i64: 1, 1, 16, 128>}]} {
    %c0 = arith.constant 0 : index
    %c0_0 = arith.constant 0 : index
    %c0_1 = arith.constant 0 : index
    %0 = vector.load %arg4[%c0, %c0_0, %c0_1] : memref<1x8x128xbf16, #tpu.memory_space<vmem>>, vector<1x8x128xbf16>
    %1 = vector.shape_cast %0 : vector<1x8x128xbf16> to vector<8x128xbf16>
    %2 = arith.extf %1 : vector<8x128xbf16> to vector<8x128xf32>
    %c0_2 = arith.constant 0 : index
    %c0_3 = arith.constant 0 : index
    %3 = vector.load %arg3[%c0_2, %c0_3] : memref<16x8xf32, #tpu.memory_space<vmem>>, vector<16x8xf32>
    %cst = arith.constant dense<0.000000e+00> : vector<16x128xf32>
    %4 = tpu.matmul %3, %2, %cst {dimension_numbers = #tpu.dot_dimension_numbers<[1], [0], [0], [1], [0, 0, 1, 1], [], []>} : vector<16x8xf32>, vector<8x128xf32>, vector<16x128xf32> -> vector<16x128xf32>
    %5 = vector.shape_cast %4 : vector<16x128xf32> to vector<1x16x128xf32>
    %6 = arith.truncf %5 : vector<1x16x128xf32> to vector<1x16x128xbf16>
    %c0_4 = arith.constant 0 : index
    %c0_5 = arith.constant 0 : index
    %c0_6 = arith.constant 0 : index
    %7 = vector.load %arg5[%c0_4, %c0_5, %c0_6] : memref<1x16x128xbf16, #tpu.memory_space<vmem>>, vector<1x16x128xbf16>
    tpu.vector_store %arg5[%c0_4, %c0_5, %c0_6], %6 {strides = array<i32>} : memref<1x16x128xbf16, #tpu.memory_space<vmem>>, vector<1x16x128xbf16>,
    %c0_i32 = arith.constant 0 : i32
    %8 = arith.cmpi eq, %arg2, %c0_i32 : i32
    %9 = arith.extui %8 : i1 to i32
    %c0_i32_7 = arith.constant 0 : i32
    %10 = arith.cmpi ne, %9, %c0_i32_7 : i32
    scf.if %10 {
      %cst_26 = arith.constant 0.000000e+00 : f32
      %28 = vector.broadcast %cst_26 : f32 to vector<1x1x16x128xf32>
      %c0_27 = arith.constant 0 : index
      %c0_28 = arith.constant 0 : index
      %c0_29 = arith.constant 0 : index
      %c0_30 = arith.constant 0 : index
      %29 = vector.load %arg6[%c0_27, %c0_28, %c0_29, %c0_30] : memref<1x1x16x128xf32, #tpu.memory_space<vmem>>, vector<1x1x16x128xf32>
      tpu.vector_store %arg6[%c0_27, %c0_28, %c0_29, %c0_30], %28 {strides = array<i32>} : memref<1x1x16x128xf32, #tpu.memory_space<vmem>>, vector<1x1x16x128xf32>,
      %cst_31 = arith.constant 0.000000e+00 : f32
      %30 = vector.broadcast %cst_31 : f32 to vector<1x1x16x128xf32>
      %c0_32 = arith.constant 0 : index
      %c0_33 = arith.constant 0 : index
      %c0_34 = arith.constant 0 : index
      %c0_35 = arith.constant 0 : index
      %31 = vector.load %arg7[%c0_32, %c0_33, %c0_34, %c0_35] : memref<1x1x16x128xf32, #tpu.memory_space<vmem>>, vector<1x1x16x128xf32>
      tpu.vector_store %arg7[%c0_32, %c0_33, %c0_34, %c0_35], %30 {strides = array<i32>} : memref<1x1x16x128xf32, #tpu.memory_space<vmem>>, vector<1x1x16x128xf32>,
    } else {
    }
    %c0_8 = arith.constant 0 : index
    %c0_9 = arith.constant 0 : index
    %c0_10 = arith.constant 0 : index
    %c0_11 = arith.constant 0 : index
    %11 = vector.load %arg6[%c0_8, %c0_9, %c0_10, %c0_11] : memref<1x1x16x128xf32, #tpu.memory_space<vmem>>, vector<1x1x16x128xf32>
    %cst_12 = arith.constant dense<0.000000e+00> : vector<16xf32>
    %12 = vector.multi_reduction <add>, %4, %cst_12 [1] : vector<16x128xf32> to vector<16xf32>
    %13 = vector.shape_cast %12 : vector<16xf32> to vector<16x1xf32>
    %14 = vector.shape_cast %13 : vector<16x1xf32> to vector<16x1xf32>
    %15 = vector.broadcast %14 : vector<16x1xf32> to vector<16x128xf32>
    %16 = vector.shape_cast %15 : vector<16x128xf32> to vector<1x1x16x128xf32>
    %17 = arith.addf %11, %16 : vector<1x1x16x128xf32>
    %c0_13 = arith.constant 0 : index
    %c0_14 = arith.constant 0 : index
    %c0_15 = arith.constant 0 : index
    %c0_16 = arith.constant 0 : index
    %18 = vector.load %arg6[%c0_13, %c0_14, %c0_15, %c0_16] : memref<1x1x16x128xf32, #tpu.memory_space<vmem>>, vector<1x1x16x128xf32>
    tpu.vector_store %arg6[%c0_13, %c0_14, %c0_15, %c0_16], %17 {strides = array<i32>} : memref<1x1x16x128xf32, #tpu.memory_space<vmem>>, vector<1x1x16x128xf32>,
    %c0_17 = arith.constant 0 : index
    %c0_18 = arith.constant 0 : index
    %c0_19 = arith.constant 0 : index
    %c0_20 = arith.constant 0 : index
    %19 = vector.load %arg7[%c0_17, %c0_18, %c0_19, %c0_20] : memref<1x1x16x128xf32, #tpu.memory_space<vmem>>, vector<1x1x16x128xf32>
    %20 = arith.mulf %4, %4 : vector<16x128xf32>
    %cst_21 = arith.constant dense<0.000000e+00> : vector<16xf32>
    %21 = vector.multi_reduction <add>, %20, %cst_21 [1] : vector<16x128xf32> to vector<16xf32>
    %22 = vector.shape_cast %21 : vector<16xf32> to vector<16x1xf32>
    %23 = vector.shape_cast %22 : vector<16x1xf32> to vector<16x1xf32>
    %24 = vector.broadcast %23 : vector<16x1xf32> to vector<16x128xf32>
    %25 = vector.shape_cast %24 : vector<16x128xf32> to vector<1x1x16x128xf32>
    %26 = arith.addf %19, %25 : vector<1x1x16x128xf32>
    %c0_22 = arith.constant 0 : index
    %c0_23 = arith.constant 0 : index
    %c0_24 = arith.constant 0 : index
    %c0_25 = arith.constant 0 : index
    %27 = vector.load %arg7[%c0_22, %c0_23, %c0_24, %c0_25] : memref<1x1x16x128xf32, #tpu.memory_space<vmem>>, vector<1x1x16x128xf32>
    tpu.vector_store %arg7[%c0_22, %c0_23, %c0_24, %c0_25], %26 {strides = array<i32>} : memref<1x1x16x128xf32, #tpu.memory_space<vmem>>, vector<1x1x16x128xf32>,
    return
  }
  func.func @transform_0(%arg0: i32, %arg1: i32, %arg2: i32) -> (i32, i32) {
    %c0_i32 = arith.constant 0 : i32
    %c0_i32_0 = arith.constant 0 : i32
    %c0_i32_1 = arith.constant 0 : i32
    return %c0_i32, %c0_i32_0 : i32, i32
  }
  func.func @transform_1(%arg0: i32, %arg1: i32, %arg2: i32) -> (i32, i32, i32) {
    %c1_i32 = arith.constant 1 : i32
    %0 = arith.muli %arg1, %c1_i32 : i32
    %1 = arith.addi %0, %arg2 : i32
    %c0_i32 = arith.constant 0 : i32
    %c0_i32_0 = arith.constant 0 : i32
    return %arg0, %c0_i32, %1 : i32, i32, i32
  }
  func.func @transform_2(%arg0: i32, %arg1: i32, %arg2: i32) -> (i32, i32, i32) {
    %c1_i32 = arith.constant 1 : i32
    %0 = arith.muli %arg1, %c1_i32 : i32
    %1 = arith.addi %0, %arg2 : i32
    %c0_i32 = arith.constant 0 : i32
    %c0_i32_0 = arith.constant 0 : i32
    return %arg0, %c0_i32, %1 : i32, i32, i32
  }
  func.func @transform_3(%arg0: i32, %arg1: i32, %arg2: i32) -> (i32, i32, i32, i32) {
    %c0_i32 = arith.constant 0 : i32
    %c0_i32_0 = arith.constant 0 : i32
    %c0_i32_1 = arith.constant 0 : i32
    return %arg0, %arg1, %c0_i32, %c0_i32_0 : i32, i32, i32, i32
  }
  func.func @transform_4(%arg0: i32, %arg1: i32, %arg2: i32) -> (i32, i32, i32, i32) {
    %c0_i32 = arith.constant 0 : i32
    %c0_i32_0 = arith.constant 0 : i32
    %c0_i32_1 = arith.constant 0 : i32
    return %arg0, %arg1, %c0_i32, %c0_i32_0 : i32, i32, i32, i32
  }
}

module attributes {stable_mosaic.version = 11 : i64} {
  func.func @kernel(%arg0: i32, %arg1: memref<9x16x64xbf16, #tpu.memory_space<vmem>>, %arg2: memref<16x1xf32, #tpu.memory_space<vmem>>, %arg3: memref<16x1xf32, #tpu.memory_space<vmem>>, %arg4: memref<16x64xbf16, #tpu.memory_space<vmem>>) attributes {dimension_semantics = [#tpu.dimension_semantics<parallel>], iteration_bounds = array<i64: 1>, scalar_prefetch = 0 : i64, scratch_operands = 0 : i64, tpu.core_type = #tpu.core_type<tc>, window_params = [{transform_indices = @transform_0, window_bounds = array<i64: 9, 16, 64>}, {pipeline_mode = #tpu.pipeline_mode<synchronous>, transform_indices = @transform_1, window_bounds = array<i64: 16, 1>}, {pipeline_mode = #tpu.pipeline_mode<synchronous>, transform_indices = @transform_2, window_bounds = array<i64: 16, 1>}, {transform_indices = @transform_3, window_bounds = array<i64: 16, 64>}]} {
    %c0 = arith.constant 0 : index
    %c0_0 = arith.constant 0 : index
    %0 = vector.load %arg2[%c0, %c0_0] : memref<16x1xf32, #tpu.memory_space<vmem>>, vector<16x1xf32>
    %c0_1 = arith.constant 0 : index
    %c0_2 = arith.constant 0 : index
    %1 = vector.load %arg3[%c0_1, %c0_2] : memref<16x1xf32, #tpu.memory_space<vmem>>, vector<16x1xf32>
    %c0_3 = arith.constant 0 : index
    %c0_4 = arith.constant 0 : index
    %c0_5 = arith.constant 0 : index
    %2 = vector.load %arg1[%c0_3, %c0_4, %c0_5] : memref<9x16x64xbf16, #tpu.memory_space<vmem>>, vector<1x16x64xbf16>
    %3 = vector.shape_cast %2 : vector<1x16x64xbf16> to vector<16x64xbf16>
    %4 = arith.extf %3 : vector<16x64xbf16> to vector<16x64xf32>
    %5 = vector.broadcast %0 : vector<16x1xf32> to vector<16x64xf32>
    %6 = arith.mulf %4, %5 : vector<16x64xf32>
    %7 = vector.broadcast %1 : vector<16x1xf32> to vector<16x64xf32>
    %8 = arith.addf %6, %7 : vector<16x64xf32>
    %cst = arith.constant 0.000000e+00 : f32
    %9 = vector.broadcast %cst : f32 to vector<16x64xf32>
    %10 = arith.maximumf %8, %9 : vector<16x64xf32>
    %cst_6 = arith.constant -1.000000e+29 : f32
    %11 = vector.broadcast %cst_6 : f32 to vector<16x64xf32>
    %12 = arith.cmpf ole, %4, %11 : vector<16x64xf32>
    %cst_7 = arith.constant 0.000000e+00 : f32
    %13 = vector.broadcast %cst_7 : f32 to vector<16x64xf32>
    %14 = arith.select %12, %13, %10 : vector<16x64xi1>, vector<16x64xf32>
    %c1 = arith.constant 1 : index
    %c0_8 = arith.constant 0 : index
    %c0_9 = arith.constant 0 : index
    %15 = vector.load %arg1[%c1, %c0_8, %c0_9] : memref<9x16x64xbf16, #tpu.memory_space<vmem>>, vector<1x16x64xbf16>
    %16 = vector.shape_cast %15 : vector<1x16x64xbf16> to vector<16x64xbf16>
    %17 = arith.extf %16 : vector<16x64xbf16> to vector<16x64xf32>
    %18 = vector.broadcast %0 : vector<16x1xf32> to vector<16x64xf32>
    %19 = arith.mulf %17, %18 : vector<16x64xf32>
    %20 = vector.broadcast %1 : vector<16x1xf32> to vector<16x64xf32>
    %21 = arith.addf %19, %20 : vector<16x64xf32>
    %cst_10 = arith.constant 0.000000e+00 : f32
    %22 = vector.broadcast %cst_10 : f32 to vector<16x64xf32>
    %23 = arith.maximumf %21, %22 : vector<16x64xf32>
    %cst_11 = arith.constant -1.000000e+29 : f32
    %24 = vector.broadcast %cst_11 : f32 to vector<16x64xf32>
    %25 = arith.cmpf ole, %17, %24 : vector<16x64xf32>
    %cst_12 = arith.constant 0.000000e+00 : f32
    %26 = vector.broadcast %cst_12 : f32 to vector<16x64xf32>
    %27 = arith.select %25, %26, %23 : vector<16x64xi1>, vector<16x64xf32>
    %28 = arith.maximumf %14, %27 : vector<16x64xf32>
    %c2 = arith.constant 2 : index
    %c0_13 = arith.constant 0 : index
    %c0_14 = arith.constant 0 : index
    %29 = vector.load %arg1[%c2, %c0_13, %c0_14] : memref<9x16x64xbf16, #tpu.memory_space<vmem>>, vector<1x16x64xbf16>
    %30 = vector.shape_cast %29 : vector<1x16x64xbf16> to vector<16x64xbf16>
    %31 = arith.extf %30 : vector<16x64xbf16> to vector<16x64xf32>
    %32 = vector.broadcast %0 : vector<16x1xf32> to vector<16x64xf32>
    %33 = arith.mulf %31, %32 : vector<16x64xf32>
    %34 = vector.broadcast %1 : vector<16x1xf32> to vector<16x64xf32>
    %35 = arith.addf %33, %34 : vector<16x64xf32>
    %cst_15 = arith.constant 0.000000e+00 : f32
    %36 = vector.broadcast %cst_15 : f32 to vector<16x64xf32>
    %37 = arith.maximumf %35, %36 : vector<16x64xf32>
    %cst_16 = arith.constant -1.000000e+29 : f32
    %38 = vector.broadcast %cst_16 : f32 to vector<16x64xf32>
    %39 = arith.cmpf ole, %31, %38 : vector<16x64xf32>
    %cst_17 = arith.constant 0.000000e+00 : f32
    %40 = vector.broadcast %cst_17 : f32 to vector<16x64xf32>
    %41 = arith.select %39, %40, %37 : vector<16x64xi1>, vector<16x64xf32>
    %42 = arith.maximumf %28, %41 : vector<16x64xf32>
    %c3 = arith.constant 3 : index
    %c0_18 = arith.constant 0 : index
    %c0_19 = arith.constant 0 : index
    %43 = vector.load %arg1[%c3, %c0_18, %c0_19] : memref<9x16x64xbf16, #tpu.memory_space<vmem>>, vector<1x16x64xbf16>
    %44 = vector.shape_cast %43 : vector<1x16x64xbf16> to vector<16x64xbf16>
    %45 = arith.extf %44 : vector<16x64xbf16> to vector<16x64xf32>
    %46 = vector.broadcast %0 : vector<16x1xf32> to vector<16x64xf32>
    %47 = arith.mulf %45, %46 : vector<16x64xf32>
    %48 = vector.broadcast %1 : vector<16x1xf32> to vector<16x64xf32>
    %49 = arith.addf %47, %48 : vector<16x64xf32>
    %cst_20 = arith.constant 0.000000e+00 : f32
    %50 = vector.broadcast %cst_20 : f32 to vector<16x64xf32>
    %51 = arith.maximumf %49, %50 : vector<16x64xf32>
    %cst_21 = arith.constant -1.000000e+29 : f32
    %52 = vector.broadcast %cst_21 : f32 to vector<16x64xf32>
    %53 = arith.cmpf ole, %45, %52 : vector<16x64xf32>
    %cst_22 = arith.constant 0.000000e+00 : f32
    %54 = vector.broadcast %cst_22 : f32 to vector<16x64xf32>
    %55 = arith.select %53, %54, %51 : vector<16x64xi1>, vector<16x64xf32>
    %56 = arith.maximumf %42, %55 : vector<16x64xf32>
    %c4 = arith.constant 4 : index
    %c0_23 = arith.constant 0 : index
    %c0_24 = arith.constant 0 : index
    %57 = vector.load %arg1[%c4, %c0_23, %c0_24] : memref<9x16x64xbf16, #tpu.memory_space<vmem>>, vector<1x16x64xbf16>
    %58 = vector.shape_cast %57 : vector<1x16x64xbf16> to vector<16x64xbf16>
    %59 = arith.extf %58 : vector<16x64xbf16> to vector<16x64xf32>
    %60 = vector.broadcast %0 : vector<16x1xf32> to vector<16x64xf32>
    %61 = arith.mulf %59, %60 : vector<16x64xf32>
    %62 = vector.broadcast %1 : vector<16x1xf32> to vector<16x64xf32>
    %63 = arith.addf %61, %62 : vector<16x64xf32>
    %cst_25 = arith.constant 0.000000e+00 : f32
    %64 = vector.broadcast %cst_25 : f32 to vector<16x64xf32>
    %65 = arith.maximumf %63, %64 : vector<16x64xf32>
    %cst_26 = arith.constant -1.000000e+29 : f32
    %66 = vector.broadcast %cst_26 : f32 to vector<16x64xf32>
    %67 = arith.cmpf ole, %59, %66 : vector<16x64xf32>
    %cst_27 = arith.constant 0.000000e+00 : f32
    %68 = vector.broadcast %cst_27 : f32 to vector<16x64xf32>
    %69 = arith.select %67, %68, %65 : vector<16x64xi1>, vector<16x64xf32>
    %70 = arith.maximumf %56, %69 : vector<16x64xf32>
    %c5 = arith.constant 5 : index
    %c0_28 = arith.constant 0 : index
    %c0_29 = arith.constant 0 : index
    %71 = vector.load %arg1[%c5, %c0_28, %c0_29] : memref<9x16x64xbf16, #tpu.memory_space<vmem>>, vector<1x16x64xbf16>
    %72 = vector.shape_cast %71 : vector<1x16x64xbf16> to vector<16x64xbf16>
    %73 = arith.extf %72 : vector<16x64xbf16> to vector<16x64xf32>
    %74 = vector.broadcast %0 : vector<16x1xf32> to vector<16x64xf32>
    %75 = arith.mulf %73, %74 : vector<16x64xf32>
    %76 = vector.broadcast %1 : vector<16x1xf32> to vector<16x64xf32>
    %77 = arith.addf %75, %76 : vector<16x64xf32>
    %cst_30 = arith.constant 0.000000e+00 : f32
    %78 = vector.broadcast %cst_30 : f32 to vector<16x64xf32>
    %79 = arith.maximumf %77, %78 : vector<16x64xf32>
    %cst_31 = arith.constant -1.000000e+29 : f32
    %80 = vector.broadcast %cst_31 : f32 to vector<16x64xf32>
    %81 = arith.cmpf ole, %73, %80 : vector<16x64xf32>
    %cst_32 = arith.constant 0.000000e+00 : f32
    %82 = vector.broadcast %cst_32 : f32 to vector<16x64xf32>
    %83 = arith.select %81, %82, %79 : vector<16x64xi1>, vector<16x64xf32>
    %84 = arith.maximumf %70, %83 : vector<16x64xf32>
    %c6 = arith.constant 6 : index
    %c0_33 = arith.constant 0 : index
    %c0_34 = arith.constant 0 : index
    %85 = vector.load %arg1[%c6, %c0_33, %c0_34] : memref<9x16x64xbf16, #tpu.memory_space<vmem>>, vector<1x16x64xbf16>
    %86 = vector.shape_cast %85 : vector<1x16x64xbf16> to vector<16x64xbf16>
    %87 = arith.extf %86 : vector<16x64xbf16> to vector<16x64xf32>
    %88 = vector.broadcast %0 : vector<16x1xf32> to vector<16x64xf32>
    %89 = arith.mulf %87, %88 : vector<16x64xf32>
    %90 = vector.broadcast %1 : vector<16x1xf32> to vector<16x64xf32>
    %91 = arith.addf %89, %90 : vector<16x64xf32>
    %cst_35 = arith.constant 0.000000e+00 : f32
    %92 = vector.broadcast %cst_35 : f32 to vector<16x64xf32>
    %93 = arith.maximumf %91, %92 : vector<16x64xf32>
    %cst_36 = arith.constant -1.000000e+29 : f32
    %94 = vector.broadcast %cst_36 : f32 to vector<16x64xf32>
    %95 = arith.cmpf ole, %87, %94 : vector<16x64xf32>
    %cst_37 = arith.constant 0.000000e+00 : f32
    %96 = vector.broadcast %cst_37 : f32 to vector<16x64xf32>
    %97 = arith.select %95, %96, %93 : vector<16x64xi1>, vector<16x64xf32>
    %98 = arith.maximumf %84, %97 : vector<16x64xf32>
    %c7 = arith.constant 7 : index
    %c0_38 = arith.constant 0 : index
    %c0_39 = arith.constant 0 : index
    %99 = vector.load %arg1[%c7, %c0_38, %c0_39] : memref<9x16x64xbf16, #tpu.memory_space<vmem>>, vector<1x16x64xbf16>
    %100 = vector.shape_cast %99 : vector<1x16x64xbf16> to vector<16x64xbf16>
    %101 = arith.extf %100 : vector<16x64xbf16> to vector<16x64xf32>
    %102 = vector.broadcast %0 : vector<16x1xf32> to vector<16x64xf32>
    %103 = arith.mulf %101, %102 : vector<16x64xf32>
    %104 = vector.broadcast %1 : vector<16x1xf32> to vector<16x64xf32>
    %105 = arith.addf %103, %104 : vector<16x64xf32>
    %cst_40 = arith.constant 0.000000e+00 : f32
    %106 = vector.broadcast %cst_40 : f32 to vector<16x64xf32>
    %107 = arith.maximumf %105, %106 : vector<16x64xf32>
    %cst_41 = arith.constant -1.000000e+29 : f32
    %108 = vector.broadcast %cst_41 : f32 to vector<16x64xf32>
    %109 = arith.cmpf ole, %101, %108 : vector<16x64xf32>
    %cst_42 = arith.constant 0.000000e+00 : f32
    %110 = vector.broadcast %cst_42 : f32 to vector<16x64xf32>
    %111 = arith.select %109, %110, %107 : vector<16x64xi1>, vector<16x64xf32>
    %112 = arith.maximumf %98, %111 : vector<16x64xf32>
    %c8 = arith.constant 8 : index
    %c0_43 = arith.constant 0 : index
    %c0_44 = arith.constant 0 : index
    %113 = vector.load %arg1[%c8, %c0_43, %c0_44] : memref<9x16x64xbf16, #tpu.memory_space<vmem>>, vector<1x16x64xbf16>
    %114 = vector.shape_cast %113 : vector<1x16x64xbf16> to vector<16x64xbf16>
    %115 = arith.extf %114 : vector<16x64xbf16> to vector<16x64xf32>
    %116 = vector.broadcast %0 : vector<16x1xf32> to vector<16x64xf32>
    %117 = arith.mulf %115, %116 : vector<16x64xf32>
    %118 = vector.broadcast %1 : vector<16x1xf32> to vector<16x64xf32>
    %119 = arith.addf %117, %118 : vector<16x64xf32>
    %cst_45 = arith.constant 0.000000e+00 : f32
    %120 = vector.broadcast %cst_45 : f32 to vector<16x64xf32>
    %121 = arith.maximumf %119, %120 : vector<16x64xf32>
    %cst_46 = arith.constant -1.000000e+29 : f32
    %122 = vector.broadcast %cst_46 : f32 to vector<16x64xf32>
    %123 = arith.cmpf ole, %115, %122 : vector<16x64xf32>
    %cst_47 = arith.constant 0.000000e+00 : f32
    %124 = vector.broadcast %cst_47 : f32 to vector<16x64xf32>
    %125 = arith.select %123, %124, %121 : vector<16x64xi1>, vector<16x64xf32>
    %126 = arith.maximumf %112, %125 : vector<16x64xf32>
    %127 = arith.truncf %126 : vector<16x64xf32> to vector<16x64xbf16>
    %c0_48 = arith.constant 0 : index
    %c0_49 = arith.constant 0 : index
    %128 = vector.load %arg4[%c0_48, %c0_49] : memref<16x64xbf16, #tpu.memory_space<vmem>>, vector<16x64xbf16>
    tpu.vector_store %arg4[%c0_48, %c0_49], %127 {strides = array<i32>} : memref<16x64xbf16, #tpu.memory_space<vmem>>, vector<16x64xbf16>,
    return
  }
  func.func @transform_0(%arg0: i32) -> (i32, i32, i32) {
    %c0_i32 = arith.constant 0 : i32
    %c0_i32_0 = arith.constant 0 : i32
    %c0_i32_1 = arith.constant 0 : i32
    return %c0_i32, %c0_i32_0, %arg0 : i32, i32, i32
  }
  func.func @transform_1(%arg0: i32) -> (i32, i32) {
    %c0_i32 = arith.constant 0 : i32
    %c0_i32_0 = arith.constant 0 : i32
    %c0_i32_1 = arith.constant 0 : i32
    return %c0_i32, %c0_i32_0 : i32, i32
  }
  func.func @transform_2(%arg0: i32) -> (i32, i32) {
    %c0_i32 = arith.constant 0 : i32
    %c0_i32_0 = arith.constant 0 : i32
    %c0_i32_1 = arith.constant 0 : i32
    return %c0_i32, %c0_i32_0 : i32, i32
  }
  func.func @transform_3(%arg0: i32) -> (i32, i32) {
    %c0_i32 = arith.constant 0 : i32
    %c0_i32_0 = arith.constant 0 : i32
    return %c0_i32, %arg0 : i32, i32
  }
}

module attributes {stable_mosaic.version = 11 : i64} {
  func.func @_conv_kernel_fused(%arg0: i32, %arg1: i32, %arg2: i32, %arg3: memref<16x16xf32, #tpu.memory_space<vmem>>, %arg4: memref<1x16x128xbf16, #tpu.memory_space<vmem>>, %arg5: memref<1x16x1xf32, #tpu.memory_space<vmem>>, %arg6: memref<1x16x1xf32, #tpu.memory_space<vmem>>, %arg7: memref<1x16x128xbf16, #tpu.memory_space<vmem>>, %arg8: memref<1x1x16x128xf32, #tpu.memory_space<vmem>>, %arg9: memref<1x1x16x128xf32, #tpu.memory_space<vmem>>) attributes {dimension_semantics = [#tpu.dimension_semantics<parallel>, #tpu.dimension_semantics<parallel>, #tpu.dimension_semantics<arbitrary>], iteration_bounds = array<i64: 1, 1, 1>, scalar_prefetch = 0 : i64, scratch_operands = 0 : i64, tpu.core_type = #tpu.core_type<tc>, window_params = [{pipeline_mode = #tpu.pipeline_mode<synchronous>, transform_indices = @transform_0, window_bounds = array<i64: 16, 16>}, {transform_indices = @transform_1, window_bounds = array<i64: 1, 16, 128>}, {pipeline_mode = #tpu.pipeline_mode<synchronous>, transform_indices = @transform_2, window_bounds = array<i64: 1, 16, 1>}, {pipeline_mode = #tpu.pipeline_mode<synchronous>, transform_indices = @transform_3, window_bounds = array<i64: 1, 16, 1>}, {transform_indices = @transform_4, window_bounds = array<i64: 1, 16, 128>}, {transform_indices = @transform_5, window_bounds = array<i64: 1, 1, 16, 128>}, {transform_indices = @transform_6, window_bounds = array<i64: 1, 1, 16, 128>}]} {
    %c0 = arith.constant 0 : index
    %c0_0 = arith.constant 0 : index
    %c0_1 = arith.constant 0 : index
    %0 = vector.load %arg4[%c0, %c0_0, %c0_1] : memref<1x16x128xbf16, #tpu.memory_space<vmem>>, vector<1x16x128xbf16>
    %1 = vector.shape_cast %0 : vector<1x16x128xbf16> to vector<16x128xbf16>
    %2 = arith.extf %1 : vector<16x128xbf16> to vector<16x128xf32>
    %c0_2 = arith.constant 0 : index
    %c0_3 = arith.constant 0 : index
    %c0_4 = arith.constant 0 : index
    %3 = vector.load %arg5[%c0_2, %c0_3, %c0_4] : memref<1x16x1xf32, #tpu.memory_space<vmem>>, vector<1x16x1xf32>
    %4 = vector.shape_cast %3 : vector<1x16x1xf32> to vector<16x1xf32>
    %5 = vector.broadcast %4 : vector<16x1xf32> to vector<16x128xf32>
    %6 = arith.mulf %2, %5 : vector<16x128xf32>
    %c0_5 = arith.constant 0 : index
    %c0_6 = arith.constant 0 : index
    %c0_7 = arith.constant 0 : index
    %7 = vector.load %arg6[%c0_5, %c0_6, %c0_7] : memref<1x16x1xf32, #tpu.memory_space<vmem>>, vector<1x16x1xf32>
    %8 = vector.shape_cast %7 : vector<1x16x1xf32> to vector<16x1xf32>
    %9 = vector.broadcast %8 : vector<16x1xf32> to vector<16x128xf32>
    %10 = arith.addf %6, %9 : vector<16x128xf32>
    %cst = arith.constant 0.000000e+00 : f32
    %11 = vector.broadcast %cst : f32 to vector<16x128xf32>
    %12 = arith.maximumf %10, %11 : vector<16x128xf32>
    %c0_8 = arith.constant 0 : index
    %c0_9 = arith.constant 0 : index
    %13 = vector.load %arg3[%c0_8, %c0_9] : memref<16x16xf32, #tpu.memory_space<vmem>>, vector<16x16xf32>
    %cst_10 = arith.constant dense<0.000000e+00> : vector<16x128xf32>
    %14 = tpu.matmul %13, %12, %cst_10 {dimension_numbers = #tpu.dot_dimension_numbers<[1], [0], [0], [1], [0, 0, 1, 1], [], []>} : vector<16x16xf32>, vector<16x128xf32>, vector<16x128xf32> -> vector<16x128xf32>
    %15 = vector.shape_cast %14 : vector<16x128xf32> to vector<1x16x128xf32>
    %16 = arith.truncf %15 : vector<1x16x128xf32> to vector<1x16x128xbf16>
    %c0_11 = arith.constant 0 : index
    %c0_12 = arith.constant 0 : index
    %c0_13 = arith.constant 0 : index
    %17 = vector.load %arg7[%c0_11, %c0_12, %c0_13] : memref<1x16x128xbf16, #tpu.memory_space<vmem>>, vector<1x16x128xbf16>
    tpu.vector_store %arg7[%c0_11, %c0_12, %c0_13], %16 {strides = array<i32>} : memref<1x16x128xbf16, #tpu.memory_space<vmem>>, vector<1x16x128xbf16>,
    %c0_i32 = arith.constant 0 : i32
    %18 = arith.cmpi eq, %arg2, %c0_i32 : i32
    %19 = arith.extui %18 : i1 to i32
    %c0_i32_14 = arith.constant 0 : i32
    %20 = arith.cmpi ne, %19, %c0_i32_14 : i32
    scf.if %20 {
      %cst_33 = arith.constant 0.000000e+00 : f32
      %38 = vector.broadcast %cst_33 : f32 to vector<1x1x16x128xf32>
      %c0_34 = arith.constant 0 : index
      %c0_35 = arith.constant 0 : index
      %c0_36 = arith.constant 0 : index
      %c0_37 = arith.constant 0 : index
      %39 = vector.load %arg8[%c0_34, %c0_35, %c0_36, %c0_37] : memref<1x1x16x128xf32, #tpu.memory_space<vmem>>, vector<1x1x16x128xf32>
      tpu.vector_store %arg8[%c0_34, %c0_35, %c0_36, %c0_37], %38 {strides = array<i32>} : memref<1x1x16x128xf32, #tpu.memory_space<vmem>>, vector<1x1x16x128xf32>,
      %cst_38 = arith.constant 0.000000e+00 : f32
      %40 = vector.broadcast %cst_38 : f32 to vector<1x1x16x128xf32>
      %c0_39 = arith.constant 0 : index
      %c0_40 = arith.constant 0 : index
      %c0_41 = arith.constant 0 : index
      %c0_42 = arith.constant 0 : index
      %41 = vector.load %arg9[%c0_39, %c0_40, %c0_41, %c0_42] : memref<1x1x16x128xf32, #tpu.memory_space<vmem>>, vector<1x1x16x128xf32>
      tpu.vector_store %arg9[%c0_39, %c0_40, %c0_41, %c0_42], %40 {strides = array<i32>} : memref<1x1x16x128xf32, #tpu.memory_space<vmem>>, vector<1x1x16x128xf32>,
    } else {
    }
    %c0_15 = arith.constant 0 : index
    %c0_16 = arith.constant 0 : index
    %c0_17 = arith.constant 0 : index
    %c0_18 = arith.constant 0 : index
    %21 = vector.load %arg8[%c0_15, %c0_16, %c0_17, %c0_18] : memref<1x1x16x128xf32, #tpu.memory_space<vmem>>, vector<1x1x16x128xf32>
    %cst_19 = arith.constant dense<0.000000e+00> : vector<16xf32>
    %22 = vector.multi_reduction <add>, %14, %cst_19 [1] : vector<16x128xf32> to vector<16xf32>
    %23 = vector.shape_cast %22 : vector<16xf32> to vector<16x1xf32>
    %24 = vector.shape_cast %23 : vector<16x1xf32> to vector<16x1xf32>
    %25 = vector.broadcast %24 : vector<16x1xf32> to vector<16x128xf32>
    %26 = vector.shape_cast %25 : vector<16x128xf32> to vector<1x1x16x128xf32>
    %27 = arith.addf %21, %26 : vector<1x1x16x128xf32>
    %c0_20 = arith.constant 0 : index
    %c0_21 = arith.constant 0 : index
    %c0_22 = arith.constant 0 : index
    %c0_23 = arith.constant 0 : index
    %28 = vector.load %arg8[%c0_20, %c0_21, %c0_22, %c0_23] : memref<1x1x16x128xf32, #tpu.memory_space<vmem>>, vector<1x1x16x128xf32>
    tpu.vector_store %arg8[%c0_20, %c0_21, %c0_22, %c0_23], %27 {strides = array<i32>} : memref<1x1x16x128xf32, #tpu.memory_space<vmem>>, vector<1x1x16x128xf32>,
    %c0_24 = arith.constant 0 : index
    %c0_25 = arith.constant 0 : index
    %c0_26 = arith.constant 0 : index
    %c0_27 = arith.constant 0 : index
    %29 = vector.load %arg9[%c0_24, %c0_25, %c0_26, %c0_27] : memref<1x1x16x128xf32, #tpu.memory_space<vmem>>, vector<1x1x16x128xf32>
    %30 = arith.mulf %14, %14 : vector<16x128xf32>
    %cst_28 = arith.constant dense<0.000000e+00> : vector<16xf32>
    %31 = vector.multi_reduction <add>, %30, %cst_28 [1] : vector<16x128xf32> to vector<16xf32>
    %32 = vector.shape_cast %31 : vector<16xf32> to vector<16x1xf32>
    %33 = vector.shape_cast %32 : vector<16x1xf32> to vector<16x1xf32>
    %34 = vector.broadcast %33 : vector<16x1xf32> to vector<16x128xf32>
    %35 = vector.shape_cast %34 : vector<16x128xf32> to vector<1x1x16x128xf32>
    %36 = arith.addf %29, %35 : vector<1x1x16x128xf32>
    %c0_29 = arith.constant 0 : index
    %c0_30 = arith.constant 0 : index
    %c0_31 = arith.constant 0 : index
    %c0_32 = arith.constant 0 : index
    %37 = vector.load %arg9[%c0_29, %c0_30, %c0_31, %c0_32] : memref<1x1x16x128xf32, #tpu.memory_space<vmem>>, vector<1x1x16x128xf32>
    tpu.vector_store %arg9[%c0_29, %c0_30, %c0_31, %c0_32], %36 {strides = array<i32>} : memref<1x1x16x128xf32, #tpu.memory_space<vmem>>, vector<1x1x16x128xf32>,
    return
  }
  func.func @transform_0(%arg0: i32, %arg1: i32, %arg2: i32) -> (i32, i32) {
    %c0_i32 = arith.constant 0 : i32
    %c0_i32_0 = arith.constant 0 : i32
    %c0_i32_1 = arith.constant 0 : i32
    return %c0_i32, %c0_i32_0 : i32, i32
  }
  func.func @transform_1(%arg0: i32, %arg1: i32, %arg2: i32) -> (i32, i32, i32) {
    %c1_i32 = arith.constant 1 : i32
    %0 = arith.muli %arg1, %c1_i32 : i32
    %1 = arith.addi %0, %arg2 : i32
    %c0_i32 = arith.constant 0 : i32
    %c0_i32_0 = arith.constant 0 : i32
    return %arg0, %c0_i32, %1 : i32, i32, i32
  }
  func.func @transform_2(%arg0: i32, %arg1: i32, %arg2: i32) -> (i32, i32, i32) {
    %c0_i32 = arith.constant 0 : i32
    %c0_i32_0 = arith.constant 0 : i32
    %c0_i32_1 = arith.constant 0 : i32
    %c0_i32_2 = arith.constant 0 : i32
    return %c0_i32, %c0_i32_0, %c0_i32_1 : i32, i32, i32
  }
  func.func @transform_3(%arg0: i32, %arg1: i32, %arg2: i32) -> (i32, i32, i32) {
    %c0_i32 = arith.constant 0 : i32
    %c0_i32_0 = arith.constant 0 : i32
    %c0_i32_1 = arith.constant 0 : i32
    %c0_i32_2 = arith.constant 0 : i32
    return %c0_i32, %c0_i32_0, %c0_i32_1 : i32, i32, i32
  }
  func.func @transform_4(%arg0: i32, %arg1: i32, %arg2: i32) -> (i32, i32, i32) {
    %c1_i32 = arith.constant 1 : i32
    %0 = arith.muli %arg1, %c1_i32 : i32
    %1 = arith.addi %0, %arg2 : i32
    %c0_i32 = arith.constant 0 : i32
    %c0_i32_0 = arith.constant 0 : i32
    return %arg0, %c0_i32, %1 : i32, i32, i32
  }
  func.func @transform_5(%arg0: i32, %arg1: i32, %arg2: i32) -> (i32, i32, i32, i32) {
    %c0_i32 = arith.constant 0 : i32
    %c0_i32_0 = arith.constant 0 : i32
    %c0_i32_1 = arith.constant 0 : i32
    return %arg0, %arg1, %c0_i32, %c0_i32_0 : i32, i32, i32, i32
  }
  func.func @transform_6(%arg0: i32, %arg1: i32, %arg2: i32) -> (i32, i32, i32, i32) {
    %c0_i32 = arith.constant 0 : i32
    %c0_i32_0 = arith.constant 0 : i32
    %c0_i32_1 = arith.constant 0 : i32
    return %arg0, %arg1, %c0_i32, %c0_i32_0 : i32, i32, i32, i32
  }
}

module attributes {stable_mosaic.version = 11 : i64} {
  func.func @kernel(%arg0: i32, %arg1: memref<4x16x32xbf16, #tpu.memory_space<vmem>>, %arg2: memref<16x1xf32, #tpu.memory_space<vmem>>, %arg3: memref<16x1xf32, #tpu.memory_space<vmem>>, %arg4: memref<16x32xbf16, #tpu.memory_space<vmem>>) attributes {dimension_semantics = [#tpu.dimension_semantics<parallel>], iteration_bounds = array<i64: 1>, scalar_prefetch = 0 : i64, scratch_operands = 0 : i64, tpu.core_type = #tpu.core_type<tc>, window_params = [{transform_indices = @transform_0, window_bounds = array<i64: 4, 16, 32>}, {pipeline_mode = #tpu.pipeline_mode<synchronous>, transform_indices = @transform_1, window_bounds = array<i64: 16, 1>}, {pipeline_mode = #tpu.pipeline_mode<synchronous>, transform_indices = @transform_2, window_bounds = array<i64: 16, 1>}, {transform_indices = @transform_3, window_bounds = array<i64: 16, 32>}]} {
    %c0 = arith.constant 0 : index
    %c0_0 = arith.constant 0 : index
    %0 = vector.load %arg2[%c0, %c0_0] : memref<16x1xf32, #tpu.memory_space<vmem>>, vector<16x1xf32>
    %c0_1 = arith.constant 0 : index
    %c0_2 = arith.constant 0 : index
    %1 = vector.load %arg3[%c0_1, %c0_2] : memref<16x1xf32, #tpu.memory_space<vmem>>, vector<16x1xf32>
    %c0_3 = arith.constant 0 : index
    %c0_4 = arith.constant 0 : index
    %c0_5 = arith.constant 0 : index
    %2 = vector.load %arg1[%c0_3, %c0_4, %c0_5] : memref<4x16x32xbf16, #tpu.memory_space<vmem>>, vector<1x16x32xbf16>
    %3 = vector.shape_cast %2 : vector<1x16x32xbf16> to vector<16x32xbf16>
    %4 = arith.extf %3 : vector<16x32xbf16> to vector<16x32xf32>
    %5 = vector.broadcast %0 : vector<16x1xf32> to vector<16x32xf32>
    %6 = arith.mulf %4, %5 : vector<16x32xf32>
    %7 = vector.broadcast %1 : vector<16x1xf32> to vector<16x32xf32>
    %8 = arith.addf %6, %7 : vector<16x32xf32>
    %cst = arith.constant 0.000000e+00 : f32
    %9 = vector.broadcast %cst : f32 to vector<16x32xf32>
    %10 = arith.maximumf %8, %9 : vector<16x32xf32>
    %c1 = arith.constant 1 : index
    %c0_6 = arith.constant 0 : index
    %c0_7 = arith.constant 0 : index
    %11 = vector.load %arg1[%c1, %c0_6, %c0_7] : memref<4x16x32xbf16, #tpu.memory_space<vmem>>, vector<1x16x32xbf16>
    %12 = vector.shape_cast %11 : vector<1x16x32xbf16> to vector<16x32xbf16>
    %13 = arith.extf %12 : vector<16x32xbf16> to vector<16x32xf32>
    %14 = vector.broadcast %0 : vector<16x1xf32> to vector<16x32xf32>
    %15 = arith.mulf %13, %14 : vector<16x32xf32>
    %16 = vector.broadcast %1 : vector<16x1xf32> to vector<16x32xf32>
    %17 = arith.addf %15, %16 : vector<16x32xf32>
    %cst_8 = arith.constant 0.000000e+00 : f32
    %18 = vector.broadcast %cst_8 : f32 to vector<16x32xf32>
    %19 = arith.maximumf %17, %18 : vector<16x32xf32>
    %20 = arith.addf %10, %19 : vector<16x32xf32>
    %c2 = arith.constant 2 : index
    %c0_9 = arith.constant 0 : index
    %c0_10 = arith.constant 0 : index
    %21 = vector.load %arg1[%c2, %c0_9, %c0_10] : memref<4x16x32xbf16, #tpu.memory_space<vmem>>, vector<1x16x32xbf16>
    %22 = vector.shape_cast %21 : vector<1x16x32xbf16> to vector<16x32xbf16>
    %23 = arith.extf %22 : vector<16x32xbf16> to vector<16x32xf32>
    %24 = vector.broadcast %0 : vector<16x1xf32> to vector<16x32xf32>
    %25 = arith.mulf %23, %24 : vector<16x32xf32>
    %26 = vector.broadcast %1 : vector<16x1xf32> to vector<16x32xf32>
    %27 = arith.addf %25, %26 : vector<16x32xf32>
    %cst_11 = arith.constant 0.000000e+00 : f32
    %28 = vector.broadcast %cst_11 : f32 to vector<16x32xf32>
    %29 = arith.maximumf %27, %28 : vector<16x32xf32>
    %30 = arith.addf %20, %29 : vector<16x32xf32>
    %c3 = arith.constant 3 : index
    %c0_12 = arith.constant 0 : index
    %c0_13 = arith.constant 0 : index
    %31 = vector.load %arg1[%c3, %c0_12, %c0_13] : memref<4x16x32xbf16, #tpu.memory_space<vmem>>, vector<1x16x32xbf16>
    %32 = vector.shape_cast %31 : vector<1x16x32xbf16> to vector<16x32xbf16>
    %33 = arith.extf %32 : vector<16x32xbf16> to vector<16x32xf32>
    %34 = vector.broadcast %0 : vector<16x1xf32> to vector<16x32xf32>
    %35 = arith.mulf %33, %34 : vector<16x32xf32>
    %36 = vector.broadcast %1 : vector<16x1xf32> to vector<16x32xf32>
    %37 = arith.addf %35, %36 : vector<16x32xf32>
    %cst_14 = arith.constant 0.000000e+00 : f32
    %38 = vector.broadcast %cst_14 : f32 to vector<16x32xf32>
    %39 = arith.maximumf %37, %38 : vector<16x32xf32>
    %40 = arith.addf %30, %39 : vector<16x32xf32>
    %cst_15 = arith.constant 2.500000e-01 : f32
    %41 = vector.broadcast %cst_15 : f32 to vector<16x32xf32>
    %42 = arith.mulf %40, %41 : vector<16x32xf32>
    %43 = arith.truncf %42 : vector<16x32xf32> to vector<16x32xbf16>
    %c0_16 = arith.constant 0 : index
    %c0_17 = arith.constant 0 : index
    %44 = vector.load %arg4[%c0_16, %c0_17] : memref<16x32xbf16, #tpu.memory_space<vmem>>, vector<16x32xbf16>
    tpu.vector_store %arg4[%c0_16, %c0_17], %43 {strides = array<i32>} : memref<16x32xbf16, #tpu.memory_space<vmem>>, vector<16x32xbf16>,
    return
  }
  func.func @transform_0(%arg0: i32) -> (i32, i32, i32) {
    %c0_i32 = arith.constant 0 : i32
    %c0_i32_0 = arith.constant 0 : i32
    %c0_i32_1 = arith.constant 0 : i32
    return %c0_i32, %c0_i32_0, %arg0 : i32, i32, i32
  }
  func.func @transform_1(%arg0: i32) -> (i32, i32) {
    %c0_i32 = arith.constant 0 : i32
    %c0_i32_0 = arith.constant 0 : i32
    %c0_i32_1 = arith.constant 0 : i32
    return %c0_i32, %c0_i32_0 : i32, i32
  }
  func.func @transform_2(%arg0: i32) -> (i32, i32) {
    %c0_i32 = arith.constant 0 : i32
    %c0_i32_0 = arith.constant 0 : i32
    %c0_i32_1 = arith.constant 0 : i32
    return %c0_i32, %c0_i32_0 : i32, i32
  }
  func.func @transform_3(%arg0: i32) -> (i32, i32) {
    %c0_i32 = arith.constant 0 : i32
    %c0_i32_0 = arith.constant 0 : i32
    return %c0_i32, %arg0 : i32, i32
  }
}

module attributes {stable_mosaic.version = 11 : i64} {
  func.func @_conv_kernel_plain(%arg0: i32, %arg1: i32, %arg2: i32, %arg3: memref<24x16xf32, #tpu.memory_space<vmem>>, %arg4: memref<1x16x32xbf16, #tpu.memory_space<vmem>>, %arg5: memref<1x24x32xbf16, #tpu.memory_space<vmem>>, %arg6: memref<1x1x24x128xf32, #tpu.memory_space<vmem>>, %arg7: memref<1x1x24x128xf32, #tpu.memory_space<vmem>>) attributes {dimension_semantics = [#tpu.dimension_semantics<parallel>, #tpu.dimension_semantics<parallel>, #tpu.dimension_semantics<arbitrary>], iteration_bounds = array<i64: 1, 1, 1>, scalar_prefetch = 0 : i64, scratch_operands = 0 : i64, tpu.core_type = #tpu.core_type<tc>, window_params = [{pipeline_mode = #tpu.pipeline_mode<synchronous>, transform_indices = @transform_0, window_bounds = array<i64: 24, 16>}, {transform_indices = @transform_1, window_bounds = array<i64: 1, 16, 32>}, {transform_indices = @transform_2, window_bounds = array<i64: 1, 24, 32>}, {transform_indices = @transform_3, window_bounds = array<i64: 1, 1, 24, 128>}, {transform_indices = @transform_4, window_bounds = array<i64: 1, 1, 24, 128>}]} {
    %c0 = arith.constant 0 : index
    %c0_0 = arith.constant 0 : index
    %c0_1 = arith.constant 0 : index
    %0 = vector.load %arg4[%c0, %c0_0, %c0_1] : memref<1x16x32xbf16, #tpu.memory_space<vmem>>, vector<1x16x32xbf16>
    %1 = vector.shape_cast %0 : vector<1x16x32xbf16> to vector<16x32xbf16>
    %2 = arith.extf %1 : vector<16x32xbf16> to vector<16x32xf32>
    %c0_2 = arith.constant 0 : index
    %c0_3 = arith.constant 0 : index
    %3 = vector.load %arg3[%c0_2, %c0_3] : memref<24x16xf32, #tpu.memory_space<vmem>>, vector<24x16xf32>
    %cst = arith.constant dense<0.000000e+00> : vector<24x32xf32>
    %4 = tpu.matmul %3, %2, %cst {dimension_numbers = #tpu.dot_dimension_numbers<[1], [0], [0], [1], [0, 0, 1, 1], [], []>} : vector<24x16xf32>, vector<16x32xf32>, vector<24x32xf32> -> vector<24x32xf32>
    %5 = vector.shape_cast %4 : vector<24x32xf32> to vector<1x24x32xf32>
    %6 = arith.truncf %5 : vector<1x24x32xf32> to vector<1x24x32xbf16>
    %c0_4 = arith.constant 0 : index
    %c0_5 = arith.constant 0 : index
    %c0_6 = arith.constant 0 : index
    %7 = vector.load %arg5[%c0_4, %c0_5, %c0_6] : memref<1x24x32xbf16, #tpu.memory_space<vmem>>, vector<1x24x32xbf16>
    tpu.vector_store %arg5[%c0_4, %c0_5, %c0_6], %6 {strides = array<i32>} : memref<1x24x32xbf16, #tpu.memory_space<vmem>>, vector<1x24x32xbf16>,
    %c0_i32 = arith.constant 0 : i32
    %8 = arith.cmpi eq, %arg2, %c0_i32 : i32
    %9 = arith.extui %8 : i1 to i32
    %c0_i32_7 = arith.constant 0 : i32
    %10 = arith.cmpi ne, %9, %c0_i32_7 : i32
    scf.if %10 {
      %cst_26 = arith.constant 0.000000e+00 : f32
      %28 = vector.broadcast %cst_26 : f32 to vector<1x1x24x128xf32>
      %c0_27 = arith.constant 0 : index
      %c0_28 = arith.constant 0 : index
      %c0_29 = arith.constant 0 : index
      %c0_30 = arith.constant 0 : index
      %29 = vector.load %arg6[%c0_27, %c0_28, %c0_29, %c0_30] : memref<1x1x24x128xf32, #tpu.memory_space<vmem>>, vector<1x1x24x128xf32>
      tpu.vector_store %arg6[%c0_27, %c0_28, %c0_29, %c0_30], %28 {strides = array<i32>} : memref<1x1x24x128xf32, #tpu.memory_space<vmem>>, vector<1x1x24x128xf32>,
      %cst_31 = arith.constant 0.000000e+00 : f32
      %30 = vector.broadcast %cst_31 : f32 to vector<1x1x24x128xf32>
      %c0_32 = arith.constant 0 : index
      %c0_33 = arith.constant 0 : index
      %c0_34 = arith.constant 0 : index
      %c0_35 = arith.constant 0 : index
      %31 = vector.load %arg7[%c0_32, %c0_33, %c0_34, %c0_35] : memref<1x1x24x128xf32, #tpu.memory_space<vmem>>, vector<1x1x24x128xf32>
      tpu.vector_store %arg7[%c0_32, %c0_33, %c0_34, %c0_35], %30 {strides = array<i32>} : memref<1x1x24x128xf32, #tpu.memory_space<vmem>>, vector<1x1x24x128xf32>,
    } else {
    }
    %c0_8 = arith.constant 0 : index
    %c0_9 = arith.constant 0 : index
    %c0_10 = arith.constant 0 : index
    %c0_11 = arith.constant 0 : index
    %11 = vector.load %arg6[%c0_8, %c0_9, %c0_10, %c0_11] : memref<1x1x24x128xf32, #tpu.memory_space<vmem>>, vector<1x1x24x128xf32>
    %cst_12 = arith.constant dense<0.000000e+00> : vector<24xf32>
    %12 = vector.multi_reduction <add>, %4, %cst_12 [1] : vector<24x32xf32> to vector<24xf32>
    %13 = vector.shape_cast %12 : vector<24xf32> to vector<24x1xf32>
    %14 = vector.shape_cast %13 : vector<24x1xf32> to vector<24x1xf32>
    %15 = vector.broadcast %14 : vector<24x1xf32> to vector<24x128xf32>
    %16 = vector.shape_cast %15 : vector<24x128xf32> to vector<1x1x24x128xf32>
    %17 = arith.addf %11, %16 : vector<1x1x24x128xf32>
    %c0_13 = arith.constant 0 : index
    %c0_14 = arith.constant 0 : index
    %c0_15 = arith.constant 0 : index
    %c0_16 = arith.constant 0 : index
    %18 = vector.load %arg6[%c0_13, %c0_14, %c0_15, %c0_16] : memref<1x1x24x128xf32, #tpu.memory_space<vmem>>, vector<1x1x24x128xf32>
    tpu.vector_store %arg6[%c0_13, %c0_14, %c0_15, %c0_16], %17 {strides = array<i32>} : memref<1x1x24x128xf32, #tpu.memory_space<vmem>>, vector<1x1x24x128xf32>,
    %c0_17 = arith.constant 0 : index
    %c0_18 = arith.constant 0 : index
    %c0_19 = arith.constant 0 : index
    %c0_20 = arith.constant 0 : index
    %19 = vector.load %arg7[%c0_17, %c0_18, %c0_19, %c0_20] : memref<1x1x24x128xf32, #tpu.memory_space<vmem>>, vector<1x1x24x128xf32>
    %20 = arith.mulf %4, %4 : vector<24x32xf32>
    %cst_21 = arith.constant dense<0.000000e+00> : vector<24xf32>
    %21 = vector.multi_reduction <add>, %20, %cst_21 [1] : vector<24x32xf32> to vector<24xf32>
    %22 = vector.shape_cast %21 : vector<24xf32> to vector<24x1xf32>
    %23 = vector.shape_cast %22 : vector<24x1xf32> to vector<24x1xf32>
    %24 = vector.broadcast %23 : vector<24x1xf32> to vector<24x128xf32>
    %25 = vector.shape_cast %24 : vector<24x128xf32> to vector<1x1x24x128xf32>
    %26 = arith.addf %19, %25 : vector<1x1x24x128xf32>
    %c0_22 = arith.constant 0 : index
    %c0_23 = arith.constant 0 : index
    %c0_24 = arith.constant 0 : index
    %c0_25 = arith.constant 0 : index
    %27 = vector.load %arg7[%c0_22, %c0_23, %c0_24, %c0_25] : memref<1x1x24x128xf32, #tpu.memory_space<vmem>>, vector<1x1x24x128xf32>
    tpu.vector_store %arg7[%c0_22, %c0_23, %c0_24, %c0_25], %26 {strides = array<i32>} : memref<1x1x24x128xf32, #tpu.memory_space<vmem>>, vector<1x1x24x128xf32>,
    return
  }
  func.func @transform_0(%arg0: i32, %arg1: i32, %arg2: i32) -> (i32, i32) {
    %c0_i32 = arith.constant 0 : i32
    %c0_i32_0 = arith.constant 0 : i32
    %c0_i32_1 = arith.constant 0 : i32
    return %c0_i32, %c0_i32_0 : i32, i32
  }
  func.func @transform_1(%arg0: i32, %arg1: i32, %arg2: i32) -> (i32, i32, i32) {
    %c1_i32 = arith.constant 1 : i32
    %0 = arith.muli %arg1, %c1_i32 : i32
    %1 = arith.addi %0, %arg2 : i32
    %c0_i32 = arith.constant 0 : i32
    %c0_i32_0 = arith.constant 0 : i32
    return %arg0, %c0_i32, %1 : i32, i32, i32
  }
  func.func @transform_2(%arg0: i32, %arg1: i32, %arg2: i32) -> (i32, i32, i32) {
    %c1_i32 = arith.constant 1 : i32
    %0 = arith.muli %arg1, %c1_i32 : i32
    %1 = arith.addi %0, %arg2 : i32
    %c0_i32 = arith.constant 0 : i32
    %c0_i32_0 = arith.constant 0 : i32
    return %arg0, %c0_i32, %1 : i32, i32, i32
  }
  func.func @transform_3(%arg0: i32, %arg1: i32, %arg2: i32) -> (i32, i32, i32, i32) {
    %c0_i32 = arith.constant 0 : i32
    %c0_i32_0 = arith.constant 0 : i32
    %c0_i32_1 = arith.constant 0 : i32
    return %arg0, %arg1, %c0_i32, %c0_i32_0 : i32, i32, i32, i32
  }
  func.func @transform_4(%arg0: i32, %arg1: i32, %arg2: i32) -> (i32, i32, i32, i32) {
    %c0_i32 = arith.constant 0 : i32
    %c0_i32_0 = arith.constant 0 : i32
    %c0_i32_1 = arith.constant 0 : i32
    return %arg0, %arg1, %c0_i32, %c0_i32_0 : i32, i32, i32, i32
  }
}

module attributes {stable_mosaic.version = 11 : i64} {
  func.func @_conv_kernel_fused(%arg0: i32, %arg1: i32, %arg2: i32, %arg3: memref<24x24xf32, #tpu.memory_space<vmem>>, %arg4: memref<1x24x32xbf16, #tpu.memory_space<vmem>>, %arg5: memref<1x24x1xf32, #tpu.memory_space<vmem>>, %arg6: memref<1x24x1xf32, #tpu.memory_space<vmem>>, %arg7: memref<1x24x32xbf16, #tpu.memory_space<vmem>>, %arg8: memref<1x1x24x128xf32, #tpu.memory_space<vmem>>, %arg9: memref<1x1x24x128xf32, #tpu.memory_space<vmem>>) attributes {dimension_semantics = [#tpu.dimension_semantics<parallel>, #tpu.dimension_semantics<parallel>, #tpu.dimension_semantics<arbitrary>], iteration_bounds = array<i64: 1, 1, 1>, scalar_prefetch = 0 : i64, scratch_operands = 0 : i64, tpu.core_type = #tpu.core_type<tc>, window_params = [{pipeline_mode = #tpu.pipeline_mode<synchronous>, transform_indices = @transform_0, window_bounds = array<i64: 24, 24>}, {transform_indices = @transform_1, window_bounds = array<i64: 1, 24, 32>}, {pipeline_mode = #tpu.pipeline_mode<synchronous>, transform_indices = @transform_2, window_bounds = array<i64: 1, 24, 1>}, {pipeline_mode = #tpu.pipeline_mode<synchronous>, transform_indices = @transform_3, window_bounds = array<i64: 1, 24, 1>}, {transform_indices = @transform_4, window_bounds = array<i64: 1, 24, 32>}, {transform_indices = @transform_5, window_bounds = array<i64: 1, 1, 24, 128>}, {transform_indices = @transform_6, window_bounds = array<i64: 1, 1, 24, 128>}]} {
    %c0 = arith.constant 0 : index
    %c0_0 = arith.constant 0 : index
    %c0_1 = arith.constant 0 : index
    %0 = vector.load %arg4[%c0, %c0_0, %c0_1] : memref<1x24x32xbf16, #tpu.memory_space<vmem>>, vector<1x24x32xbf16>
    %1 = vector.shape_cast %0 : vector<1x24x32xbf16> to vector<24x32xbf16>
    %2 = arith.extf %1 : vector<24x32xbf16> to vector<24x32xf32>
    %c0_2 = arith.constant 0 : index
    %c0_3 = arith.constant 0 : index
    %c0_4 = arith.constant 0 : index
    %3 = vector.load %arg5[%c0_2, %c0_3, %c0_4] : memref<1x24x1xf32, #tpu.memory_space<vmem>>, vector<1x24x1xf32>
    %4 = vector.shape_cast %3 : vector<1x24x1xf32> to vector<24x1xf32>
    %5 = vector.broadcast %4 : vector<24x1xf32> to vector<24x32xf32>
    %6 = arith.mulf %2, %5 : vector<24x32xf32>
    %c0_5 = arith.constant 0 : index
    %c0_6 = arith.constant 0 : index
    %c0_7 = arith.constant 0 : index
    %7 = vector.load %arg6[%c0_5, %c0_6, %c0_7] : memref<1x24x1xf32, #tpu.memory_space<vmem>>, vector<1x24x1xf32>
    %8 = vector.shape_cast %7 : vector<1x24x1xf32> to vector<24x1xf32>
    %9 = vector.broadcast %8 : vector<24x1xf32> to vector<24x32xf32>
    %10 = arith.addf %6, %9 : vector<24x32xf32>
    %cst = arith.constant 0.000000e+00 : f32
    %11 = vector.broadcast %cst : f32 to vector<24x32xf32>
    %12 = arith.maximumf %10, %11 : vector<24x32xf32>
    %c0_8 = arith.constant 0 : index
    %c0_9 = arith.constant 0 : index
    %13 = vector.load %arg3[%c0_8, %c0_9] : memref<24x24xf32, #tpu.memory_space<vmem>>, vector<24x24xf32>
    %cst_10 = arith.constant dense<0.000000e+00> : vector<24x32xf32>
    %14 = tpu.matmul %13, %12, %cst_10 {dimension_numbers = #tpu.dot_dimension_numbers<[1], [0], [0], [1], [0, 0, 1, 1], [], []>} : vector<24x24xf32>, vector<24x32xf32>, vector<24x32xf32> -> vector<24x32xf32>
    %15 = vector.shape_cast %14 : vector<24x32xf32> to vector<1x24x32xf32>
    %16 = arith.truncf %15 : vector<1x24x32xf32> to vector<1x24x32xbf16>
    %c0_11 = arith.constant 0 : index
    %c0_12 = arith.constant 0 : index
    %c0_13 = arith.constant 0 : index
    %17 = vector.load %arg7[%c0_11, %c0_12, %c0_13] : memref<1x24x32xbf16, #tpu.memory_space<vmem>>, vector<1x24x32xbf16>
    tpu.vector_store %arg7[%c0_11, %c0_12, %c0_13], %16 {strides = array<i32>} : memref<1x24x32xbf16, #tpu.memory_space<vmem>>, vector<1x24x32xbf16>,
    %c0_i32 = arith.constant 0 : i32
    %18 = arith.cmpi eq, %arg2, %c0_i32 : i32
    %19 = arith.extui %18 : i1 to i32
    %c0_i32_14 = arith.constant 0 : i32
    %20 = arith.cmpi ne, %19, %c0_i32_14 : i32
    scf.if %20 {
      %cst_33 = arith.constant 0.000000e+00 : f32
      %38 = vector.broadcast %cst_33 : f32 to vector<1x1x24x128xf32>
      %c0_34 = arith.constant 0 : index
      %c0_35 = arith.constant 0 : index
      %c0_36 = arith.constant 0 : index
      %c0_37 = arith.constant 0 : index
      %39 = vector.load %arg8[%c0_34, %c0_35, %c0_36, %c0_37] : memref<1x1x24x128xf32, #tpu.memory_space<vmem>>, vector<1x1x24x128xf32>
      tpu.vector_store %arg8[%c0_34, %c0_35, %c0_36, %c0_37], %38 {strides = array<i32>} : memref<1x1x24x128xf32, #tpu.memory_space<vmem>>, vector<1x1x24x128xf32>,
      %cst_38 = arith.constant 0.000000e+00 : f32
      %40 = vector.broadcast %cst_38 : f32 to vector<1x1x24x128xf32>
      %c0_39 = arith.constant 0 : index
      %c0_40 = arith.constant 0 : index
      %c0_41 = arith.constant 0 : index
      %c0_42 = arith.constant 0 : index
      %41 = vector.load %arg9[%c0_39, %c0_40, %c0_41, %c0_42] : memref<1x1x24x128xf32, #tpu.memory_space<vmem>>, vector<1x1x24x128xf32>
      tpu.vector_store %arg9[%c0_39, %c0_40, %c0_41, %c0_42], %40 {strides = array<i32>} : memref<1x1x24x128xf32, #tpu.memory_space<vmem>>, vector<1x1x24x128xf32>,
    } else {
    }
    %c0_15 = arith.constant 0 : index
    %c0_16 = arith.constant 0 : index
    %c0_17 = arith.constant 0 : index
    %c0_18 = arith.constant 0 : index
    %21 = vector.load %arg8[%c0_15, %c0_16, %c0_17, %c0_18] : memref<1x1x24x128xf32, #tpu.memory_space<vmem>>, vector<1x1x24x128xf32>
    %cst_19 = arith.constant dense<0.000000e+00> : vector<24xf32>
    %22 = vector.multi_reduction <add>, %14, %cst_19 [1] : vector<24x32xf32> to vector<24xf32>
    %23 = vector.shape_cast %22 : vector<24xf32> to vector<24x1xf32>
    %24 = vector.shape_cast %23 : vector<24x1xf32> to vector<24x1xf32>
    %25 = vector.broadcast %24 : vector<24x1xf32> to vector<24x128xf32>
    %26 = vector.shape_cast %25 : vector<24x128xf32> to vector<1x1x24x128xf32>
    %27 = arith.addf %21, %26 : vector<1x1x24x128xf32>
    %c0_20 = arith.constant 0 : index
    %c0_21 = arith.constant 0 : index
    %c0_22 = arith.constant 0 : index
    %c0_23 = arith.constant 0 : index
    %28 = vector.load %arg8[%c0_20, %c0_21, %c0_22, %c0_23] : memref<1x1x24x128xf32, #tpu.memory_space<vmem>>, vector<1x1x24x128xf32>
    tpu.vector_store %arg8[%c0_20, %c0_21, %c0_22, %c0_23], %27 {strides = array<i32>} : memref<1x1x24x128xf32, #tpu.memory_space<vmem>>, vector<1x1x24x128xf32>,
    %c0_24 = arith.constant 0 : index
    %c0_25 = arith.constant 0 : index
    %c0_26 = arith.constant 0 : index
    %c0_27 = arith.constant 0 : index
    %29 = vector.load %arg9[%c0_24, %c0_25, %c0_26, %c0_27] : memref<1x1x24x128xf32, #tpu.memory_space<vmem>>, vector<1x1x24x128xf32>
    %30 = arith.mulf %14, %14 : vector<24x32xf32>
    %cst_28 = arith.constant dense<0.000000e+00> : vector<24xf32>
    %31 = vector.multi_reduction <add>, %30, %cst_28 [1] : vector<24x32xf32> to vector<24xf32>
    %32 = vector.shape_cast %31 : vector<24xf32> to vector<24x1xf32>
    %33 = vector.shape_cast %32 : vector<24x1xf32> to vector<24x1xf32>
    %34 = vector.broadcast %33 : vector<24x1xf32> to vector<24x128xf32>
    %35 = vector.shape_cast %34 : vector<24x128xf32> to vector<1x1x24x128xf32>
    %36 = arith.addf %29, %35 : vector<1x1x24x128xf32>
    %c0_29 = arith.constant 0 : index
    %c0_30 = arith.constant 0 : index
    %c0_31 = arith.constant 0 : index
    %c0_32 = arith.constant 0 : index
    %37 = vector.load %arg9[%c0_29, %c0_30, %c0_31, %c0_32] : memref<1x1x24x128xf32, #tpu.memory_space<vmem>>, vector<1x1x24x128xf32>
    tpu.vector_store %arg9[%c0_29, %c0_30, %c0_31, %c0_32], %36 {strides = array<i32>} : memref<1x1x24x128xf32, #tpu.memory_space<vmem>>, vector<1x1x24x128xf32>,
    return
  }
  func.func @transform_0(%arg0: i32, %arg1: i32, %arg2: i32) -> (i32, i32) {
    %c0_i32 = arith.constant 0 : i32
    %c0_i32_0 = arith.constant 0 : i32
    %c0_i32_1 = arith.constant 0 : i32
    return %c0_i32, %c0_i32_0 : i32, i32
  }
  func.func @transform_1(%arg0: i32, %arg1: i32, %arg2: i32) -> (i32, i32, i32) {
    %c1_i32 = arith.constant 1 : i32
    %0 = arith.muli %arg1, %c1_i32 : i32
    %1 = arith.addi %0, %arg2 : i32
    %c0_i32 = arith.constant 0 : i32
    %c0_i32_0 = arith.constant 0 : i32
    return %arg0, %c0_i32, %1 : i32, i32, i32
  }
  func.func @transform_2(%arg0: i32, %arg1: i32, %arg2: i32) -> (i32, i32, i32) {
    %c0_i32 = arith.constant 0 : i32
    %c0_i32_0 = arith.constant 0 : i32
    %c0_i32_1 = arith.constant 0 : i32
    %c0_i32_2 = arith.constant 0 : i32
    return %c0_i32, %c0_i32_0, %c0_i32_1 : i32, i32, i32
  }
  func.func @transform_3(%arg0: i32, %arg1: i32, %arg2: i32) -> (i32, i32, i32) {
    %c0_i32 = arith.constant 0 : i32
    %c0_i32_0 = arith.constant 0 : i32
    %c0_i32_1 = arith.constant 0 : i32
    %c0_i32_2 = arith.constant 0 : i32
    return %c0_i32, %c0_i32_0, %c0_i32_1 : i32, i32, i32
  }
  func.func @transform_4(%arg0: i32, %arg1: i32, %arg2: i32) -> (i32, i32, i32) {
    %c1_i32 = arith.constant 1 : i32
    %0 = arith.muli %arg1, %c1_i32 : i32
    %1 = arith.addi %0, %arg2 : i32
    %c0_i32 = arith.constant 0 : i32
    %c0_i32_0 = arith.constant 0 : i32
    return %arg0, %c0_i32, %1 : i32, i32, i32
  }
  func.func @transform_5(%arg0: i32, %arg1: i32, %arg2: i32) -> (i32, i32, i32, i32) {
    %c0_i32 = arith.constant 0 : i32
    %c0_i32_0 = arith.constant 0 : i32
    %c0_i32_1 = arith.constant 0 : i32
    return %arg0, %arg1, %c0_i32, %c0_i32_0 : i32, i32, i32, i32
  }
  func.func @transform_6(%arg0: i32, %arg1: i32, %arg2: i32) -> (i32, i32, i32, i32) {
    %c0_i32 = arith.constant 0 : i32
    %c0_i32_0 = arith.constant 0 : i32
    %c0_i32_1 = arith.constant 0 : i32
    return %arg0, %arg1, %c0_i32, %c0_i32_0 : i32, i32, i32, i32
  }
}

module attributes {stable_mosaic.version = 11 : i64} {
  func.func @kernel(%arg0: i32, %arg1: memref<4x24x8xbf16, #tpu.memory_space<vmem>>, %arg2: memref<24x1xf32, #tpu.memory_space<vmem>>, %arg3: memref<24x1xf32, #tpu.memory_space<vmem>>, %arg4: memref<24x8xbf16, #tpu.memory_space<vmem>>) attributes {dimension_semantics = [#tpu.dimension_semantics<parallel>], iteration_bounds = array<i64: 1>, scalar_prefetch = 0 : i64, scratch_operands = 0 : i64, tpu.core_type = #tpu.core_type<tc>, window_params = [{transform_indices = @transform_0, window_bounds = array<i64: 4, 24, 8>}, {pipeline_mode = #tpu.pipeline_mode<synchronous>, transform_indices = @transform_1, window_bounds = array<i64: 24, 1>}, {pipeline_mode = #tpu.pipeline_mode<synchronous>, transform_indices = @transform_2, window_bounds = array<i64: 24, 1>}, {transform_indices = @transform_3, window_bounds = array<i64: 24, 8>}]} {
    %c0 = arith.constant 0 : index
    %c0_0 = arith.constant 0 : index
    %0 = vector.load %arg2[%c0, %c0_0] : memref<24x1xf32, #tpu.memory_space<vmem>>, vector<24x1xf32>
    %c0_1 = arith.constant 0 : index
    %c0_2 = arith.constant 0 : index
    %1 = vector.load %arg3[%c0_1, %c0_2] : memref<24x1xf32, #tpu.memory_space<vmem>>, vector<24x1xf32>
    %c0_3 = arith.constant 0 : index
    %c0_4 = arith.constant 0 : index
    %c0_5 = arith.constant 0 : index
    %2 = vector.load %arg1[%c0_3, %c0_4, %c0_5] : memref<4x24x8xbf16, #tpu.memory_space<vmem>>, vector<1x24x8xbf16>
    %3 = vector.shape_cast %2 : vector<1x24x8xbf16> to vector<24x8xbf16>
    %4 = arith.extf %3 : vector<24x8xbf16> to vector<24x8xf32>
    %5 = vector.broadcast %0 : vector<24x1xf32> to vector<24x8xf32>
    %6 = arith.mulf %4, %5 : vector<24x8xf32>
    %7 = vector.broadcast %1 : vector<24x1xf32> to vector<24x8xf32>
    %8 = arith.addf %6, %7 : vector<24x8xf32>
    %cst = arith.constant 0.000000e+00 : f32
    %9 = vector.broadcast %cst : f32 to vector<24x8xf32>
    %10 = arith.maximumf %8, %9 : vector<24x8xf32>
    %c1 = arith.constant 1 : index
    %c0_6 = arith.constant 0 : index
    %c0_7 = arith.constant 0 : index
    %11 = vector.load %arg1[%c1, %c0_6, %c0_7] : memref<4x24x8xbf16, #tpu.memory_space<vmem>>, vector<1x24x8xbf16>
    %12 = vector.shape_cast %11 : vector<1x24x8xbf16> to vector<24x8xbf16>
    %13 = arith.extf %12 : vector<24x8xbf16> to vector<24x8xf32>
    %14 = vector.broadcast %0 : vector<24x1xf32> to vector<24x8xf32>
    %15 = arith.mulf %13, %14 : vector<24x8xf32>
    %16 = vector.broadcast %1 : vector<24x1xf32> to vector<24x8xf32>
    %17 = arith.addf %15, %16 : vector<24x8xf32>
    %cst_8 = arith.constant 0.000000e+00 : f32
    %18 = vector.broadcast %cst_8 : f32 to vector<24x8xf32>
    %19 = arith.maximumf %17, %18 : vector<24x8xf32>
    %20 = arith.addf %10, %19 : vector<24x8xf32>
    %c2 = arith.constant 2 : index
    %c0_9 = arith.constant 0 : index
    %c0_10 = arith.constant 0 : index
    %21 = vector.load %arg1[%c2, %c0_9, %c0_10] : memref<4x24x8xbf16, #tpu.memory_space<vmem>>, vector<1x24x8xbf16>
    %22 = vector.shape_cast %21 : vector<1x24x8xbf16> to vector<24x8xbf16>
    %23 = arith.extf %22 : vector<24x8xbf16> to vector<24x8xf32>
    %24 = vector.broadcast %0 : vector<24x1xf32> to vector<24x8xf32>
    %25 = arith.mulf %23, %24 : vector<24x8xf32>
    %26 = vector.broadcast %1 : vector<24x1xf32> to vector<24x8xf32>
    %27 = arith.addf %25, %26 : vector<24x8xf32>
    %cst_11 = arith.constant 0.000000e+00 : f32
    %28 = vector.broadcast %cst_11 : f32 to vector<24x8xf32>
    %29 = arith.maximumf %27, %28 : vector<24x8xf32>
    %30 = arith.addf %20, %29 : vector<24x8xf32>
    %c3 = arith.constant 3 : index
    %c0_12 = arith.constant 0 : index
    %c0_13 = arith.constant 0 : index
    %31 = vector.load %arg1[%c3, %c0_12, %c0_13] : memref<4x24x8xbf16, #tpu.memory_space<vmem>>, vector<1x24x8xbf16>
    %32 = vector.shape_cast %31 : vector<1x24x8xbf16> to vector<24x8xbf16>
    %33 = arith.extf %32 : vector<24x8xbf16> to vector<24x8xf32>
    %34 = vector.broadcast %0 : vector<24x1xf32> to vector<24x8xf32>
    %35 = arith.mulf %33, %34 : vector<24x8xf32>
    %36 = vector.broadcast %1 : vector<24x1xf32> to vector<24x8xf32>
    %37 = arith.addf %35, %36 : vector<24x8xf32>
    %cst_14 = arith.constant 0.000000e+00 : f32
    %38 = vector.broadcast %cst_14 : f32 to vector<24x8xf32>
    %39 = arith.maximumf %37, %38 : vector<24x8xf32>
    %40 = arith.addf %30, %39 : vector<24x8xf32>
    %cst_15 = arith.constant 2.500000e-01 : f32
    %41 = vector.broadcast %cst_15 : f32 to vector<24x8xf32>
    %42 = arith.mulf %40, %41 : vector<24x8xf32>
    %43 = arith.truncf %42 : vector<24x8xf32> to vector<24x8xbf16>
    %c0_16 = arith.constant 0 : index
    %c0_17 = arith.constant 0 : index
    %44 = vector.load %arg4[%c0_16, %c0_17] : memref<24x8xbf16, #tpu.memory_space<vmem>>, vector<24x8xbf16>
    tpu.vector_store %arg4[%c0_16, %c0_17], %43 {strides = array<i32>} : memref<24x8xbf16, #tpu.memory_space<vmem>>, vector<24x8xbf16>,
    return
  }
  func.func @transform_0(%arg0: i32) -> (i32, i32, i32) {
    %c0_i32 = arith.constant 0 : i32
    %c0_i32_0 = arith.constant 0 : i32
    %c0_i32_1 = arith.constant 0 : i32
    return %c0_i32, %c0_i32_0, %arg0 : i32, i32, i32
  }
  func.func @transform_1(%arg0: i32) -> (i32, i32) {
    %c0_i32 = arith.constant 0 : i32
    %c0_i32_0 = arith.constant 0 : i32
    %c0_i32_1 = arith.constant 0 : i32
    return %c0_i32, %c0_i32_0 : i32, i32
  }
  func.func @transform_2(%arg0: i32) -> (i32, i32) {
    %c0_i32 = arith.constant 0 : i32
    %c0_i32_0 = arith.constant 0 : i32
    %c0_i32_1 = arith.constant 0 : i32
    return %c0_i32, %c0_i32_0 : i32, i32
  }
  func.func @transform_3(%arg0: i32) -> (i32, i32) {
    %c0_i32 = arith.constant 0 : i32
    %c0_i32_0 = arith.constant 0 : i32
    return %c0_i32, %arg0 : i32, i32
  }
}

module attributes {stable_mosaic.version = 11 : i64} {
  func.func @_conv_kernel_plain(%arg0: i32, %arg1: i32, %arg2: i32, %arg3: memref<32x24xf32, #tpu.memory_space<vmem>>, %arg4: memref<1x24x8xbf16, #tpu.memory_space<vmem>>, %arg5: memref<1x32x8xbf16, #tpu.memory_space<vmem>>, %arg6: memref<1x1x32x128xf32, #tpu.memory_space<vmem>>, %arg7: memref<1x1x32x128xf32, #tpu.memory_space<vmem>>) attributes {dimension_semantics = [#tpu.dimension_semantics<parallel>, #tpu.dimension_semantics<parallel>, #tpu.dimension_semantics<arbitrary>], iteration_bounds = array<i64: 1, 1, 1>, scalar_prefetch = 0 : i64, scratch_operands = 0 : i64, tpu.core_type = #tpu.core_type<tc>, window_params = [{pipeline_mode = #tpu.pipeline_mode<synchronous>, transform_indices = @transform_0, window_bounds = array<i64: 32, 24>}, {transform_indices = @transform_1, window_bounds = array<i64: 1, 24, 8>}, {transform_indices = @transform_2, window_bounds = array<i64: 1, 32, 8>}, {transform_indices = @transform_3, window_bounds = array<i64: 1, 1, 32, 128>}, {transform_indices = @transform_4, window_bounds = array<i64: 1, 1, 32, 128>}]} {
    %c0 = arith.constant 0 : index
    %c0_0 = arith.constant 0 : index
    %c0_1 = arith.constant 0 : index
    %0 = vector.load %arg4[%c0, %c0_0, %c0_1] : memref<1x24x8xbf16, #tpu.memory_space<vmem>>, vector<1x24x8xbf16>
    %1 = vector.shape_cast %0 : vector<1x24x8xbf16> to vector<24x8xbf16>
    %2 = arith.extf %1 : vector<24x8xbf16> to vector<24x8xf32>
    %c0_2 = arith.constant 0 : index
    %c0_3 = arith.constant 0 : index
    %3 = vector.load %arg3[%c0_2, %c0_3] : memref<32x24xf32, #tpu.memory_space<vmem>>, vector<32x24xf32>
    %cst = arith.constant dense<0.000000e+00> : vector<32x8xf32>
    %4 = tpu.matmul %3, %2, %cst {dimension_numbers = #tpu.dot_dimension_numbers<[1], [0], [0], [1], [0, 0, 1, 1], [], []>} : vector<32x24xf32>, vector<24x8xf32>, vector<32x8xf32> -> vector<32x8xf32>
    %5 = vector.shape_cast %4 : vector<32x8xf32> to vector<1x32x8xf32>
    %6 = arith.truncf %5 : vector<1x32x8xf32> to vector<1x32x8xbf16>
    %c0_4 = arith.constant 0 : index
    %c0_5 = arith.constant 0 : index
    %c0_6 = arith.constant 0 : index
    %7 = vector.load %arg5[%c0_4, %c0_5, %c0_6] : memref<1x32x8xbf16, #tpu.memory_space<vmem>>, vector<1x32x8xbf16>
    tpu.vector_store %arg5[%c0_4, %c0_5, %c0_6], %6 {strides = array<i32>} : memref<1x32x8xbf16, #tpu.memory_space<vmem>>, vector<1x32x8xbf16>,
    %c0_i32 = arith.constant 0 : i32
    %8 = arith.cmpi eq, %arg2, %c0_i32 : i32
    %9 = arith.extui %8 : i1 to i32
    %c0_i32_7 = arith.constant 0 : i32
    %10 = arith.cmpi ne, %9, %c0_i32_7 : i32
    scf.if %10 {
      %cst_26 = arith.constant 0.000000e+00 : f32
      %28 = vector.broadcast %cst_26 : f32 to vector<1x1x32x128xf32>
      %c0_27 = arith.constant 0 : index
      %c0_28 = arith.constant 0 : index
      %c0_29 = arith.constant 0 : index
      %c0_30 = arith.constant 0 : index
      %29 = vector.load %arg6[%c0_27, %c0_28, %c0_29, %c0_30] : memref<1x1x32x128xf32, #tpu.memory_space<vmem>>, vector<1x1x32x128xf32>
      tpu.vector_store %arg6[%c0_27, %c0_28, %c0_29, %c0_30], %28 {strides = array<i32>} : memref<1x1x32x128xf32, #tpu.memory_space<vmem>>, vector<1x1x32x128xf32>,
      %cst_31 = arith.constant 0.000000e+00 : f32
      %30 = vector.broadcast %cst_31 : f32 to vector<1x1x32x128xf32>
      %c0_32 = arith.constant 0 : index
      %c0_33 = arith.constant 0 : index
      %c0_34 = arith.constant 0 : index
      %c0_35 = arith.constant 0 : index
      %31 = vector.load %arg7[%c0_32, %c0_33, %c0_34, %c0_35] : memref<1x1x32x128xf32, #tpu.memory_space<vmem>>, vector<1x1x32x128xf32>
      tpu.vector_store %arg7[%c0_32, %c0_33, %c0_34, %c0_35], %30 {strides = array<i32>} : memref<1x1x32x128xf32, #tpu.memory_space<vmem>>, vector<1x1x32x128xf32>,
    } else {
    }
    %c0_8 = arith.constant 0 : index
    %c0_9 = arith.constant 0 : index
    %c0_10 = arith.constant 0 : index
    %c0_11 = arith.constant 0 : index
    %11 = vector.load %arg6[%c0_8, %c0_9, %c0_10, %c0_11] : memref<1x1x32x128xf32, #tpu.memory_space<vmem>>, vector<1x1x32x128xf32>
    %cst_12 = arith.constant dense<0.000000e+00> : vector<32xf32>
    %12 = vector.multi_reduction <add>, %4, %cst_12 [1] : vector<32x8xf32> to vector<32xf32>
    %13 = vector.shape_cast %12 : vector<32xf32> to vector<32x1xf32>
    %14 = vector.shape_cast %13 : vector<32x1xf32> to vector<32x1xf32>
    %15 = vector.broadcast %14 : vector<32x1xf32> to vector<32x128xf32>
    %16 = vector.shape_cast %15 : vector<32x128xf32> to vector<1x1x32x128xf32>
    %17 = arith.addf %11, %16 : vector<1x1x32x128xf32>
    %c0_13 = arith.constant 0 : index
    %c0_14 = arith.constant 0 : index
    %c0_15 = arith.constant 0 : index
    %c0_16 = arith.constant 0 : index
    %18 = vector.load %arg6[%c0_13, %c0_14, %c0_15, %c0_16] : memref<1x1x32x128xf32, #tpu.memory_space<vmem>>, vector<1x1x32x128xf32>
    tpu.vector_store %arg6[%c0_13, %c0_14, %c0_15, %c0_16], %17 {strides = array<i32>} : memref<1x1x32x128xf32, #tpu.memory_space<vmem>>, vector<1x1x32x128xf32>,
    %c0_17 = arith.constant 0 : index
    %c0_18 = arith.constant 0 : index
    %c0_19 = arith.constant 0 : index
    %c0_20 = arith.constant 0 : index
    %19 = vector.load %arg7[%c0_17, %c0_18, %c0_19, %c0_20] : memref<1x1x32x128xf32, #tpu.memory_space<vmem>>, vector<1x1x32x128xf32>
    %20 = arith.mulf %4, %4 : vector<32x8xf32>
    %cst_21 = arith.constant dense<0.000000e+00> : vector<32xf32>
    %21 = vector.multi_reduction <add>, %20, %cst_21 [1] : vector<32x8xf32> to vector<32xf32>
    %22 = vector.shape_cast %21 : vector<32xf32> to vector<32x1xf32>
    %23 = vector.shape_cast %22 : vector<32x1xf32> to vector<32x1xf32>
    %24 = vector.broadcast %23 : vector<32x1xf32> to vector<32x128xf32>
    %25 = vector.shape_cast %24 : vector<32x128xf32> to vector<1x1x32x128xf32>
    %26 = arith.addf %19, %25 : vector<1x1x32x128xf32>
    %c0_22 = arith.constant 0 : index
    %c0_23 = arith.constant 0 : index
    %c0_24 = arith.constant 0 : index
    %c0_25 = arith.constant 0 : index
    %27 = vector.load %arg7[%c0_22, %c0_23, %c0_24, %c0_25] : memref<1x1x32x128xf32, #tpu.memory_space<vmem>>, vector<1x1x32x128xf32>
    tpu.vector_store %arg7[%c0_22, %c0_23, %c0_24, %c0_25], %26 {strides = array<i32>} : memref<1x1x32x128xf32, #tpu.memory_space<vmem>>, vector<1x1x32x128xf32>,
    return
  }
  func.func @transform_0(%arg0: i32, %arg1: i32, %arg2: i32) -> (i32, i32) {
    %c0_i32 = arith.constant 0 : i32
    %c0_i32_0 = arith.constant 0 : i32
    %c0_i32_1 = arith.constant 0 : i32
    return %c0_i32, %c0_i32_0 : i32, i32
  }
  func.func @transform_1(%arg0: i32, %arg1: i32, %arg2: i32) -> (i32, i32, i32) {
    %c1_i32 = arith.constant 1 : i32
    %0 = arith.muli %arg1, %c1_i32 : i32
    %1 = arith.addi %0, %arg2 : i32
    %c0_i32 = arith.constant 0 : i32
    %c0_i32_0 = arith.constant 0 : i32
    return %arg0, %c0_i32, %1 : i32, i32, i32
  }
  func.func @transform_2(%arg0: i32, %arg1: i32, %arg2: i32) -> (i32, i32, i32) {
    %c1_i32 = arith.constant 1 : i32
    %0 = arith.muli %arg1, %c1_i32 : i32
    %1 = arith.addi %0, %arg2 : i32
    %c0_i32 = arith.constant 0 : i32
    %c0_i32_0 = arith.constant 0 : i32
    return %arg0, %c0_i32, %1 : i32, i32, i32
  }
  func.func @transform_3(%arg0: i32, %arg1: i32, %arg2: i32) -> (i32, i32, i32, i32) {
    %c0_i32 = arith.constant 0 : i32
    %c0_i32_0 = arith.constant 0 : i32
    %c0_i32_1 = arith.constant 0 : i32
    return %arg0, %arg1, %c0_i32, %c0_i32_0 : i32, i32, i32, i32
  }
  func.func @transform_4(%arg0: i32, %arg1: i32, %arg2: i32) -> (i32, i32, i32, i32) {
    %c0_i32 = arith.constant 0 : i32
    %c0_i32_0 = arith.constant 0 : i32
    %c0_i32_1 = arith.constant 0 : i32
    return %arg0, %arg1, %c0_i32, %c0_i32_0 : i32, i32, i32, i32
  }
}

module attributes {stable_mosaic.version = 11 : i64} {
  func.func @_conv_kernel_fused(%arg0: i32, %arg1: i32, %arg2: i32, %arg3: memref<32x32xf32, #tpu.memory_space<vmem>>, %arg4: memref<1x32x8xbf16, #tpu.memory_space<vmem>>, %arg5: memref<1x32x1xf32, #tpu.memory_space<vmem>>, %arg6: memref<1x32x1xf32, #tpu.memory_space<vmem>>, %arg7: memref<1x32x8xbf16, #tpu.memory_space<vmem>>, %arg8: memref<1x1x32x128xf32, #tpu.memory_space<vmem>>, %arg9: memref<1x1x32x128xf32, #tpu.memory_space<vmem>>) attributes {dimension_semantics = [#tpu.dimension_semantics<parallel>, #tpu.dimension_semantics<parallel>, #tpu.dimension_semantics<arbitrary>], iteration_bounds = array<i64: 1, 1, 1>, scalar_prefetch = 0 : i64, scratch_operands = 0 : i64, tpu.core_type = #tpu.core_type<tc>, window_params = [{pipeline_mode = #tpu.pipeline_mode<synchronous>, transform_indices = @transform_0, window_bounds = array<i64: 32, 32>}, {transform_indices = @transform_1, window_bounds = array<i64: 1, 32, 8>}, {pipeline_mode = #tpu.pipeline_mode<synchronous>, transform_indices = @transform_2, window_bounds = array<i64: 1, 32, 1>}, {pipeline_mode = #tpu.pipeline_mode<synchronous>, transform_indices = @transform_3, window_bounds = array<i64: 1, 32, 1>}, {transform_indices = @transform_4, window_bounds = array<i64: 1, 32, 8>}, {transform_indices = @transform_5, window_bounds = array<i64: 1, 1, 32, 128>}, {transform_indices = @transform_6, window_bounds = array<i64: 1, 1, 32, 128>}]} {
    %c0 = arith.constant 0 : index
    %c0_0 = arith.constant 0 : index
    %c0_1 = arith.constant 0 : index
    %0 = vector.load %arg4[%c0, %c0_0, %c0_1] : memref<1x32x8xbf16, #tpu.memory_space<vmem>>, vector<1x32x8xbf16>
    %1 = vector.shape_cast %0 : vector<1x32x8xbf16> to vector<32x8xbf16>
    %2 = arith.extf %1 : vector<32x8xbf16> to vector<32x8xf32>
    %c0_2 = arith.constant 0 : index
    %c0_3 = arith.constant 0 : index
    %c0_4 = arith.constant 0 : index
    %3 = vector.load %arg5[%c0_2, %c0_3, %c0_4] : memref<1x32x1xf32, #tpu.memory_space<vmem>>, vector<1x32x1xf32>
    %4 = vector.shape_cast %3 : vector<1x32x1xf32> to vector<32x1xf32>
    %5 = vector.broadcast %4 : vector<32x1xf32> to vector<32x8xf32>
    %6 = arith.mulf %2, %5 : vector<32x8xf32>
    %c0_5 = arith.constant 0 : index
    %c0_6 = arith.constant 0 : index
    %c0_7 = arith.constant 0 : index
    %7 = vector.load %arg6[%c0_5, %c0_6, %c0_7] : memref<1x32x1xf32, #tpu.memory_space<vmem>>, vector<1x32x1xf32>
    %8 = vector.shape_cast %7 : vector<1x32x1xf32> to vector<32x1xf32>
    %9 = vector.broadcast %8 : vector<32x1xf32> to vector<32x8xf32>
    %10 = arith.addf %6, %9 : vector<32x8xf32>
    %cst = arith.constant 0.000000e+00 : f32
    %11 = vector.broadcast %cst : f32 to vector<32x8xf32>
    %12 = arith.maximumf %10, %11 : vector<32x8xf32>
    %c0_8 = arith.constant 0 : index
    %c0_9 = arith.constant 0 : index
    %13 = vector.load %arg3[%c0_8, %c0_9] : memref<32x32xf32, #tpu.memory_space<vmem>>, vector<32x32xf32>
    %cst_10 = arith.constant dense<0.000000e+00> : vector<32x8xf32>
    %14 = tpu.matmul %13, %12, %cst_10 {dimension_numbers = #tpu.dot_dimension_numbers<[1], [0], [0], [1], [0, 0, 1, 1], [], []>} : vector<32x32xf32>, vector<32x8xf32>, vector<32x8xf32> -> vector<32x8xf32>
    %15 = vector.shape_cast %14 : vector<32x8xf32> to vector<1x32x8xf32>
    %16 = arith.truncf %15 : vector<1x32x8xf32> to vector<1x32x8xbf16>
    %c0_11 = arith.constant 0 : index
    %c0_12 = arith.constant 0 : index
    %c0_13 = arith.constant 0 : index
    %17 = vector.load %arg7[%c0_11, %c0_12, %c0_13] : memref<1x32x8xbf16, #tpu.memory_space<vmem>>, vector<1x32x8xbf16>
    tpu.vector_store %arg7[%c0_11, %c0_12, %c0_13], %16 {strides = array<i32>} : memref<1x32x8xbf16, #tpu.memory_space<vmem>>, vector<1x32x8xbf16>,
    %c0_i32 = arith.constant 0 : i32
    %18 = arith.cmpi eq, %arg2, %c0_i32 : i32
    %19 = arith.extui %18 : i1 to i32
    %c0_i32_14 = arith.constant 0 : i32
    %20 = arith.cmpi ne, %19, %c0_i32_14 : i32
    scf.if %20 {
      %cst_33 = arith.constant 0.000000e+00 : f32
      %38 = vector.broadcast %cst_33 : f32 to vector<1x1x32x128xf32>
      %c0_34 = arith.constant 0 : index
      %c0_35 = arith.constant 0 : index
      %c0_36 = arith.constant 0 : index
      %c0_37 = arith.constant 0 : index
      %39 = vector.load %arg8[%c0_34, %c0_35, %c0_36, %c0_37] : memref<1x1x32x128xf32, #tpu.memory_space<vmem>>, vector<1x1x32x128xf32>
      tpu.vector_store %arg8[%c0_34, %c0_35, %c0_36, %c0_37], %38 {strides = array<i32>} : memref<1x1x32x128xf32, #tpu.memory_space<vmem>>, vector<1x1x32x128xf32>,
      %cst_38 = arith.constant 0.000000e+00 : f32
      %40 = vector.broadcast %cst_38 : f32 to vector<1x1x32x128xf32>
      %c0_39 = arith.constant 0 : index
      %c0_40 = arith.constant 0 : index
      %c0_41 = arith.constant 0 : index
      %c0_42 = arith.constant 0 : index
      %41 = vector.load %arg9[%c0_39, %c0_40, %c0_41, %c0_42] : memref<1x1x32x128xf32, #tpu.memory_space<vmem>>, vector<1x1x32x128xf32>
      tpu.vector_store %arg9[%c0_39, %c0_40, %c0_41, %c0_42], %40 {strides = array<i32>} : memref<1x1x32x128xf32, #tpu.memory_space<vmem>>, vector<1x1x32x128xf32>,
    } else {
    }
    %c0_15 = arith.constant 0 : index
    %c0_16 = arith.constant 0 : index
    %c0_17 = arith.constant 0 : index
    %c0_18 = arith.constant 0 : index
    %21 = vector.load %arg8[%c0_15, %c0_16, %c0_17, %c0_18] : memref<1x1x32x128xf32, #tpu.memory_space<vmem>>, vector<1x1x32x128xf32>
    %cst_19 = arith.constant dense<0.000000e+00> : vector<32xf32>
    %22 = vector.multi_reduction <add>, %14, %cst_19 [1] : vector<32x8xf32> to vector<32xf32>
    %23 = vector.shape_cast %22 : vector<32xf32> to vector<32x1xf32>
    %24 = vector.shape_cast %23 : vector<32x1xf32> to vector<32x1xf32>
    %25 = vector.broadcast %24 : vector<32x1xf32> to vector<32x128xf32>
    %26 = vector.shape_cast %25 : vector<32x128xf32> to vector<1x1x32x128xf32>
    %27 = arith.addf %21, %26 : vector<1x1x32x128xf32>
    %c0_20 = arith.constant 0 : index
    %c0_21 = arith.constant 0 : index
    %c0_22 = arith.constant 0 : index
    %c0_23 = arith.constant 0 : index
    %28 = vector.load %arg8[%c0_20, %c0_21, %c0_22, %c0_23] : memref<1x1x32x128xf32, #tpu.memory_space<vmem>>, vector<1x1x32x128xf32>
    tpu.vector_store %arg8[%c0_20, %c0_21, %c0_22, %c0_23], %27 {strides = array<i32>} : memref<1x1x32x128xf32, #tpu.memory_space<vmem>>, vector<1x1x32x128xf32>,
    %c0_24 = arith.constant 0 : index
    %c0_25 = arith.constant 0 : index
    %c0_26 = arith.constant 0 : index
    %c0_27 = arith.constant 0 : index
    %29 = vector.load %arg9[%c0_24, %c0_25, %c0_26, %c0_27] : memref<1x1x32x128xf32, #tpu.memory_space<vmem>>, vector<1x1x32x128xf32>
    %30 = arith.mulf %14, %14 : vector<32x8xf32>
    %cst_28 = arith.constant dense<0.000000e+00> : vector<32xf32>
    %31 = vector.multi_reduction <add>, %30, %cst_28 [1] : vector<32x8xf32> to vector<32xf32>
    %32 = vector.shape_cast %31 : vector<32xf32> to vector<32x1xf32>
    %33 = vector.shape_cast %32 : vector<32x1xf32> to vector<32x1xf32>
    %34 = vector.broadcast %33 : vector<32x1xf32> to vector<32x128xf32>
    %35 = vector.shape_cast %34 : vector<32x128xf32> to vector<1x1x32x128xf32>
    %36 = arith.addf %29, %35 : vector<1x1x32x128xf32>
    %c0_29 = arith.constant 0 : index
    %c0_30 = arith.constant 0 : index
    %c0_31 = arith.constant 0 : index
    %c0_32 = arith.constant 0 : index
    %37 = vector.load %arg9[%c0_29, %c0_30, %c0_31, %c0_32] : memref<1x1x32x128xf32, #tpu.memory_space<vmem>>, vector<1x1x32x128xf32>
    tpu.vector_store %arg9[%c0_29, %c0_30, %c0_31, %c0_32], %36 {strides = array<i32>} : memref<1x1x32x128xf32, #tpu.memory_space<vmem>>, vector<1x1x32x128xf32>,
    return
  }
  func.func @transform_0(%arg0: i32, %arg1: i32, %arg2: i32) -> (i32, i32) {
    %c0_i32 = arith.constant 0 : i32
    %c0_i32_0 = arith.constant 0 : i32
    %c0_i32_1 = arith.constant 0 : i32
    return %c0_i32, %c0_i32_0 : i32, i32
  }
  func.func @transform_1(%arg0: i32, %arg1: i32, %arg2: i32) -> (i32, i32, i32) {
    %c1_i32 = arith.constant 1 : i32
    %0 = arith.muli %arg1, %c1_i32 : i32
    %1 = arith.addi %0, %arg2 : i32
    %c0_i32 = arith.constant 0 : i32
    %c0_i32_0 = arith.constant 0 : i32
    return %arg0, %c0_i32, %1 : i32, i32, i32
  }
  func.func @transform_2(%arg0: i32, %arg1: i32, %arg2: i32) -> (i32, i32, i32) {
    %c0_i32 = arith.constant 0 : i32
    %c0_i32_0 = arith.constant 0 : i32
    %c0_i32_1 = arith.constant 0 : i32
    %c0_i32_2 = arith.constant 0 : i32
    return %c0_i32, %c0_i32_0, %c0_i32_1 : i32, i32, i32
  }
  func.func @transform_3(%arg0: i32, %arg1: i32, %arg2: i32) -> (i32, i32, i32) {
    %c0_i32 = arith.constant 0 : i32
    %c0_i32_0 = arith.constant 0 : i32
    %c0_i32_1 = arith.constant 0 : i32
    %c0_i32_2 = arith.constant 0 : i32
    return %c0_i32, %c0_i32_0, %c0_i32_1 : i32, i32, i32
  }
  func.func @transform_4(%arg0: i32, %arg1: i32, %arg2: i32) -> (i32, i32, i32) {
    %c1_i32 = arith.constant 1 : i32
    %0 = arith.muli %arg1, %c1_i32 : i32
    %1 = arith.addi %0, %arg2 : i32
    %c0_i32 = arith.constant 0 : i32
    %c0_i32_0 = arith.constant 0 : i32
    return %arg0, %c0_i32, %1 : i32, i32, i32
  }
  func.func @transform_5(%arg0: i32, %arg1: i32, %arg2: i32) -> (i32, i32, i32, i32) {
    %c0_i32 = arith.constant 0 : i32
    %c0_i32_0 = arith.constant 0 : i32
    %c0_i32_1 = arith.constant 0 : i32
    return %arg0, %arg1, %c0_i32, %c0_i32_0 : i32, i32, i32, i32
  }
  func.func @transform_6(%arg0: i32, %arg1: i32, %arg2: i32) -> (i32, i32, i32, i32) {
    %c0_i32 = arith.constant 0 : i32
    %c0_i32_0 = arith.constant 0 : i32
    %c0_i32_1 = arith.constant 0 : i32
    return %arg0, %arg1, %c0_i32, %c0_i32_0 : i32, i32, i32, i32
  }
}

module attributes {stable_mosaic.version = 11 : i64} {
  func.func @_norm_relu_kernel(%arg0: i32, %arg1: i32, %arg2: memref<1x32x8xbf16, #tpu.memory_space<vmem>>, %arg3: memref<1x32x1xf32, #tpu.memory_space<vmem>>, %arg4: memref<1x32x1xf32, #tpu.memory_space<vmem>>, %arg5: memref<1x32x8xf32, #tpu.memory_space<vmem>>) attributes {dimension_semantics = [#tpu.dimension_semantics<parallel>, #tpu.dimension_semantics<parallel>], iteration_bounds = array<i64: 1, 1>, scalar_prefetch = 0 : i64, scratch_operands = 0 : i64, tpu.core_type = #tpu.core_type<tc>, window_params = [{transform_indices = @transform_0, window_bounds = array<i64: 1, 32, 8>}, {pipeline_mode = #tpu.pipeline_mode<synchronous>, transform_indices = @transform_1, window_bounds = array<i64: 1, 32, 1>}, {pipeline_mode = #tpu.pipeline_mode<synchronous>, transform_indices = @transform_2, window_bounds = array<i64: 1, 32, 1>}, {transform_indices = @transform_3, window_bounds = array<i64: 1, 32, 8>}]} {
    %c0 = arith.constant 0 : index
    %c0_0 = arith.constant 0 : index
    %c0_1 = arith.constant 0 : index
    %0 = vector.load %arg2[%c0, %c0_0, %c0_1] : memref<1x32x8xbf16, #tpu.memory_space<vmem>>, vector<1x32x8xbf16>
    %1 = arith.extf %0 : vector<1x32x8xbf16> to vector<1x32x8xf32>
    %c0_2 = arith.constant 0 : index
    %c0_3 = arith.constant 0 : index
    %c0_4 = arith.constant 0 : index
    %2 = vector.load %arg3[%c0_2, %c0_3, %c0_4] : memref<1x32x1xf32, #tpu.memory_space<vmem>>, vector<1x32x1xf32>
    %3 = vector.broadcast %2 : vector<1x32x1xf32> to vector<1x32x8xf32>
    %4 = arith.mulf %1, %3 : vector<1x32x8xf32>
    %c0_5 = arith.constant 0 : index
    %c0_6 = arith.constant 0 : index
    %c0_7 = arith.constant 0 : index
    %5 = vector.load %arg4[%c0_5, %c0_6, %c0_7] : memref<1x32x1xf32, #tpu.memory_space<vmem>>, vector<1x32x1xf32>
    %6 = vector.broadcast %5 : vector<1x32x1xf32> to vector<1x32x8xf32>
    %7 = arith.addf %4, %6 : vector<1x32x8xf32>
    %cst = arith.constant 0.000000e+00 : f32
    %8 = vector.broadcast %cst : f32 to vector<1x32x8xf32>
    %9 = arith.maximumf %7, %8 : vector<1x32x8xf32>
    %c0_8 = arith.constant 0 : index
    %c0_9 = arith.constant 0 : index
    %c0_10 = arith.constant 0 : index
    %10 = vector.load %arg5[%c0_8, %c0_9, %c0_10] : memref<1x32x8xf32, #tpu.memory_space<vmem>>, vector<1x32x8xf32>
    tpu.vector_store %arg5[%c0_8, %c0_9, %c0_10], %9 {strides = array<i32>} : memref<1x32x8xf32, #tpu.memory_space<vmem>>, vector<1x32x8xf32>,
    return
  }
  func.func @transform_0(%arg0: i32, %arg1: i32) -> (i32, i32, i32) {
    %c0_i32 = arith.constant 0 : i32
    %c0_i32_0 = arith.constant 0 : i32
    return %arg0, %c0_i32, %arg1 : i32, i32, i32
  }
  func.func @transform_1(%arg0: i32, %arg1: i32) -> (i32, i32, i32) {
    %c0_i32 = arith.constant 0 : i32
    %c0_i32_0 = arith.constant 0 : i32
    %c0_i32_1 = arith.constant 0 : i32
    %c0_i32_2 = arith.constant 0 : i32
    return %c0_i32, %c0_i32_0, %c0_i32_1 : i32, i32, i32
  }
  func.func @transform_2(%arg0: i32, %arg1: i32) -> (i32, i32, i32) {
    %c0_i32 = arith.constant 0 : i32
    %c0_i32_0 = arith.constant 0 : i32
    %c0_i32_1 = arith.constant 0 : i32
    %c0_i32_2 = arith.constant 0 : i32
    return %c0_i32, %c0_i32_0, %c0_i32_1 : i32, i32, i32
  }
  func.func @transform_3(%arg0: i32, %arg1: i32) -> (i32, i32, i32) {
    %c0_i32 = arith.constant 0 : i32
    %c0_i32_0 = arith.constant 0 : i32
    return %arg0, %c0_i32, %arg1 : i32, i32, i32
  }
}

</mosaic_0001>

<llo_original>
// kernel: mul.66
$region0: #{mul.66}
  #allocation0 [shape = 's32[1]{0}', space=sflag, size = 0x4, scoped, tag = 'scoped memory for mul.66']
  %s0 = inlined_call_operand.vmem [shape: f32[16,1], index: 0, kind: input, shape index: {}, may-alias: {0,1}]
  %s1 = inlined_call_operand.vmem [shape: f32[16,1], index: 1, kind: input, shape index: {}, may-alias: {0,1}]
  %s2 = inlined_call_operand.vmem [shape: f32[16,1], index: 2, kind: output, shape index: {}]
  %v3 = vld [vmem:[%s0] sm:$0x1]
  %v4 = vld [vmem:[%s1] sm:$0x1]
  %5 = xla_tuple %v3, %v4
  %6 = xla_tuple %5
  %v7 = vmul.f32 %v3, %v4
  %8 = xla_tuple %v7
  %9 = vst [vmem:[%s2] sm:$0x1] %v7

// kernel: osnet_forward.11
$region0: #{osnet_forward.11}
  #allocation0 [shape = 'u32[]', space=smem, size = 0x4, offset = 0x4, fixed_abs, tag = 'smem constant byte address 0x4 - core index']
  #allocation1 [shape = 'u32[144,128]{1,0:T(1,128)}', space=vmem, size = 0x12000, scoped, tag = 'internal scratch']
  %s0 = inlined_call_operand.vmem [shape: f32[8,147], index: 0, kind: input, shape index: {}]
  %s1 = inlined_call_operand.vmem [shape: bf16[2,147,256], index: 1, kind: input, shape index: {}]
  %s2 = inlined_call_operand.vmem [shape: bf16[2,8,256], index: 2, kind: output, shape index: {0}]
  %s3 = inlined_call_operand.vmem [shape: f32[2,1,8,128], index: 3, kind: output, shape index: {1}]
  %s4 = inlined_call_operand.vmem [shape: f32[2,1,8,128], index: 4, kind: output, shape index: {2}]
  %5 = xla_tuple %s2, %s3, %s4
  %s6 = sld [smem:[#allocation0]]
  $region61: #{osnet_forward.11} parent=0
    _
  %s8 = ssub.s32 1, %s6
  %s9 = scalar_select 0, %s8, %s6
  loop: start=0, step=1, limit=4
  $region2: #{osnet_forward.11} parent=0 // loop_pre_header
    _
  $region3: #{osnet_forward.11} parent=0 // loop_header
    %s11 = sphi 0, %s15
    %p12 = scmp.ge.s32.totalorder %s11, 4
    %s18 = sphi 0, %s37
    %s19 = sphi 0, %s33
    %s20 = sphi 0, %s29
    %s21 = sphi 0, %s18
    %s22 = sphi 0, %s19
    %s23 = sphi 0, %s20
    %s24 = sphi 0, %s21
    %s25 = sphi 0, %s22
    %s26 = sphi 0, %s23
    %s38 = sphi 0, %s38
    %s40 = sphi 0, %s38
    %s41 = sphi 0, %s40
    %s55 = sphi 0, %s41
    %s65 = sphi 0, %s67
    %s68 = sphi 0, %s65
    %s69 = sphi 0, %s68
    %s85 = sphi 0, %s69
    %s95 = sphi 0, %s97
    %s98 = sphi 0, %s95
    %s99 = sphi 0, %s98
    %s115 = sphi 0, %s99
    %s123 = sphi 0, %s125
    %s126 = sphi 0, %s123
    %s127 = sphi 0, %s126
    %s143 = sphi 0, %s127
    %s151 = sphi 0, %s153
    %s154 = sphi 0, %s151
    %s155 = sphi 0, %s154
    %s171 = sphi 0, %s155
  $region4: #{osnet_forward.11} parent=0 // loop_header_branch
    %14 = sbr.rel (%p12) target = $region8
  $region5: #{osnet_forward.11} parent=0 // loop_body
    %s16 = ssub.s32 %s11, 1
    %s17 = ssub.s32 %s11, 2
    %s27 = sadd.s32 1, %s20
    %p28 = scmp.ge.s32.totalorder %s27, 1
    %s29 = scalar_select %p28, 0, %s27
    %s30 = sadd.s32 1, %s19
    %s31 = scalar_select %p28, %s30, %s19
    %p32 = scmp.ge.s32.totalorder %s31, 1
    %s33 = scalar_select %p32, 0, %s31
    %s34 = sadd.s32 1, %s18
    %s35 = scalar_select %p32, %s34, %s18
    %p36 = scmp.ge.s32.totalorder %s35, 2
    %s37 = scalar_select %p36, 0, %s35
    %s39 = sadd.s32 %s38, 1
    %p42 = scmp.eq.s32.totalorder %s11, 1
    %p43 = scmp.ne.s32.totalorder %s38, %s40
    %p44 = scmp.eq.s32.totalorder %s11, 0
    %p45 = por %p43, %p44
    %p46 = scmp.ne.s32.totalorder %s38, %s40
    %p47 = scmp.eq.s32.totalorder %s16, 1
    %p48 = por %p46, %p47
    %p49 = scmp.ne.s32.totalorder %s40, %s41
    %p50 = scmp.eq.s32.totalorder %s16, 0
    %p51 = por %p49, %p50
    %p52 = scmp.ne.s32.totalorder %s40, %s41
    %p53 = scmp.eq.s32.totalorder %s17, 1
    %p54 = por %p52, %p53
    %p56 = scmp.ne.s32.totalorder %s41, %s55
    %p57 = scmp.eq.s32.totalorder %s17, 0
    %p58 = por %p56, %p57
    %s59 = sadd.s32 %s19, %s20
    %s60 = sadd.s32 %s33, %s29
    %s61 = ssub.s32 %s18, %s37
    %s62 = ssub.s32 %s59, %s60
    %s63 = sor.u32 %s61, %s62
    %p64 = scmp.eq.s32.totalorder %s63, 0
    %s66 = sadd.s32 %s65, 1
    %s67 = scalar_select %p64, %s65, %s66
    %p70 = pneg %p64
    %p71 = scmp.eq.s32.totalorder %s11, 1
    %p72 = por %p70, %p71
    %p73 = scmp.ne.s32.totalorder %s65, %s68
    %p74 = scmp.eq.s32.totalorder %s11, 0
    %p75 = por %p73, %p74
    %p76 = scmp.ne.s32.totalorder %s65, %s68
    %p77 = scmp.eq.s32.totalorder %s16, 1
    %p78 = por %p76, %p77
    %p79 = scmp.ne.s32.totalorder %s68, %s69
    %p80 = scmp.eq.s32.totalorder %s16, 0
    %p81 = por %p79, %p80
    %p82 = scmp.ne.s32.totalorder %s68, %s69
    %p83 = scmp.eq.s32.totalorder %s17, 1
    %p84 = por %p82, %p83
    %p86 = scmp.ne.s32.totalorder %s69, %s85
    %p87 = scmp.eq.s32.totalorder %s17, 0
    %p88 = por %p86, %p87
    %s89 = sadd.s32 %s19, %s20
    %s90 = sadd.s32 %s33, %s29
    %s91 = ssub.s32 %s18, %s37
    %s92 = ssub.s32 %s89, %s90
    %s93 = sor.u32 %s91, %s92
    %p94 = scmp.eq.s32.totalorder %s93, 0
    %s96 = sadd.s32 %s95, 1
    %s97 = scalar_select %p94, %s95, %s96
    %p100 = pneg %p94
    %p101 = scmp.eq.s32.totalorder %s11, 1
    %p102 = por %p100, %p101
    %p103 = scmp.ne.s32.totalorder %s95, %s98
    %p104 = scmp.eq.s32.totalorder %s11, 0
    %p105 = por %p103, %p104
    %p106 = scmp.ne.s32.totalorder %s95, %s98
    %p107 = scmp.eq.s32.totalorder %s16, 1
    %p108 = por %p106, %p107
    %p109 = scmp.ne.s32.totalorder %s98, %s99
    %p110 = scmp.eq.s32.totalorder %s16, 0
    %p111 = por %p109, %p110
    %p112 = scmp.ne.s32.totalorder %s98, %s99
    %p113 = scmp.eq.s32.totalorder %s17, 1
    %p114 = por %p112, %p113
    %p116 = scmp.ne.s32.totalorder %s99, %s115
    %p117 = scmp.eq.s32.totalorder %s17, 0
    %p118 = por %p116, %p117
    %s119 = ssub.s32 %s18, %s37
    %s120 = ssub.s32 %s19, %s33
    %s121 = sor.u32 %s119, %s120
    %p122 = scmp.eq.s32.totalorder %s121, 0
    %s124 = sadd.s32 %s123, 1
    %s125 = scalar_select %p122, %s123, %s124
    %p128 = pneg %p122
    %p129 = scmp.eq.s32.totalorder %s11, 1
    %p130 = por %p128, %p129
    %p131 = scmp.ne.s32.totalorder %s123, %s126
    %p132 = scmp.eq.s32.totalorder %s11, 0
    %p133 = por %p131, %p132
    %p134 = scmp.ne.s32.totalorder %s123, %s126
    %p135 = scmp.eq.s32.totalorder %s16, 1
    %p136 = por %p134, %p135
    %p137 = scmp.ne.s32.totalorder %s126, %s127
    %p138 = scmp.eq.s32.totalorder %s16, 0
    %p139 = por %p137, %p138
    %p140 = scmp.ne.s32.totalorder %s126, %s127
    %p141 = scmp.eq.s32.totalorder %s17, 1
    %p142 = por %p140, %p141
    %p144 = scmp.ne.s32.totalorder %s127, %s143
    %p145 = scmp.eq.s32.totalorder %s17, 0
    %p146 = por %p144, %p145
    %s147 = ssub.s32 %s18, %s37
    %s148 = ssub.s32 %s19, %s33
    %s149 = sor.u32 %s147, %s148
    %p150 = scmp.eq.s32.totalorder %s149, 0
    %s152 = sadd.s32 %s151, 1
    %s153 = scalar_select %p150, %s151, %s152
    %p156 = pneg %p150
    %p157 = scmp.eq.s32.totalorder %s11, 1
    %p158 = por %p156, %p157
    %p159 = scmp.ne.s32.totalorder %s151, %s154
    %p160 = scmp.eq.s32.totalorder %s11, 0
    %p161 = por %p159, %p160
    %p162 = scmp.ne.s32.totalorder %s151, %s154
    %p163 = scmp.eq.s32.totalorder %s16, 1
    %p164 = por %p162, %p163
    %p165 = scmp.ne.s32.totalorder %s154, %s155
    %p166 = scmp.eq.s32.totalorder %s16, 0
    %p167 = por %p165, %p166
    %p168 = scmp.ne.s32.totalorder %s154, %s155
    %p169 = scmp.eq.s32.totalorder %s17, 1
    %p170 = por %p168, %p169
    %p172 = scmp.ne.s32.totalorder %s155, %s171
    %p173 = scmp.eq.s32.totalorder %s17, 0
    %p174 = por %p172, %p173
    %p175 = scmp.le.s32.totalorder 1, %s11
    %p176 = scmp.lt.s32.totalorder %s11, 3
    %p177 = pnand %p175, %p176
    %p178 = pneg %p177
    // Predicated region
    $region9: #{osnet_forward.11} parent=5 // pred_check
      _
    $region10: #{osnet_forward.11} parent=5 // pred_check_branch
      %180 = sbr.rel (%p177) target = $region12
    $region11: #{osnet_forward.11} parent=5 // pred_region
      %s181 = ssub.s32 %s11, 1
      // Predicated region
      $region13: #{osnet_forward.11} parent=11 // pred_check
        %p182 = pneg %p51
      $region14: #{osnet_forward.11} parent=11 // pred_check_branch
        %184 = sbr.rel (%p182) target = $region16
      $region15: #{osnet_forward.11} parent=11 // pred_region
        _
      $region16: #{osnet_forward.11} parent=11 // pred_fallthru
        _
    $region12: #{osnet_forward.11} parent=5 // pred_fallthru
      _
    %p185 = scmp.lt.s32.totalorder %s11, 2
    // Predicated region
    $region17: #{osnet_forward.11} parent=5 // pred_check
      %p186 = pneg %p185
    $region18: #{osnet_forward.11} parent=5 // pred_check_branch
      %188 = sbr.rel (%p186) target = $region20
    $region19: #{osnet_forward.11} parent=5 // pred_region
      // Predicated region
      $region21: #{osnet_forward.11} parent=19 // pred_check
        %p189 = pneg %p75
      $region22: #{osnet_forward.11} parent=19 // pred_check_branch
        %191 = sbr.rel (%p189) target = $region24
      $region23: #{osnet_forward.11} parent=19 // pred_region
        %s192 = sadd.s32 %s19, %s20
        %s193 = smul.u32 2, %s192
        %p194 = scmp.lt.s32.totalorder %s18, 1
        %s195 = scalar_select %p194, %s18, 1
        %p196 = scmp.lt.s32.totalorder %s193, 1
        %s197 = scalar_select %p196, %s193, 1
        %s198 = smul.addr %s195, 38
        %s199 = sadd.s32 %s197, %s198
        %s200 = smul.addr %s199, 4
        %s201 = scalar_lea.vmem %s1, %s200
        %s202 = sadd.s32 %s19, %s20
        %s203 = smul.u32 2, %s202
      $region24: #{osnet_forward.11} parent=19 // pred_fallthru
        _
    $region20: #{osnet_forward.11} parent=5 // pred_fallthru
      _
    %p204 = scmp.le.s32.totalorder 1, %s11
    %p205 = scmp.lt.s32.totalorder %s11, 3
    %p206 = pnand %p204, %p205
    %p207 = pneg %p206
    // Predicated region
    $region25: #{osnet_forward.11} parent=5 // pred_check
      _
    $region26: #{osnet_forward.11} parent=5 // pred_check_branch
      %209 = sbr.rel (%p206) target = $region28
    $region27: #{osnet_forward.11} parent=5 // pred_region
      %s210 = ssub.s32 %s11, 1
      %p211 = pneg %p51
      %p212 = pneg %p48
      %s213 = sadd.s32 %s22, %s23
      %s214 = smul.u32 2, %s213
      %p215 = scmp.lt.s32.totalorder %s21, 1
      %s216 = scalar_select %p215, %s21, 1
      %p217 = scmp.lt.s32.totalorder %s214, 1
      %s218 = scalar_select %p217, %s214, 1
      %s219 = smul.addr %s216, 38
      %s220 = sadd.s32 %s218, %s219
      %s221 = smul.addr %s220, 4
      %s222 = scalar_lea.vmem %s1, %s221
      %p223 = pneg %p81
      %p224 = pneg %p78
      %p225 = pneg %p111
      %p226 = pneg %p108
      %s227 = sadd.s32 %s22, %s23
      %s228 = smul.u32 2, %s227
      %p229 = scmp.lt.s32.totalorder %s21, 1
      %s230 = scalar_select %p229, %s21, 1
      %p231 = scmp.lt.s32.totalorder %s228, 1
      %s232 = scalar_select %p231, %s228, 1
      %s233 = smul.addr %s230, 2
      %s234 = sadd.s32 %s232, %s233
      %s235 = smul.addr %s234, 4
      %s236 = scalar_lea.vmem %s2, %s235
      %p237 = pneg %p139
      %p238 = pneg %p136
      %p239 = scmp.lt.s32.totalorder %s21, 1
      %s240 = scalar_select %p239, %s21, 1
      %p241 = scmp.lt.s32.totalorder %s22, 0
      %s242 = scalar_select %p241, %s22, 0
      %s243 = sadd.s32 %s242, %s240
      %s244 = smul.addr %s243, 8
      %s245 = scalar_lea.vmem %s3, %s244
      %p246 = pneg %p167
      %p247 = pneg %p164
      %p248 = scmp.lt.s32.totalorder %s21, 1
      %s249 = scalar_select %p248, %s21, 1
      %p250 = scmp.lt.s32.totalorder %s22, 0
      %s251 = scalar_select %p250, %s22, 0
      %s252 = sadd.s32 %s251, %s249
      %s253 = smul.addr %s252, 8
      %s254 = scalar_lea.vmem %s4, %s253
      %s255 = sadd.s32 %s22, %s23
      %s256 = smul.u32 2, %s255
      %p257 = scmp.lt.s32.totalorder %s21, 1
      %s258 = scalar_select %p257, %s21, 1
      %p259 = scmp.lt.s32.totalorder %s256, 1
      %s260 = scalar_select %p259, %s256, 1
      %s261 = smul.addr %s258, 38
      %s262 = sadd.s32 %s260, %s261
      %s263 = smul.addr %s262, 4
      %s264 = scalar_lea.vmem %s1, %s263
      %s265 = sadd.s32 %s22, %s23
      %s266 = smul.u32 2, %s265
      %s267 = sadd.s32 %s22, %s23
      %s268 = smul.u32 2, %s267
      %p269 = scmp.lt.s32.totalorder %s21, 1
      %s270 = scalar_select %p269, %s21, 1
      %p271 = scmp.lt.s32.totalorder %s268, 1
      %s272 = scalar_select %p271, %s268, 1
      %s273 = smul.addr %s270, 2
      %s274 = sadd.s32 %s272, %s273
      %s275 = smul.addr %s274, 4
      %s276 = scalar_lea.vmem %s2, %s275
      %s277 = sadd.s32 %s22, %s23
      %s278 = smul.u32 2, %s277
      %p279 = scmp.lt.s32.totalorder %s21, 1
      %s280 = scalar_select %p279, %s21, 1
      %p281 = scmp.lt.s32.totalorder %s22, 0
      %s282 = scalar_select %p281, %s22, 0
      %s283 = sadd.s32 %s282, %s280
      %s284 = smul.addr %s283, 8
      %s285 = scalar_lea.vmem %s3, %s284
      %p286 = scmp.lt.s32.totalorder %s21, 1
      %s287 = scalar_select %p286, %s21, 1
      %p288 = scmp.lt.s32.totalorder %s22, 0
      %s289 = scalar_select %p288, %s22, 0
      %s290 = sadd.s32 %s289, %s287
      %s291 = smul.addr %s290, 8
      %s292 = scalar_lea.vmem %s4, %s291
      %v293 = vld [vmem:[%s264] sm:$0xff]
      %v294 = vld [vmem:[%s264 + $0x8] sm:$0xff]
      %v295 = vld [vmem:[%s264 + $0x10] sm:$0xff]
      %v296 = vld [vmem:[%s264 + $0x18] sm:$0xff]
      %v297 = vld [vmem:[%s264 + $0x20] sm:$0xff]
      %v298 = vld [vmem:[%s264 + $0x28] sm:$0xff]
      %v299 = vld [vmem:[%s264 + $0x30] sm:$0xff]
      %v300 = vld [vmem:[%s264 + $0x38] sm:$0xff]
      %v301 = vld [vmem:[%s264 + $0x40] sm:$0xff]
      %v302 = vld [vmem:[%s264 + $0x48] sm:$0xff]
      %v303 = vld [vmem:[%s264 + $0x50] sm:$0xff]
      %v304 = vld [vmem:[%s264 + $0x58] sm:$0xff]
      %v305 = vld [vmem:[%s264 + $0x60] sm:$0xff]
      %v306 = vld [vmem:[%s264 + $0x68] sm:$0xff]
      %v307 = vld [vmem:[%s264 + $0x70] sm:$0xff]
      %v308 = vld [vmem:[%s264 + $0x78] sm:$0xff]
      %v309 = vld [vmem:[%s264 + $0x80] sm:$0xff]
      %v310 = vld [vmem:[%s264 + $0x88] sm:$0xff]
      %v311 = vld [vmem:[%s264 + $0x90] sm:$0x33]
      %v312 = vunpack.c.l.bf16 %v293
      %v313 = vunpack.c.h.bf16 %v293
      %v314 = vunpack.c.l.bf16 %v294
      %v315 = vunpack.c.h.bf16 %v294
      %v316 = vunpack.c.l.bf16 %v295
      %v317 = vunpack.c.h.bf16 %v295
      %v318 = vunpack.c.l.bf16 %v296
      %v319 = vunpack.c.h.bf16 %v296
      %v320 = vunpack.c.l.bf16 %v297
      %v321 = vunpack.c.h.bf16 %v297
      %v322 = vunpack.c.l.bf16 %v298
      %v323 = vunpack.c.h.bf16 %v298
      %v324 = vunpack.c.l.bf16 %v299
      %v325 = vunpack.c.h.bf16 %v299
      %v326 = vunpack.c.l.bf16 %v300
      %v327 = vunpack.c.h.bf16 %v300
      %v328 = vunpack.c.l.bf16 %v301
      %v329 = vunpack.c.h.bf16 %v301
      %v330 = vunpack.c.l.bf16 %v302
      %v331 = vunpack.c.h.bf16 %v302
      %v332 = vunpack.c.l.bf16 %v303
      %v333 = vunpack.c.h.bf16 %v303
      %v334 = vunpack.c.l.bf16 %v304
      %v335 = vunpack.c.h.bf16 %v304
      %v336 = vunpack.c.l.bf16 %v305
      %v337 = vunpack.c.h.bf16 %v305
      %v338 = vunpack.c.l.bf16 %v306
      %v339 = vunpack.c.h.bf16 %v306
      %v340 = vunpack.c.l.bf16 %v307
      %v341 = vunpack.c.h.bf16 %v307
      %v342 = vunpack.c.l.bf16 %v308
      %v343 = vunpack.c.h.bf16 %v308
      %v344 = vunpack.c.l.bf16 %v309
      %v345 = vunpack.c.h.bf16 %v309
      %v346 = vunpack.c.l.bf16 %v310
      %v347 = vunpack.c.h.bf16 %v310
      %v348 = vunpack.c.l.bf16 %v311
      %v349 = vunpack.c.h.bf16 %v311
      %v350 = vld [vmem:[%s0] sm:$0xff]
      %v351 = vld [vmem:[%s0 + $0x8] sm:$0xff]
      %vm352 = vcmask 154624
      %v354 = vsel %vm352, %v351, 0
      %vm356 = vcmask 1042432
      %v358 = vsel %vm356, %v348, 0
      %v361 = vsel %vm356, %v349, 0
      %363 = vmatprep.subr.mxu0 %v313
      %364 = vmatpush1.msra.mxu0 %v312
      %365 = vmatprep.subr.mxu0 %v315
      %366 = vmatpush1.msra.mxu0 %v314
      %367 = vmatprep.subr.mxu0 %v317
      %368 = vmatpush1.msra.mxu0 %v316
      %369 = vmatprep.subr.mxu0 %v319
      %370 = vmatpush1.msra.mxu0 %v318
      %371 = vmatprep.subr.mxu0 %v321
      %372 = vmatpush1.msra.mxu0 %v320
      %373 = vmatprep.subr.mxu0 %v323
      %374 = vmatpush1.msra.mxu0 %v322
      %375 = vmatprep.subr.mxu0 %v325
      %376 = vmatpush1.msra.mxu0 %v324
      %377 = vmatprep.subr.mxu0 %v327
      %378 = vmatpush1.msra.mxu0 %v326
      %379 = vmatprep.subr.mxu0 %v329
      %380 = vmatpush1.msra.mxu0 %v328
      %381 = vmatprep.subr.mxu0 %v331
      %382 = vmatpush1.msra.mxu0 %v330
      %383 = vmatprep.subr.mxu0 %v333
      %384 = vmatpush1.msra.mxu0 %v332
      %385 = vmatprep.subr.mxu0 %v335
      %386 = vmatpush1.msra.mxu0 %v334
      %387 = vmatprep.subr.mxu0 %v337
      %388 = vmatpush1.msra.mxu0 %v336
      %389 = vmatprep.subr.mxu0 %v339
      %390 = vmatpush1.msra.mxu0 %v338
      %391 = vmatprep.subr.mxu0 %v341
      %392 = vmatpush1.msra.mxu0 %v340
      %393 = vmatprep.subr.mxu0 %v343
      %394 = vmatpush1.msra.mxu0 %v342
      %395 = vmatprep.subr.mxu0 %v345
      %396 = vmatpush1.msra.mxu0 %v344
      %397 = vmatprep.subr.mxu0 %v347
      %398 = vmatpush1.msra.mxu0 %v346
      %399 = vmatprep.subr.mxu0 %v361
      %400 = vmatpush1.msra.mxu0 %v358
      %401 = vmatprep.subr.mxu0 0.0
      %402 = vmatpush1.msra.mxu0 0.0
      %403 = vmatprep.subr.mxu0 0.0
      %404 = vmatpush1.msra.mxu0 0.0
      %405 = vmatprep.subr.mxu0 0.0
      %406 = vmatpush1.msra.mxu0 0.0
      %407 = vmatprep.subr.mxu0 0.0
      %408 = vmatpush1.msra.mxu0 0.0
      %409 = vmatprep.subr.mxu0 0.0
      %410 = vmatpush1.msra.mxu0 0.0
      %411 = vmatprep.subr.mxu0 0.0
      %412 = vmatpush1.msra.mxu0 0.0
      %413 = vmatprep.subr.mxu0 0.0
      %414 = vmatpush1.msra.mxu0 0.0
      %415 = vmatprep.subr.mxu0 0.0
      %416 = vmatpush1.msra.mxu0 0.0
      %417 = vmatprep.subr.mxu0 0.0
      %418 = vmatpush1.msra.mxu0 0.0
      %419 = vmatprep.subr.mxu0 0.0
      %420 = vmatpush1.msra.mxu0 0.0
      %421 = vmatprep.subr.mxu0 0.0
      %422 = vmatpush1.msra.mxu0 0.0
      %423 = vmatprep.subr.mxu0 0.0
      %424 = vmatpush1.msra.mxu0 0.0
      %425 = vmatprep.subr.mxu0 0.0
      %426 = vmatpush1.msra.mxu0 0.0
      %427 = vmatprep.mubr.f32.mxu0 %v354
      %428 = vmatmul.mubr.f32.gmra.mrb[0].mxu0 %v350
      %v429 = vpop.f32.mrb[0].mxu0
      %v430 = vadd.f32 0.0, %v429
      %v431 = vpop.f32.mrb[0].mxu0
      %v432 = vadd.f32 0.0, %v431
      %433 = vdwg.mxu0
      %v434 = vpack.c.bf16 %v430, %v430
      %v435 = vpack.c.bf16 %v432, %v432
      %v438 = vunpack.c.l.b16 %v434
      %v439 = vunpack.c.l.b16 %v435
      %v440 = vpack.c.b16 %v439, %v438
      %442 = vst [vmem:[%s276] sm:$0xff] %v440
      %p443 = scmp.eq.s32.totalorder %s23, 0
      // Predicated region
      $region29: #{osnet_forward.11} parent=27 // pred_check
        %p444 = pneg %p443
      $region30: #{osnet_forward.11} parent=27 // pred_check_branch
        %446 = sbr.rel (%p444) target = $region32
      $region31: #{osnet_forward.11} parent=27 // pred_region
        %447 = vst [vmem:[%s285] sm:$0xff] 0.0
        %448 = vst [vmem:[%s292] sm:$0xff] 0.0
      $region32: #{osnet_forward.11} parent=27 // pred_fallthru
        _
      %v449 = vld [vmem:[%s285] sm:$0xff]
      %v450 = vadd.f32 %v430, %v432
      %451 = vadd.xlane.f32.xlu0 %v450
      %v452 = vpop.xlane.xlu0 %451
      %v453 = vadd.f32 %v449, %v452
      %454 = vst [vmem:[%s285] sm:$0xff] %v453
      %v455 = vld [vmem:[%s292] sm:$0xff]
      %v456 = vmul.f32 %v430, %v430
      %v457 = vmul.f32 %v432, %v432
      %v458 = vadd.f32 %v456, %v457
      %459 = vadd.xlane.f32.xlu0 %v458
      %v460 = vpop.xlane.xlu0 %459
      %v461 = vadd.f32 %v455, %v460
      %462 = vst [vmem:[%s292] sm:$0xff] %v461
      %s463 = sadd.s32 %s22, %s23
      %s464 = smul.u32 2, %s463
      %p465 = scmp.lt.s32.totalorder %s21, 1
      %s466 = scalar_select %p465, %s21, 1
      %p467 = scmp.lt.s32.totalorder %s464, 1
      %s468 = scalar_select %p467, %s464, 1
      %s469 = smul.addr %s466, 2
      %s470 = sadd.s32 %s468, %s469
      %s471 = smul.addr %s470, 4
      %s472 = scalar_lea.vmem %s2, %s471
      %p473 = scmp.lt.s32.totalorder %s21, 1
      %s474 = scalar_select %p473, %s21, 1
      %p475 = scmp.lt.s32.totalorder %s22, 0
      %s476 = scalar_select %p475, %s22, 0
      %s477 = sadd.s32 %s476, %s474
      %s478 = smul.addr %s477, 8
      %s479 = scalar_lea.vmem %s3, %s478
      %p480 = scmp.lt.s32.totalorder %s21, 1
      %s481 = scalar_select %p480, %s21, 1
      %p482 = scmp.lt.s32.totalorder %s22, 0
      %s483 = scalar_select %p482, %s22, 0
      %s484 = sadd.s32 %s483, %s481
      %s485 = smul.addr %s484, 8
      %s486 = scalar_lea.vmem %s4, %s485
      // Predicated region
      $region33: #{osnet_forward.11} parent=27 // pred_check
        %p487 = pneg %p108
      $region34: #{osnet_forward.11} parent=27 // pred_check_branch
        %489 = sbr.rel (%p487) target = $region36
      $region35: #{osnet_forward.11} parent=27 // pred_region
        %s490 = sadd.s32 %s22, %s23
        %s491 = smul.u32 2, %s490
      $region36: #{osnet_forward.11} parent=27 // pred_fallthru
        _
      // Predicated region
      $region37: #{osnet_forward.11} parent=27 // pred_check
        %p492 = pneg %p136
      $region38: #{osnet_forward.11} parent=27 // pred_check_branch
        %494 = sbr.rel (%p492) target = $region40
      $region39: #{osnet_forward.11} parent=27 // pred_region
        _
      $region40: #{osnet_forward.11} parent=27 // pred_fallthru
        _
      // Predicated region
      $region41: #{osnet_forward.11} parent=27 // pred_check
        %p495 = pneg %p164
      $region42: #{osnet_forward.11} parent=27 // pred_check_branch
        %497 = sbr.rel (%p495) target = $region44
      $region43: #{osnet_forward.11} parent=27 // pred_region
        _
      $region44: #{osnet_forward.11} parent=27 // pred_fallthru
        _
    $region28: #{osnet_forward.11} parent=5 // pred_fallthru
      _
    %p498 = scmp.le.s32.totalorder 2, %s11
    // Predicated region
    $region45: #{osnet_forward.11} parent=5 // pred_check
      %p499 = pneg %p498
    $region46: #{osnet_forward.11} parent=5 // pred_check_branch
      %501 = sbr.rel (%p499) target = $region48
    $region47: #{osnet_forward.11} parent=5 // pred_region
      %s502 = ssub.s32 %s11, 2
      // Predicated region
      $region49: #{osnet_forward.11} parent=47 // pred_check
        %p503 = pneg %p114
      $region50: #{osnet_forward.11} parent=47 // pred_check_branch
        %505 = sbr.rel (%p503) target = $region52
      $region51: #{osnet_forward.11} parent=47 // pred_region
        %s506 = sadd.s32 %s25, %s26
        %s507 = smul.u32 2, %s506
        %p508 = scmp.lt.s32.totalorder %s24, 1
        %s509 = scalar_select %p508, %s24, 1
        %p510 = scmp.lt.s32.totalorder %s507, 1
        %s511 = scalar_select %p510, %s507, 1
        %s512 = smul.addr %s509, 2
        %s513 = sadd.s32 %s511, %s512
        %s514 = smul.addr %s513, 4
        %s515 = scalar_lea.vmem %s2, %s514
      $region52: #{osnet_forward.11} parent=47 // pred_fallthru
        _
      // Predicated region
      $region53: #{osnet_forward.11} parent=47 // pred_check
        %p516 = pneg %p142
      $region54: #{osnet_forward.11} parent=47 // pred_check_branch
        %518 = sbr.rel (%p516) target = $region56
      $region55: #{osnet_forward.11} parent=47 // pred_region
        %p519 = scmp.lt.s32.totalorder %s24, 1
        %s520 = scalar_select %p519, %s24, 1
        %p521 = scmp.lt.s32.totalorder %s25, 0
        %s522 = scalar_select %p521, %s25, 0
        %s523 = sadd.s32 %s522, %s520
        %s524 = smul.addr %s523, 8
        %s525 = scalar_lea.vmem %s3, %s524
      $region56: #{osnet_forward.11} parent=47 // pred_fallthru
        _
      // Predicated region
      $region57: #{osnet_forward.11} parent=47 // pred_check
        %p526 = pneg %p170
      $region58: #{osnet_forward.11} parent=47 // pred_check_branch
        %528 = sbr.rel (%p526) target = $region60
      $region59: #{osnet_forward.11} parent=47 // pred_region
        %p529 = scmp.lt.s32.totalorder %s24, 1
        %s530 = scalar_select %p529, %s24, 1
        %p531 = scmp.lt.s32.totalorder %s25, 0
        %s532 = scalar_select %p531, %s25, 0
        %s533 = sadd.s32 %s532, %s530
        %s534 = smul.addr %s533, 8
        %s535 = scalar_lea.vmem %s4, %s534
      $region60: #{osnet_forward.11} parent=47 // pred_fallthru
        _
    $region48: #{osnet_forward.11} parent=5 // pred_fallthru
      _
  $region6: #{osnet_forward.11} parent=0 // loop_footer
    %s15 = sadd.s32 1, %s11
  $region7: #{osnet_forward.11} parent=0 // loop_footer_branch
    %10 = sbr.rel target = $region3
  $region8: #{osnet_forward.11} parent=0 // loop_exit
    _

// kernel: osnet_forward.13
$region0: #{osnet_forward.13}
  #allocation0 [shape = 'u32[]', space=smem, size = 0x4, offset = 0x4, fixed_abs, tag = 'smem constant byte address 0x4 - core index']
  #allocation1 [shape = 'u32[144,128]{1,0:T(1,128)}', space=vmem, size = 0x12000, scoped, tag = 'internal scratch']
  %s0 = inlined_call_operand.vmem [shape: f32[16,8], index: 0, kind: input, shape index: {}]
  %s1 = inlined_call_operand.vmem [shape: bf16[1,8,128], index: 1, kind: input, shape index: {}]
  %s2 = inlined_call_operand.vmem [shape: bf16[1,16,128], index: 2, kind: output, shape index: {0}]
  %s3 = inlined_call_operand.vmem [shape: f32[1,1,16,128], index: 3, kind: output, shape index: {1}]
  %s4 = inlined_call_operand.vmem [shape: f32[1,1,16,128], index: 4, kind: output, shape index: {2}]
  %5 = xla_tuple %s2, %s3, %s4
  %s6 = sld [smem:[#allocation0]]
  $region38: #{osnet_forward.13} parent=0
    _
  %s8 = ssub.s32 1, %s6
  %s9 = scalar_select 0, %s8, %s6
  // Predicated region
  $region2: #{osnet_forward.13} parent=0 // pred_check
    _
  $region3: #{osnet_forward.13} parent=0 // pred_check_branch
    %11 = sbr.rel (0) target = $region5
  $region4: #{osnet_forward.13} parent=0 // pred_region
    _
  $region5: #{osnet_forward.13} parent=0 // pred_fallthru
    _
  // Predicated region
  $region6: #{osnet_forward.13} parent=0 // pred_check
    _
  $region7: #{osnet_forward.13} parent=0 // pred_check_branch
    %13 = sbr.rel (0) target = $region9
  $region8: #{osnet_forward.13} parent=0 // pred_region
    %s14 = sadd.s32 0, 0
    %p15 = scmp.lt.s32.totalorder %s14, 0
    %s16 = scalar_select %p15, %s14, 0
    %s17 = smul.addr %s16, 4
    %s18 = scalar_lea.vmem %s1, %s17
    %s19 = sadd.s32 0, 0
  $region9: #{osnet_forward.13} parent=0 // pred_fallthru
    _
  %s20 = sadd.s32 0, 0
  %p21 = scmp.lt.s32.totalorder %s20, 0
  %s22 = scalar_select %p21, %s20, 0
  %s23 = smul.addr %s22, 4
  %s24 = scalar_lea.vmem %s1, %s23
  %s25 = sadd.s32 0, 0
  %p26 = scmp.lt.s32.totalorder %s25, 0
  %s27 = scalar_select %p26, %s25, 0
  %s28 = smul.addr %s27, 4
  %s29 = scalar_lea.vmem %s2, %s28
  %s30 = sadd.s32 0, 0
  %p31 = scmp.lt.s32.totalorder %s30, 0
  %s32 = scalar_select %p31, %s30, 0
  %s33 = smul.addr %s32, 4
  %s34 = scalar_lea.vmem %s1, %s33
  %s35 = sadd.s32 0, 0
  %s36 = sadd.s32 0, 0
  %p37 = scmp.lt.s32.totalorder %s36, 0
  %s38 = scalar_select %p37, %s36, 0
  %s39 = smul.addr %s38, 4
  %s40 = scalar_lea.vmem %s2, %s39
  %s41 = sadd.s32 0, 0
  %v42 = vld [vmem:[%s34] sm:$0xf]
  %v43 = vunpack.c.l.bf16 %v42
  %v44 = vld [vmem:[%s0] sm:$0xff]
  %v45 = vld [vmem:[%s0 + $0x8] sm:$0xff]
  %vm46 = vcmask 64512
  %v48 = vsel %vm46, %v44, 0
  %v51 = vsel %vm46, %v45, 0
  %53 = vmatprep.subr.mxu0 0.0
  %54 = vmatpush1.msra.mxu0 %v43
  %55 = vmatprep.subr.mxu0 0.0
  %56 = vmatpush1.msra.mxu0 0.0
  %57 = vmatprep.subr.mxu0 0.0
  %58 = vmatpush1.msra.mxu0 0.0
  %59 = vmatprep.subr.mxu0 0.0
  %60 = vmatpush1.msra.mxu0 0.0
  %61 = vmatprep.subr.mxu0 0.0
  %62 = vmatpush1.msra.mxu0 0.0
  %63 = vmatprep.subr.mxu0 0.0
  %64 = vmatpush1.msra.mxu0 0.0
  %65 = vmatprep.subr.mxu0 0.0
  %66 = vmatpush1.msra.mxu0 0.0
  %67 = vmatprep.subr.mxu0 0.0
  %68 = vmatpush1.msra.mxu0 0.0
  %69 = vmatprep.subr.mxu0 0.0
  %70 = vmatpush1.msra.mxu0 0.0
  %71 = vmatprep.subr.mxu0 0.0
  %72 = vmatpush1.msra.mxu0 0.0
  %73 = vmatprep.subr.mxu0 0.0
  %74 = vmatpush1.msra.mxu0 0.0
  %75 = vmatprep.subr.mxu0 0.0
  %76 = vmatpush1.msra.mxu0 0.0
  %77 = vmatprep.subr.mxu0 0.0
  %78 = vmatpush1.msra.mxu0 0.0
  %79 = vmatprep.subr.mxu0 0.0
  %80 = vmatpush1.msra.mxu0 0.0
  %81 = vmatprep.subr.mxu0 0.0
  %82 = vmatpush1.msra.mxu0 0.0
  %83 = vmatprep.subr.mxu0 0.0
  %84 = vmatpush1.msra.mxu0 0.0
  %85 = vmatprep.subr.mxu0 0.0
  %86 = vmatpush1.msra.mxu0 0.0
  %87 = vmatprep.subr.mxu0 0.0
  %88 = vmatpush1.msra.mxu0 0.0
  %89 = vmatprep.subr.mxu0 0.0
  %90 = vmatpush1.msra.mxu0 0.0
  %91 = vmatprep.subr.mxu0 0.0
  %92 = vmatpush1.msra.mxu0 0.0
  %93 = vmatprep.subr.mxu0 0.0
  %94 = vmatpush1.msra.mxu0 0.0
  %95 = vmatprep.subr.mxu0 0.0
  %96 = vmatpush1.msra.mxu0 0.0
  %97 = vmatprep.subr.mxu0 0.0
  %98 = vmatpush1.msra.mxu0 0.0
  %99 = vmatprep.subr.mxu0 0.0
  %100 = vmatpush1.msra.mxu0 0.0
  %101 = vmatprep.subr.mxu0 0.0
  %102 = vmatpush1.msra.mxu0 0.0
  %103 = vmatprep.subr.mxu0 0.0
  %104 = vmatpush1.msra.mxu0 0.0
  %105 = vmatprep.subr.mxu0 0.0
  %106 = vmatpush1.msra.mxu0 0.0
  %107 = vmatprep.subr.mxu0 0.0
  %108 = vmatpush1.msra.mxu0 0.0
  %109 = vmatprep.subr.mxu0 0.0
  %110 = vmatpush1.msra.mxu0 0.0
  %111 = vmatprep.subr.mxu0 0.0
  %112 = vmatpush1.msra.mxu0 0.0
  %113 = vmatprep.subr.mxu0 0.0
  %114 = vmatpush1.msra.mxu0 0.0
  %115 = vmatprep.subr.mxu0 0.0
  %116 = vmatpush1.msra.mxu0 0.0
  %117 = vmatprep.mubr.f32.mxu0 0.0
  %118 = vmatmul.mubr.f32.gmra.mrb[0].mxu0 %v48
  %v119 = vpop.f32.mrb[0].mxu0
  %v120 = vadd.f32 0.0, %v119
  %v121 = vpop.f32.mrb[0].mxu0
  %122 = vmatprep.mubr.f32.mxu0 0.0
  %123 = vmatmul.mubr.f32.gmra.mrb[0].mxu0 %v51
  %v124 = vpop.f32.mrb[0].mxu0
  %v125 = vadd.f32 0.0, %v124
  %v126 = vpop.f32.mrb[0].mxu0
  %127 = vdwg.mxu0
  %v128 = vpack.c.bf16 %v125, %v120
  %v130 = vunpack.c.l.b16 %v128
  %v131 = vunpack.c.h.b16 %v128
  %v132 = vpack.c.b16 %v130, %v130
  %v133 = vpack.c.b16 %v131, %v131
  %136 = vst [vmem:[%s40] sm:$0xf] %v132
  %137 = vst [vmem:[%s40 + $0x4] sm:$0xf] %v133
  %p138 = scmp.eq.s32.totalorder 0, 0
  // Predicated region
  $region10: #{osnet_forward.13} parent=0 // pred_check
    %p139 = pneg %p138
  $region11: #{osnet_forward.13} parent=0 // pred_check_branch
    %141 = sbr.rel (%p139) target = $region13
  $region12: #{osnet_forward.13} parent=0 // pred_region
    %142 = vst [vmem:[%s3] sm:$0xff] 0.0
    %143 = vst [vmem:[%s3 + $0x8] sm:$0xff] 0.0
    %144 = vst [vmem:[%s4] sm:$0xff] 0.0
    %145 = vst [vmem:[%s4 + $0x8] sm:$0xff] 0.0
  $region13: #{osnet_forward.13} parent=0 // pred_fallthru
    _
  %v146 = vld [vmem:[%s3] sm:$0xff]
  %v147 = vld [vmem:[%s3 + $0x8] sm:$0xff]
  %148 = vadd.xlane.f32.xlu0 %v120
  %v149 = vpop.xlane.xlu0 %148
  %150 = vadd.xlane.f32.xlu0 %v125
  %v151 = vpop.xlane.xlu0 %150
  %v152 = vadd.f32 %v146, %v149
  %v153 = vadd.f32 %v147, %v151
  %154 = vst [vmem:[%s3] sm:$0xff] %v152
  %155 = vst [vmem:[%s3 + $0x8] sm:$0xff] %v153
  %v156 = vld [vmem:[%s4] sm:$0xff]
  %v157 = vld [vmem:[%s4 + $0x8] sm:$0xff]
  %v158 = vmul.f32 %v120, %v120
  %v159 = vmul.f32 %v125, %v125
  %160 = vadd.xlane.f32.xlu0 %v158
  %v161 = vpop.xlane.xlu0 %160
  %162 = vadd.xlane.f32.xlu0 %v159
  %v163 = vpop.xlane.xlu0 %162
  %v164 = vadd.f32 %v156, %v161
  %v165 = vadd.f32 %v157, %v163
  %166 = vst [vmem:[%s4] sm:$0xff] %v164
  %167 = vst [vmem:[%s4 + $0x8] sm:$0xff] %v165
  %s168 = sadd.s32 0, 0
  %p169 = scmp.lt.s32.totalorder %s168, 0
  %s170 = scalar_select %p169, %s168, 0
  %s171 = smul.addr %s170, 4
  %s172 = scalar_lea.vmem %s2, %s171
  // Predicated region
  $region14: #{osnet_forward.13} parent=0 // pred_check
    _
  $region15: #{osnet_forward.13} parent=0 // pred_check_branch
    %174 = sbr.rel (0) target = $region17
  $region16: #{osnet_forward.13} parent=0 // pred_region
    %s175 = sadd.s32 0, 0
  $region17: #{osnet_forward.13} parent=0 // pred_fallthru
    _
  // Predicated region
  $region18: #{osnet_forward.13} parent=0 // pred_check
    _
  $region19: #{osnet_forward.13} parent=0 // pred_check_branch
    %177 = sbr.rel (0) target = $region21
  $region20: #{osnet_forward.13} parent=0 // pred_region
    _
  $region21: #{osnet_forward.13} parent=0 // pred_fallthru
    _
  // Predicated region
  $region22: #{osnet_forward.13} parent=0 // pred_check
    _
  $region23: #{osnet_forward.13} parent=0 // pred_check_branch
    %179 = sbr.rel (0) target = $region25
  $region24: #{osnet_forward.13} parent=0 // pred_region
    _
  $region25: #{osnet_forward.13} parent=0 // pred_fallthru
    _
  // Predicated region
  $region26: #{osnet_forward.13} parent=0 // pred_check
    _
  $region27: #{osnet_forward.13} parent=0 // pred_check_branch
    %181 = sbr.rel (0) target = $region29
  $region28: #{osnet_forward.13} parent=0 // pred_region
    %s182 = sadd.s32 0, 0
    %p183 = scmp.lt.s32.totalorder %s182, 0
    %s184 = scalar_select %p183, %s182, 0
    %s185 = smul.addr %s184, 4
    %s186 = scalar_lea.vmem %s2, %s185
  $region29: #{osnet_forward.13} parent=0 // pred_fallthru
    _
  // Predicated region
  $region30: #{osnet_forward.13} parent=0 // pred_check
    _
  $region31: #{osnet_forward.13} parent=0 // pred_check_branch
    %188 = sbr.rel (0) target = $region33
  $region32: #{osnet_forward.13} parent=0 // pred_region
    _
  $region33: #{osnet_forward.13} parent=0 // pred_fallthru
    _
  // Predicated region
  $region34: #{osnet_forward.13} parent=0 // pred_check
    _
  $region35: #{osnet_forward.13} parent=0 // pred_check_branch
    %190 = sbr.rel (0) target = $region37
  $region36: #{osnet_forward.13} parent=0 // pred_region
    _
  $region37: #{osnet_forward.13} parent=0 // pred_fallthru
    _

// kernel: osnet_forward.12
$region0: #{osnet_forward.12}
  #allocation0 [shape = 'u32[]', space=smem, size = 0x4, offset = 0x4, fixed_abs, tag = 'smem constant byte address 0x4 - core index']
  #allocation1 [shape = 'u32[144,128]{1,0:T(1,128)}', space=vmem, size = 0x12000, scoped, tag = 'internal scratch']
  %s0 = inlined_call_operand.vmem [shape: bf16[9,16,64], index: 0, kind: input, shape index: {}]
  %s1 = inlined_call_operand.vmem [shape: f32[16,1], index: 1, kind: input, shape index: {}]
  %s2 = inlined_call_operand.vmem [shape: f32[16,1], index: 2, kind: input, shape index: {}]
  %s3 = inlined_call_operand.vmem [shape: bf16[16,64], index: 3, kind: output, shape index: {}]
  %s4 = sld [smem:[#allocation0]]
  $region22: #{osnet_forward.12} parent=0
    _
  %s6 = ssub.s32 1, %s4
  %s7 = scalar_select 0, %s6, %s4
  // Predicated region
  $region2: #{osnet_forward.12} parent=0 // pred_check
    _
  $region3: #{osnet_forward.12} parent=0 // pred_check_branch
    %9 = sbr.rel (0) target = $region5
  $region4: #{osnet_forward.12} parent=0 // pred_region
    _
  $region5: #{osnet_forward.12} parent=0 // pred_fallthru
    _
  // Predicated region
  $region6: #{osnet_forward.12} parent=0 // pred_check
    _
  $region7: #{osnet_forward.12} parent=0 // pred_check_branch
    %11 = sbr.rel (0) target = $region9
  $region8: #{osnet_forward.12} parent=0 // pred_region
    _
  $region9: #{osnet_forward.12} parent=0 // pred_fallthru
    _
  // Predicated region
  $region10: #{osnet_forward.12} parent=0 // pred_check
    _
  $region11: #{osnet_forward.12} parent=0 // pred_check_branch
    %13 = sbr.rel (0) target = $region13
  $region12: #{osnet_forward.12} parent=0 // pred_region
    _
  $region13: #{osnet_forward.12} parent=0 // pred_fallthru
    _
  %v14 = vld [vmem:[%s1] sm:$0xff]
  %v15 = vld [vmem:[%s1 + $0x8] sm:$0xff]
  %v16 = vld [vmem:[%s2] sm:$0xff]
  %v17 = vld [vmem:[%s2 + $0x8] sm:$0xff]
  %v18 = vld [vmem:[%s0] sm:$0xf]
  %v19 = vld [vmem:[%s0 + $0x4] sm:$0xf]
  %v20 = vunpack.c.l.bf16 %v18
  %v21 = vunpack.c.l.bf16 %v19
  %23 = vset.pattern.permute.xlu0 0
  %24 = vperm.xlu0 %23, %v14
  %v25 = vpop.permute.xlu0 %24
  %28 = vset.pattern.permute.xlu0 0
  %29 = vperm.xlu0 %28, %v15
  %v30 = vpop.permute.xlu0 %29
  %v32 = vmul.f32 %v20, %v25
  %v33 = vmul.f32 %v21, %v30
  %35 = vset.pattern.permute.xlu0 0
  %36 = vperm.xlu0 %35, %v16
  %v37 = vpop.permute.xlu0 %36
  %40 = vset.pattern.permute.xlu0 0
  %41 = vperm.xlu0 %40, %v17
  %v42 = vpop.permute.xlu0 %41
  %v44 = vadd.f32 %v32, %v37
  %v45 = vadd.f32 %v33, %v42
  %v46 = vmax.f32 %v44, 0.0
  %v47 = vmax.f32 %v45, 0.0
  %vm48 = vcmp.le.f32.partialorder %v20, -1e+29
  %vm49 = vcmp.le.f32.partialorder %v21, -1e+29
  %v50 = vsel %vm48, 0.0, %v46
  %v51 = vsel %vm49, 0.0, %v47
  %s52 = scalar_lea.vmem %s0, 8
  %v53 = vld [vmem:[%s52] sm:$0xf]
  %v54 = vld [vmem:[%s52 + $0x4] sm:$0xf]
  %v55 = vunpack.c.l.bf16 %v53
  %v56 = vunpack.c.l.bf16 %v54
  %v57 = vmul.f32 %v55, %v25
  %v58 = vmul.f32 %v56, %v30
  %v59 = vadd.f32 %v57, %v37
  %v60 = vadd.f32 %v58, %v42
  %v61 = vmax.f32 %v59, 0.0
  %v62 = vmax.f32 %v60, 0.0
  %vm63 = vcmp.le.f32.partialorder %v55, -1e+29
  %vm64 = vcmp.le.f32.partialorder %v56, -1e+29
  %v65 = vsel %vm63, 0.0, %v61
  %v66 = vsel %vm64, 0.0, %v62
  %v67 = vmax.f32 %v50, %v65
  %v68 = vmax.f32 %v51, %v66
  %s69 = scalar_lea.vmem %s0, 16
  %v70 = vld [vmem:[%s69] sm:$0xf]
  %v71 = vld [vmem:[%s69 + $0x4] sm:$0xf]
  %v72 = vunpack.c.l.bf16 %v70
  %v73 = vunpack.c.l.bf16 %v71
  %v74 = vmul.f32 %v72, %v25
  %v75 = vmul.f32 %v73, %v30
  %v76 = vadd.f32 %v74, %v37
  %v77 = vadd.f32 %v75, %v42
  %v78 = vmax.f32 %v76, 0.0
  %v79 = vmax.f32 %v77, 0.0
  %vm80 = vcmp.le.f32.partialorder %v72, -1e+29
  %vm81 = vcmp.le.f32.partialorder %v73, -1e+29
  %v82 = vsel %vm80, 0.0, %v78
  %v83 = vsel %vm81, 0.0, %v79
  %v84 = vmax.f32 %v67, %v82
  %v85 = vmax.f32 %v68, %v83
  %s86 = scalar_lea.vmem %s0, 24
  %v87 = vld [vmem:[%s86] sm:$0xf]
  %v88 = vld [vmem:[%s86 + $0x4] sm:$0xf]
  %v89 = vunpack.c.l.bf16 %v87
  %v90 = vunpack.c.l.bf16 %v88
  %v91 = vmul.f32 %v89, %v25
  %v92 = vmul.f32 %v90, %v30
  %v93 = vadd.f32 %v91, %v37
  %v94 = vadd.f32 %v92, %v42
  %v95 = vmax.f32 %v93, 0.0
  %v96 = vmax.f32 %v94, 0.0
  %vm97 = vcmp.le.f32.partialorder %v89, -1e+29
  %vm98 = vcmp.le.f32.partialorder %v90, -1e+29
  %v99 = vsel %vm97, 0.0, %v95
  %v100 = vsel %vm98, 0.0, %v96
  %v101 = vmax.f32 %v84, %v99
  %v102 = vmax.f32 %v85, %v100
  %s103 = scalar_lea.vmem %s0, 32
  %v104 = vld [vmem:[%s103] sm:$0xf]
  %v105 = vld [vmem:[%s103 + $0x4] sm:$0xf]
  %v106 = vunpack.c.l.bf16 %v104
  %v107 = vunpack.c.l.bf16 %v105
  %v108 = vmul.f32 %v106, %v25
  %v109 = vmul.f32 %v107, %v30
  %v110 = vadd.f32 %v108, %v37
  %v111 = vadd.f32 %v109, %v42
  %v112 = vmax.f32 %v110, 0.0
  %v113 = vmax.f32 %v111, 0.0
  %vm114 = vcmp.le.f32.partialorder %v106, -1e+29
  %vm115 = vcmp.le.f32.partialorder %v107, -1e+29
  %v116 = vsel %vm114, 0.0, %v112
  %v117 = vsel %vm115, 0.0, %v113
  %v118 = vmax.f32 %v101, %v116
  %v119 = vmax.f32 %v102, %v117
  %s120 = scalar_lea.vmem %s0, 40
  %v121 = vld [vmem:[%s120] sm:$0xf]
  %v122 = vld [vmem:[%s120 + $0x4] sm:$0xf]
  %v123 = vunpack.c.l.bf16 %v121
  %v124 = vunpack.c.l.bf16 %v122
  %v125 = vmul.f32 %v123, %v25
  %v126 = vmul.f32 %v124, %v30
  %v127 = vadd.f32 %v125, %v37
  %v128 = vadd.f32 %v126, %v42
  %v129 = vmax.f32 %v127, 0.0
  %v130 = vmax.f32 %v128, 0.0
  %vm131 = vcmp.le.f32.partialorder %v123, -1e+29
  %vm132 = vcmp.le.f32.partialorder %v124, -1e+29
  %v133 = vsel %vm131, 0.0, %v129
  %v134 = vsel %vm132, 0.0, %v130
  %v135 = vmax.f32 %v118, %v133
  %v136 = vmax.f32 %v119, %v134
  %s137 = scalar_lea.vmem %s0, 48
  %v138 = vld [vmem:[%s137] sm:$0xf]
  %v139 = vld [vmem:[%s137 + $0x4] sm:$0xf]
  %v140 = vunpack.c.l.bf16 %v138
  %v141 = vunpack.c.l.bf16 %v139
  %v142 = vmul.f32 %v140, %v25
  %v143 = vmul.f32 %v141, %v30
  %v144 = vadd.f32 %v142, %v37
  %v145 = vadd.f32 %v143, %v42
  %v146 = vmax.f32 %v144, 0.0
  %v147 = vmax.f32 %v145, 0.0
  %vm148 = vcmp.le.f32.partialorder %v140, -1e+29
  %vm149 = vcmp.le.f32.partialorder %v141, -1e+29
  %v150 = vsel %vm148, 0.0, %v146
  %v151 = vsel %vm149, 0.0, %v147
  %v152 = vmax.f32 %v135, %v150
  %v153 = vmax.f32 %v136, %v151
  %s154 = scalar_lea.vmem %s0, 56
  %v155 = vld [vmem:[%s154] sm:$0xf]
  %v156 = vld [vmem:[%s154 + $0x4] sm:$0xf]
  %v157 = vunpack.c.l.bf16 %v155
  %v158 = vunpack.c.l.bf16 %v156
  %v159 = vmul.f32 %v157, %v25
  %v160 = vmul.f32 %v158, %v30
  %v161 = vadd.f32 %v159, %v37
  %v162 = vadd.f32 %v160, %v42
  %v163 = vmax.f32 %v161, 0.0
  %v164 = vmax.f32 %v162, 0.0
  %vm165 = vcmp.le.f32.partialorder %v157, -1e+29
  %vm166 = vcmp.le.f32.partialorder %v158, -1e+29
  %v167 = vsel %vm165, 0.0, %v163
  %v168 = vsel %vm166, 0.0, %v164
  %v169 = vmax.f32 %v152, %v167
  %v170 = vmax.f32 %v153, %v168
  %s171 = scalar_lea.vmem %s0, 64
  %v172 = vld [vmem:[%s171] sm:$0xf]
  %v173 = vld [vmem:[%s171 + $0x4] sm:$0xf]
  %v174 = vunpack.c.l.bf16 %v172
  %v175 = vunpack.c.l.bf16 %v173
  %v176 = vmul.f32 %v174, %v25
  %v177 = vmul.f32 %v175, %v30
  %v178 = vadd.f32 %v176, %v37
  %v179 = vadd.f32 %v177, %v42
  %v180 = vmax.f32 %v178, 0.0
  %v181 = vmax.f32 %v179, 0.0
  %vm182 = vcmp.le.f32.partialorder %v174, -1e+29
  %vm183 = vcmp.le.f32.partialorder %v175, -1e+29
  %v184 = vsel %vm182, 0.0, %v180
  %v185 = vsel %vm183, 0.0, %v181
  %v186 = vmax.f32 %v169, %v184
  %v187 = vmax.f32 %v170, %v185
  %v188 = vpack.c.bf16 %v187, %v186
  %v190 = vunpack.c.l.b16 %v188
  %v191 = vunpack.c.h.b16 %v188
  %v192 = vpack.c.b16 %v190, %v190
  %v193 = vpack.c.b16 %v191, %v191
  %vm196 = vcmask 519168
  %197 = vst.msk [vmem:[%s3] sm:$0xf] %vm196, %v192
  %198 = vst.msk [vmem:[%s3 + $0x4] sm:$0xf] %vm196, %v193
  // Predicated region
  $region14: #{osnet_forward.12} parent=0 // pred_check
    _
  $region15: #{osnet_forward.12} parent=0 // pred_check_branch
    %200 = sbr.rel (0) target = $region17
  $region16: #{osnet_forward.12} parent=0 // pred_region
    _
  $region17: #{osnet_forward.12} parent=0 // pred_fallthru
    _
  // Predicated region
  $region18: #{osnet_forward.12} parent=0 // pred_check
    _
  $region19: #{osnet_forward.12} parent=0 // pred_check_branch
    %202 = sbr.rel (0) target = $region21
  $region20: #{osnet_forward.12} parent=0 // pred_region
    _
  $region21: #{osnet_forward.12} parent=0 // pred_fallthru
    _

// kernel: osnet_forward.14
$region0: #{osnet_forward.14}
  #allocation0 [shape = 'u32[]', space=smem, size = 0x4, offset = 0x4, fixed_abs, tag = 'smem constant byte address 0x4 - core index']
  #allocation1 [shape = 'u32[144,128]{1,0:T(1,128)}', space=vmem, size = 0x12000, scoped, tag = 'internal scratch']
  %s0 = inlined_call_operand.vmem [shape: f32[16,16], index: 0, kind: input, shape index: {}]
  %s1 = inlined_call_operand.vmem [shape: bf16[1,16,128], index: 1, kind: input, shape index: {}]
  %s2 = inlined_call_operand.vmem [shape: f32[1,16,1], index: 2, kind: input, shape index: {}]
  %s3 = inlined_call_operand.vmem [shape: f32[1,16,1], index: 3, kind: input, shape index: {}]
  %s4 = inlined_call_operand.vmem [shape: bf16[1,16,128], index: 4, kind: output, shape index: {0}]
  %s5 = inlined_call_operand.vmem [shape: f32[1,1,16,128], index: 5, kind: output, shape index: {1}]
  %s6 = inlined_call_operand.vmem [shape: f32[1,1,16,128], index: 6, kind: output, shape index: {2}]
  %7 = xla_tuple %s4, %s5, %s6
  %s8 = sld [smem:[#allocation0]]
  $region46: #{osnet_forward.14} parent=0
    _
  %s10 = ssub.s32 1, %s8
  %s11 = scalar_select 0, %s10, %s8
  // Predicated region
  $region2: #{osnet_forward.14} parent=0 // pred_check
    _
  $region3: #{osnet_forward.14} parent=0 // pred_check_branch
    %13 = sbr.rel (0) target = $region5
  $region4: #{osnet_forward.14} parent=0 // pred_region
    _
  $region5: #{osnet_forward.14} parent=0 // pred_fallthru
    _
  // Predicated region
  $region6: #{osnet_forward.14} parent=0 // pred_check
    _
  $region7: #{osnet_forward.14} parent=0 // pred_check_branch
    %15 = sbr.rel (0) target = $region9
  $region8: #{osnet_forward.14} parent=0 // pred_region
    %s16 = sadd.s32 0, 0
    %p17 = scmp.lt.s32.totalorder %s16, 0
    %s18 = scalar_select %p17, %s16, 0
    %s19 = smul.addr %s18, 4
    %s20 = scalar_lea.vmem %s1, %s19
    %s21 = sadd.s32 0, 0
  $region9: #{osnet_forward.14} parent=0 // pred_fallthru
    _
  // Predicated region
  $region10: #{osnet_forward.14} parent=0 // pred_check
    _
  $region11: #{osnet_forward.14} parent=0 // pred_check_branch
    %23 = sbr.rel (0) target = $region13
  $region12: #{osnet_forward.14} parent=0 // pred_region
    _
  $region13: #{osnet_forward.14} parent=0 // pred_fallthru
    _
  // Predicated region
  $region14: #{osnet_forward.14} parent=0 // pred_check
    _
  $region15: #{osnet_forward.14} parent=0 // pred_check_branch
    %25 = sbr.rel (0) target = $region17
  $region16: #{osnet_forward.14} parent=0 // pred_region
    _
  $region17: #{osnet_forward.14} parent=0 // pred_fallthru
    _
  %s26 = sadd.s32 0, 0
  %p27 = scmp.lt.s32.totalorder %s26, 0
  %s28 = scalar_select %p27, %s26, 0
  %s29 = smul.addr %s28, 4
  %s30 = scalar_lea.vmem %s1, %s29
  %s31 = sadd.s32 0, 0
  %p32 = scmp.lt.s32.totalorder %s31, 0
  %s33 = scalar_select %p32, %s31, 0
  %s34 = smul.addr %s33, 4
  %s35 = scalar_lea.vmem %s4, %s34
  %s36 = sadd.s32 0, 0
  %p37 = scmp.lt.s32.totalorder %s36, 0
  %s38 = scalar_select %p37, %s36, 0
  %s39 = smul.addr %s38, 4
  %s40 = scalar_lea.vmem %s1, %s39
  %s41 = sadd.s32 0, 0
  %s42 = sadd.s32 0, 0
  %p43 = scmp.lt.s32.totalorder %s42, 0
  %s44 = scalar_select %p43, %s42, 0
  %s45 = smul.addr %s44, 4
  %s46 = scalar_lea.vmem %s4, %s45
  %s47 = sadd.s32 0, 0
  %v48 = vld [vmem:[%s40] sm:$0xf]
  %v49 = vld [vmem:[%s40 + $0x4] sm:$0xf]
  %v50 = vunpack.c.l.bf16 %v48
  %v51 = vunpack.c.l.bf16 %v49
  %v52 = vld [vmem:[%s2] sm:$0xff]
  %v53 = vld [vmem:[%s2 + $0x8] sm:$0xff]
  %55 = vset.pattern.permute.xlu0 0
  %56 = vperm.xlu0 %55, %v52
  %v57 = vpop.permute.xlu0 %56
  %60 = vset.pattern.permute.xlu0 0
  %61 = vperm.xlu0 %60, %v53
  %v62 = vpop.permute.xlu0 %61
  %v64 = vmul.f32 %v50, %v57
  %v65 = vmul.f32 %v51, %v62
  %v66 = vld [vmem:[%s3] sm:$0xff]
  %v67 = vld [vmem:[%s3 + $0x8] sm:$0xff]
  %69 = vset.pattern.permute.xlu0 0
  %70 = vperm.xlu0 %69, %v66
  %v71 = vpop.permute.xlu0 %70
  %74 = vset.pattern.permute.xlu0 0
  %75 = vperm.xlu0 %74, %v67
  %v76 = vpop.permute.xlu0 %75
  %v78 = vadd.f32 %v64, %v71
  %v79 = vadd.f32 %v65, %v76
  %v80 = vmax.f32 %v78, 0.0
  %v81 = vmax.f32 %v79, 0.0
  %v82 = vld [vmem:[%s0] sm:$0xff]
  %v83 = vld [vmem:[%s0 + $0x8] sm:$0xff]
  %vm84 = vcmask 130048
  %v86 = vsel %vm84, %v82, 0
  %v89 = vsel %vm84, %v83, 0
  %91 = vmatprep.subr.mxu0 0.0
  %92 = vmatpush1.msra.mxu0 %v80
  %93 = vmatprep.subr.mxu0 0.0
  %94 = vmatpush1.msra.mxu0 %v81
  %95 = vmatprep.subr.mxu0 0.0
  %96 = vmatpush1.msra.mxu0 0.0
  %97 = vmatprep.subr.mxu0 0.0
  %98 = vmatpush1.msra.mxu0 0.0
  %99 = vmatprep.subr.mxu0 0.0
  %100 = vmatpush1.msra.mxu0 0.0
  %101 = vmatprep.subr.mxu0 0.0
  %102 = vmatpush1.msra.mxu0 0.0
  %103 = vmatprep.subr.mxu0 0.0
  %104 = vmatpush1.msra.mxu0 0.0
  %105 = vmatprep.subr.mxu0 0.0
  %106 = vmatpush1.msra.mxu0 0.0
  %107 = vmatprep.subr.mxu0 0.0
  %108 = vmatpush1.msra.mxu0 0.0
  %109 = vmatprep.subr.mxu0 0.0
  %110 = vmatpush1.msra.mxu0 0.0
  %111 = vmatprep.subr.mxu0 0.0
  %112 = vmatpush1.msra.mxu0 0.0
  %113 = vmatprep.subr.mxu0 0.0
  %114 = vmatpush1.msra.mxu0 0.0
  %115 = vmatprep.subr.mxu0 0.0
  %116 = vmatpush1.msra.mxu0 0.0
  %117 = vmatprep.subr.mxu0 0.0
  %118 = vmatpush1.msra.mxu0 0.0
  %119 = vmatprep.subr.mxu0 0.0
  %120 = vmatpush1.msra.mxu0 0.0
  %121 = vmatprep.subr.mxu0 0.0
  %122 = vmatpush1.msra.mxu0 0.0
  %123 = vmatprep.subr.mxu0 0.0
  %124 = vmatpush1.msra.mxu0 0.0
  %125 = vmatprep.subr.mxu0 0.0
  %126 = vmatpush1.msra.mxu0 0.0
  %127 = vmatprep.subr.mxu0 0.0
  %128 = vmatpush1.msra.mxu0 0.0
  %129 = vmatprep.subr.mxu0 0.0
  %130 = vmatpush1.msra.mxu0 0.0
  %131 = vmatprep.subr.mxu0 0.0
  %132 = vmatpush1.msra.mxu0 0.0
  %133 = vmatprep.subr.mxu0 0.0
  %134 = vmatpush1.msra.mxu0 0.0
  %135 = vmatprep.subr.mxu0 0.0
  %136 = vmatpush1.msra.mxu0 0.0
  %137 = vmatprep.subr.mxu0 0.0
  %138 = vmatpush1.msra.mxu0 0.0
  %139 = vmatprep.subr.mxu0 0.0
  %140 = vmatpush1.msra.mxu0 0.0
  %141 = vmatprep.subr.mxu0 0.0
  %142 = vmatpush1.msra.mxu0 0.0
  %143 = vmatprep.subr.mxu0 0.0
  %144 = vmatpush1.msra.mxu0 0.0
  %145 = vmatprep.subr.mxu0 0.0
  %146 = vmatpush1.msra.mxu0 0.0
  %147 = vmatprep.subr.mxu0 0.0
  %148 = vmatpush1.msra.mxu0 0.0
  %149 = vmatprep.subr.mxu0 0.0
  %150 = vmatpush1.msra.mxu0 0.0
  %151 = vmatprep.subr.mxu0 0.0
  %152 = vmatpush1.msra.mxu0 0.0
  %153 = vmatprep.subr.mxu0 0.0
  %154 = vmatpush1.msra.mxu0 0.0
  %155 = vmatprep.mubr.f32.mxu0 0.0
  %156 = vmatmul.mubr.f32.gmra.mrb[0].mxu0 %v86
  %v157 = vpop.f32.mrb[0].mxu0
  %v158 = vadd.f32 0.0, %v157
  %v159 = vpop.f32.mrb[0].mxu0
  %160 = vmatprep.mubr.f32.mxu0 0.0
  %161 = vmatmul.mubr.f32.gmra.mrb[0].mxu0 %v89
  %v162 = vpop.f32.mrb[0].mxu0
  %v163 = vadd.f32 0.0, %v162
  %v164 = vpop.f32.mrb[0].mxu0
  %165 = vdwg.mxu0
  %v166 = vpack.c.bf16 %v163, %v158
  %v168 = vunpack.c.l.b16 %v166
  %v169 = vunpack.c.h.b16 %v166
  %v170 = vpack.c.b16 %v168, %v168
  %v171 = vpack.c.b16 %v169, %v169
  %174 = vst [vmem:[%s46] sm:$0xf] %v170
  %175 = vst [vmem:[%s46 + $0x4] sm:$0xf] %v171
  %p176 = scmp.eq.s32.totalorder 0, 0
  // Predicated region
  $region18: #{osnet_forward.14} parent=0 // pred_check
    %p177 = pneg %p176
  $region19: #{osnet_forward.14} parent=0 // pred_check_branch
    %179 = sbr.rel (%p177) target = $region21
  $region20: #{osnet_forward.14} parent=0 // pred_region
    %180 = vst [vmem:[%s5] sm:$0xff] 0.0
    %181 = vst [vmem:[%s5 + $0x8] sm:$0xff] 0.0
    %182 = vst [vmem:[%s6] sm:$0xff] 0.0
    %183 = vst [vmem:[%s6 + $0x8] sm:$0xff] 0.0
  $region21: #{osnet_forward.14} parent=0 // pred_fallthru
    _
  %v184 = vld [vmem:[%s5] sm:$0xff]
  %v185 = vld [vmem:[%s5 + $0x8] sm:$0xff]
  %186 = vadd.xlane.f32.xlu0 %v158
  %v187 = vpop.xlane.xlu0 %186
  %188 = vadd.xlane.f32.xlu0 %v163
  %v189 = vpop.xlane.xlu0 %188
  %v190 = vadd.f32 %v184, %v187
  %v191 = vadd.f32 %v185, %v189
  %192 = vst [vmem:[%s5] sm:$0xff] %v190
  %193 = vst [vmem:[%s5 + $0x8] sm:$0xff] %v191
  %v194 = vld [vmem:[%s6] sm:$0xff]
  %v195 = vld [vmem:[%s6 + $0x8] sm:$0xff]
  %v196 = vmul.f32 %v158, %v158
  %v197 = vmul.f32 %v163, %v163
  %198 = vadd.xlane.f32.xlu0 %v196
  %v199 = vpop.xlane.xlu0 %198
  %200 = vadd.xlane.f32.xlu0 %v197
  %v201 = vpop.xlane.xlu0 %200
  %v202 = vadd.f32 %v194, %v199
  %v203 = vadd.f32 %v195, %v201
  %204 = vst [vmem:[%s6] sm:$0xff] %v202
  %205 = vst [vmem:[%s6 + $0x8] sm:$0xff] %v203
  %s206 = sadd.s32 0, 0
  %p207 = scmp.lt.s32.totalorder %s206, 0
  %s208 = scalar_select %p207, %s206, 0
  %s209 = smul.addr %s208, 4
  %s210 = scalar_lea.vmem %s4, %s209
  // Predicated region
  $region22: #{osnet_forward.14} parent=0 // pred_check
    _
  $region23: #{osnet_forward.14} parent=0 // pred_check_branch
    %212 = sbr.rel (0) target = $region25
  $region24: #{osnet_forward.14} parent=0 // pred_region
    %s213 = sadd.s32 0, 0
  $region25: #{osnet_forward.14} parent=0 // pred_fallthru
    _
  // Predicated region
  $region26: #{osnet_forward.14} parent=0 // pred_check
    _
  $region27: #{osnet_forward.14} parent=0 // pred_check_branch
    %215 = sbr.rel (0) target = $region29
  $region28: #{osnet_forward.14} parent=0 // pred_region
    _
  $region29: #{osnet_forward.14} parent=0 // pred_fallthru
    _
  // Predicated region
  $region30: #{osnet_forward.14} parent=0 // pred_check
    _
  $region31: #{osnet_forward.14} parent=0 // pred_check_branch
    %217 = sbr.rel (0) target = $region33
  $region32: #{osnet_forward.14} parent=0 // pred_region
    _
  $region33: #{osnet_forward.14} parent=0 // pred_fallthru
    _
  // Predicated region
  $region34: #{osnet_forward.14} parent=0 // pred_check
    _
  $region35: #{osnet_forward.14} parent=0 // pred_check_branch
    %219 = sbr.rel (0) target = $region37
  $region36: #{osnet_forward.14} parent=0 // pred_region
    %s220 = sadd.s32 0, 0
    %p221 = scmp.lt.s32.totalorder %s220, 0
    %s222 = scalar_select %p221, %s220, 0
    %s223 = smul.addr %s222, 4
    %s224 = scalar_lea.vmem %s4, %s223
  $region37: #{osnet_forward.14} parent=0 // pred_fallthru
    _
  // Predicated region
  $region38: #{osnet_forward.14} parent=0 // pred_check
    _
  $region39: #{osnet_forward.14} parent=0 // pred_check_branch
    %226 = sbr.rel (0) target = $region41
  $region40: #{osnet_forward.14} parent=0 // pred_region
    _
  $region41: #{osnet_forward.14} parent=0 // pred_fallthru
    _
  // Predicated region
  $region42: #{osnet_forward.14} parent=0 // pred_check
    _
  $region43: #{osnet_forward.14} parent=0 // pred_check_branch
    %228 = sbr.rel (0) target = $region45
  $region44: #{osnet_forward.14} parent=0 // pred_region
    _
  $region45: #{osnet_forward.14} parent=0 // pred_fallthru
    _

// kernel: osnet_forward.15
$region0: #{osnet_forward.15}
  #allocation0 [shape = 'u32[]', space=smem, size = 0x4, offset = 0x4, fixed_abs, tag = 'smem constant byte address 0x4 - core index']
  #allocation1 [shape = 'u32[144,128]{1,0:T(1,128)}', space=vmem, size = 0x12000, scoped, tag = 'internal scratch']
  %s0 = inlined_call_operand.vmem [shape: bf16[4,16,32], index: 0, kind: input, shape index: {}]
  %s1 = inlined_call_operand.vmem [shape: f32[16,1], index: 1, kind: input, shape index: {}]
  %s2 = inlined_call_operand.vmem [shape: f32[16,1], index: 2, kind: input, shape index: {}]
  %s3 = inlined_call_operand.vmem [shape: bf16[16,32], index: 3, kind: output, shape index: {}]
  %s4 = sld [smem:[#allocation0]]
  $region22: #{osnet_forward.15} parent=0
    _
  %s6 = ssub.s32 1, %s4
  %s7 = scalar_select 0, %s6, %s4
  // Predicated region
  $region2: #{osnet_forward.15} parent=0 // pred_check
    _
  $region3: #{osnet_forward.15} parent=0 // pred_check_branch
    %9 = sbr.rel (0) target = $region5
  $region4: #{osnet_forward.15} parent=0 // pred_region
    _
  $region5: #{osnet_forward.15} parent=0 // pred_fallthru
    _
  // Predicated region
  $region6: #{osnet_forward.15} parent=0 // pred_check
    _
  $region7: #{osnet_forward.15} parent=0 // pred_check_branch
    %11 = sbr.rel (0) target = $region9
  $region8: #{osnet_forward.15} parent=0 // pred_region
    _
  $region9: #{osnet_forward.15} parent=0 // pred_fallthru
    _
  // Predicated region
  $region10: #{osnet_forward.15} parent=0 // pred_check
    _
  $region11: #{osnet_forward.15} parent=0 // pred_check_branch
    %13 = sbr.rel (0) target = $region13
  $region12: #{osnet_forward.15} parent=0 // pred_region
    _
  $region13: #{osnet_forward.15} parent=0 // pred_fallthru
    _
  %v14 = vld [vmem:[%s1] sm:$0xff]
  %v15 = vld [vmem:[%s1 + $0x8] sm:$0xff]
  %v16 = vld [vmem:[%s2] sm:$0xff]
  %v17 = vld [vmem:[%s2 + $0x8] sm:$0xff]
  %v18 = vld [vmem:[%s0] sm:$0xf]
  %v19 = vld [vmem:[%s0 + $0x4] sm:$0xf]
  %v20 = vunpack.c.l.bf16 %v18
  %v21 = vunpack.c.l.bf16 %v19
  %23 = vset.pattern.permute.xlu0 0
  %24 = vperm.xlu0 %23, %v14
  %v25 = vpop.permute.xlu0 %24
  %28 = vset.pattern.permute.xlu0 0
  %29 = vperm.xlu0 %28, %v15
  %v30 = vpop.permute.xlu0 %29
  %v32 = vmul.f32 %v20, %v25
  %v33 = vmul.f32 %v21, %v30
  %35 = vset.pattern.permute.xlu0 0
  %36 = vperm.xlu0 %35, %v16
  %v37 = vpop.permute.xlu0 %36
  %40 = vset.pattern.permute.xlu0 0
  %41 = vperm.xlu0 %40, %v17
  %v42 = vpop.permute.xlu0 %41
  %v44 = vadd.f32 %v32, %v37
  %v45 = vadd.f32 %v33, %v42
  %v46 = vmax.f32 %v44, 0.0
  %v47 = vmax.f32 %v45, 0.0
  %s48 = scalar_lea.vmem %s0, 8
  %v49 = vld [vmem:[%s48] sm:$0xf]
  %v50 = vld [vmem:[%s48 + $0x4] sm:$0xf]
  %v51 = vunpack.c.l.bf16 %v49
  %v52 = vunpack.c.l.bf16 %v50
  %v53 = vmul.f32 %v51, %v25
  %v54 = vmul.f32 %v52, %v30
  %v55 = vadd.f32 %v53, %v37
  %v56 = vadd.f32 %v54, %v42
  %v57 = vmax.f32 %v55, 0.0
  %v58 = vmax.f32 %v56, 0.0
  %v59 = vadd.f32 %v46, %v57
  %v60 = vadd.f32 %v47, %v58
  %s61 = scalar_lea.vmem %s0, 16
  %v62 = vld [vmem:[%s61] sm:$0xf]
  %v63 = vld [vmem:[%s61 + $0x4] sm:$0xf]
  %v64 = vunpack.c.l.bf16 %v62
  %v65 = vunpack.c.l.bf16 %v63
  %v66 = vmul.f32 %v64, %v25
  %v67 = vmul.f32 %v65, %v30
  %v68 = vadd.f32 %v66, %v37
  %v69 = vadd.f32 %v67, %v42
  %v70 = vmax.f32 %v68, 0.0
  %v71 = vmax.f32 %v69, 0.0
  %v72 = vadd.f32 %v59, %v70
  %v73 = vadd.f32 %v60, %v71
  %s74 = scalar_lea.vmem %s0, 24
  %v75 = vld [vmem:[%s74] sm:$0xf]
  %v76 = vld [vmem:[%s74 + $0x4] sm:$0xf]
  %v77 = vunpack.c.l.bf16 %v75
  %v78 = vunpack.c.l.bf16 %v76
  %v79 = vmul.f32 %v77, %v25
  %v80 = vmul.f32 %v78, %v30
  %v81 = vadd.f32 %v79, %v37
  %v82 = vadd.f32 %v80, %v42
  %v83 = vmax.f32 %v81, 0.0
  %v84 = vmax.f32 %v82, 0.0
  %v85 = vadd.f32 %v72, %v83
  %v86 = vadd.f32 %v73, %v84
  %v87 = vmul.f32 %v85, 0.25
  %v88 = vmul.f32 %v86, 0.25
  %v89 = vpack.c.bf16 %v88, %v87
  %v91 = vunpack.c.l.b16 %v89
  %v92 = vunpack.c.h.b16 %v89
  %v93 = vpack.c.b16 %v91, %v91
  %v94 = vpack.c.b16 %v92, %v92
  %vm97 = vcmask 257024
  %98 = vst.msk [vmem:[%s3] sm:$0xf] %vm97, %v93
  %99 = vst.msk [vmem:[%s3 + $0x4] sm:$0xf] %vm97, %v94
  // Predicated region
  $region14: #{osnet_forward.15} parent=0 // pred_check
    _
  $region15: #{osnet_forward.15} parent=0 // pred_check_branch
    %101 = sbr.rel (0) target = $region17
  $region16: #{osnet_forward.15} parent=0 // pred_region
    _
  $region17: #{osnet_forward.15} parent=0 // pred_fallthru
    _
  // Predicated region
  $region18: #{osnet_forward.15} parent=0 // pred_check
    _
  $region19: #{osnet_forward.15} parent=0 // pred_check_branch
    %103 = sbr.rel (0) target = $region21
  $region20: #{osnet_forward.15} parent=0 // pred_region
    _
  $region21: #{osnet_forward.15} parent=0 // pred_fallthru
    _

// kernel: osnet_forward.16
$region0: #{osnet_forward.16}
  #allocation0 [shape = 'u32[]', space=smem, size = 0x4, offset = 0x4, fixed_abs, tag = 'smem constant byte address 0x4 - core index']
  #allocation1 [shape = 'u32[144,128]{1,0:T(1,128)}', space=vmem, size = 0x12000, scoped, tag = 'internal scratch']
  %s0 = inlined_call_operand.vmem [shape: f32[24,16], index: 0, kind: input, shape index: {}]
  %s1 = inlined_call_operand.vmem [shape: bf16[1,16,32], index: 1, kind: input, shape index: {}]
  %s2 = inlined_call_operand.vmem [shape: bf16[1,24,32], index: 2, kind: output, shape index: {0}]
  %s3 = inlined_call_operand.vmem [shape: f32[1,1,24,128], index: 3, kind: output, shape index: {1}]
  %s4 = inlined_call_operand.vmem [shape: f32[1,1,24,128], index: 4, kind: output, shape index: {2}]
  %5 = xla_tuple %s2, %s3, %s4
  %s6 = sld [smem:[#allocation0]]
  $region38: #{osnet_forward.16} parent=0
    _
  %s8 = ssub.s32 1, %s6
  %s9 = scalar_select 0, %s8, %s6
  // Predicated region
  $region2: #{osnet_forward.16} parent=0 // pred_check
    _
  $region3: #{osnet_forward.16} parent=0 // pred_check_branch
    %11 = sbr.rel (0) target = $region5
  $region4: #{osnet_forward.16} parent=0 // pred_region
    _
  $region5: #{osnet_forward.16} parent=0 // pred_fallthru
    _
  // Predicated region
  $region6: #{osnet_forward.16} parent=0 // pred_check
    _
  $region7: #{osnet_forward.16} parent=0 // pred_check_branch
    %13 = sbr.rel (0) target = $region9
  $region8: #{osnet_forward.16} parent=0 // pred_region
    %s14 = sadd.s32 0, 0
    %p15 = scmp.lt.s32.totalorder %s14, 0
    %s16 = scalar_select %p15, %s14, 0
    %s17 = smul.addr %s16, 4
    %s18 = scalar_lea.vmem %s1, %s17
    %s19 = sadd.s32 0, 0
  $region9: #{osnet_forward.16} parent=0 // pred_fallthru
    _
  %s20 = sadd.s32 0, 0
  %p21 = scmp.lt.s32.totalorder %s20, 0
  %s22 = scalar_select %p21, %s20, 0
  %s23 = smul.addr %s22, 4
  %s24 = scalar_lea.vmem %s1, %s23
  %s25 = sadd.s32 0, 0
  %p26 = scmp.lt.s32.totalorder %s25, 0
  %s27 = scalar_select %p26, %s25, 0
  %s28 = smul.addr %s27, 4
  %s29 = scalar_lea.vmem %s2, %s28
  %s30 = sadd.s32 0, 0
  %p31 = scmp.lt.s32.totalorder %s30, 0
  %s32 = scalar_select %p31, %s30, 0
  %s33 = smul.addr %s32, 4
  %s34 = scalar_lea.vmem %s1, %s33
  %s35 = sadd.s32 0, 0
  %s36 = sadd.s32 0, 0
  %p37 = scmp.lt.s32.totalorder %s36, 0
  %s38 = scalar_select %p37, %s36, 0
  %s39 = smul.addr %s38, 4
  %s40 = scalar_lea.vmem %s2, %s39
  %s41 = sadd.s32 0, 0
  %v42 = vld [vmem:[%s34] sm:$0xf]
  %v43 = vld [vmem:[%s34 + $0x4] sm:$0xf]
  %v44 = vunpack.c.l.bf16 %v42
  %v45 = vunpack.c.l.bf16 %v43
  %v46 = vld [vmem:[%s0] sm:$0xff]
  %v47 = vld [vmem:[%s0 + $0x8] sm:$0xff]
  %v48 = vld [vmem:[%s0 + $0x10] sm:$0xff]
  %vm49 = vcmask 130048
  %v51 = vsel %vm49, %v46, 0
  %v54 = vsel %vm49, %v47, 0
  %v57 = vsel %vm49, %v48, 0
  %59 = vmatprep.subr.mxu0 0.0
  %60 = vmatpush1.msra.mxu0 %v44
  %61 = vmatprep.subr.mxu0 0.0
  %62 = vmatpush1.msra.mxu0 %v45
  %63 = vmatprep.subr.mxu0 0.0
  %64 = vmatpush1.msra.mxu0 0.0
  %65 = vmatprep.subr.mxu0 0.0
  %66 = vmatpush1.msra.mxu0 0.0
  %67 = vmatprep.subr.mxu0 0.0
  %68 = vmatpush1.msra.mxu0 0.0
  %69 = vmatprep.subr.mxu0 0.0
  %70 = vmatpush1.msra.mxu0 0.0
  %71 = vmatprep.subr.mxu0 0.0
  %72 = vmatpush1.msra.mxu0 0.0
  %73 = vmatprep.subr.mxu0 0.0
  %74 = vmatpush1.msra.mxu0 0.0
  %75 = vmatprep.subr.mxu0 0.0
  %76 = vmatpush1.msra.mxu0 0.0
  %77 = vmatprep.subr.mxu0 0.0
  %78 = vmatpush1.msra.mxu0 0.0
  %79 = vmatprep.subr.mxu0 0.0
  %80 = vmatpush1.msra.mxu0 0.0
  %81 = vmatprep.subr.mxu0 0.0
  %82 = vmatpush1.msra.mxu0 0.0
  %83 = vmatprep.subr.mxu0 0.0
  %84 = vmatpush1.msra.mxu0 0.0
  %85 = vmatprep.subr.mxu0 0.0
  %86 = vmatpush1.msra.mxu0 0.0
  %87 = vmatprep.subr.mxu0 0.0
  %88 = vmatpush1.msra.mxu0 0.0
  %89 = vmatprep.subr.mxu0 0.0
  %90 = vmatpush1.msra.mxu0 0.0
  %91 = vmatprep.subr.mxu0 0.0
  %92 = vmatpush1.msra.mxu0 0.0
  %93 = vmatprep.subr.mxu0 0.0
  %94 = vmatpush1.msra.mxu0 0.0
  %95 = vmatprep.subr.mxu0 0.0
  %96 = vmatpush1.msra.mxu0 0.0
  %97 = vmatprep.subr.mxu0 0.0
  %98 = vmatpush1.msra.mxu0 0.0
  %99 = vmatprep.subr.mxu0 0.0
  %100 = vmatpush1.msra.mxu0 0.0
  %101 = vmatprep.subr.mxu0 0.0
  %102 = vmatpush1.msra.mxu0 0.0
  %103 = vmatprep.subr.mxu0 0.0
  %104 = vmatpush1.msra.mxu0 0.0
  %105 = vmatprep.subr.mxu0 0.0
  %106 = vmatpush1.msra.mxu0 0.0
  %107 = vmatprep.subr.mxu0 0.0
  %108 = vmatpush1.msra.mxu0 0.0
  %109 = vmatprep.subr.mxu0 0.0
  %110 = vmatpush1.msra.mxu0 0.0
  %111 = vmatprep.subr.mxu0 0.0
  %112 = vmatpush1.msra.mxu0 0.0
  %113 = vmatprep.subr.mxu0 0.0
  %114 = vmatpush1.msra.mxu0 0.0
  %115 = vmatprep.subr.mxu0 0.0
  %116 = vmatpush1.msra.mxu0 0.0
  %117 = vmatprep.subr.mxu0 0.0
  %118 = vmatpush1.msra.mxu0 0.0
  %119 = vmatprep.subr.mxu0 0.0
  %120 = vmatpush1.msra.mxu0 0.0
  %121 = vmatprep.subr.mxu0 0.0
  %122 = vmatpush1.msra.mxu0 0.0
  %123 = vmatprep.mubr.f32.mxu0 0.0
  %124 = vmatmul.mubr.f32.gmra.mrb[0].mxu0 %v51
  %v125 = vpop.f32.mrb[0].mxu0
  %v126 = vadd.f32 0.0, %v125
  %v127 = vpop.f32.mrb[0].mxu0
  %128 = vmatprep.mubr.f32.mxu0 0.0
  %129 = vmatmul.mubr.f32.gmra.mrb[0].mxu0 %v54
  %v130 = vpop.f32.mrb[0].mxu0
  %v131 = vadd.f32 0.0, %v130
  %v132 = vpop.f32.mrb[0].mxu0
  %133 = vmatprep.mubr.f32.mxu0 0.0
  %134 = vmatmul.mubr.f32.gmra.mrb[0].mxu0 %v57
  %v135 = vpop.f32.mrb[0].mxu0
  %v136 = vadd.f32 0.0, %v135
  %v137 = vpop.f32.mrb[0].mxu0
  %138 = vdwg.mxu0
  %v139 = vpack.c.bf16 %v131, %v126
  %v140 = vpack.c.bf16 %v136, %v136
  %v143 = vunpack.c.l.b16 %v139
  %v144 = vunpack.c.h.b16 %v139
  %v145 = vunpack.c.l.b16 %v140
  %v146 = vpack.c.b16 %v143, %v143
  %v147 = vpack.c.b16 %v144, %v144
  %v148 = vpack.c.b16 %v145, %v145
  %vm152 = vcmask 257024
  %153 = vst.msk [vmem:[%s40] sm:$0xf] %vm152, %v146
  %154 = vst.msk [vmem:[%s40 + $0x4] sm:$0xf] %vm152, %v147
  %155 = vst.msk [vmem:[%s40 + $0x8] sm:$0xf] %vm152, %v148
  %p156 = scmp.eq.s32.totalorder 0, 0
  // Predicated region
  $region10: #{osnet_forward.16} parent=0 // pred_check
    %p157 = pneg %p156
  $region11: #{osnet_forward.16} parent=0 // pred_check_branch
    %159 = sbr.rel (%p157) target = $region13
  $region12: #{osnet_forward.16} parent=0 // pred_region
    %160 = vst [vmem:[%s3] sm:$0xff] 0.0
    %161 = vst [vmem:[%s3 + $0x8] sm:$0xff] 0.0
    %162 = vst [vmem:[%s3 + $0x10] sm:$0xff] 0.0
    %163 = vst [vmem:[%s4] sm:$0xff] 0.0
    %164 = vst [vmem:[%s4 + $0x8] sm:$0xff] 0.0
    %165 = vst [vmem:[%s4 + $0x10] sm:$0xff] 0.0
  $region13: #{osnet_forward.16} parent=0 // pred_fallthru
    _
  %v166 = vld [vmem:[%s3] sm:$0xff]
  %v167 = vld [vmem:[%s3 + $0x8] sm:$0xff]
  %v168 = vld [vmem:[%s3 + $0x10] sm:$0xff]
  %vm169 = vcmask 261120
  %v170 = vsel %vm169, %v126, 0.0
  %171 = vadd.xlane.f32.xlu0 %v170
  %v172 = vpop.xlane.xlu0 %171
  %v173 = vsel %vm169, %v131, 0.0
  %174 = vadd.xlane.f32.xlu0 %v173
  %v175 = vpop.xlane.xlu0 %174
  %v176 = vsel %vm169, %v136, 0.0
  %177 = vadd.xlane.f32.xlu0 %v176
  %v178 = vpop.xlane.xlu0 %177
  %v179 = vadd.f32 %v166, %v172
  %v180 = vadd.f32 %v167, %v175
  %v181 = vadd.f32 %v168, %v178
  %182 = vst [vmem:[%s3] sm:$0xff] %v179
  %183 = vst [vmem:[%s3 + $0x8] sm:$0xff] %v180
  %184 = vst [vmem:[%s3 + $0x10] sm:$0xff] %v181
  %v185 = vld [vmem:[%s4] sm:$0xff]
  %v186 = vld [vmem:[%s4 + $0x8] sm:$0xff]
  %v187 = vld [vmem:[%s4 + $0x10] sm:$0xff]
  %v188 = vmul.f32 %v126, %v126
  %v189 = vmul.f32 %v131, %v131
  %v190 = vmul.f32 %v136, %v136
  %v191 = vsel %vm169, %v188, 0.0
  %192 = vadd.xlane.f32.xlu0 %v191
  %v193 = vpop.xlane.xlu0 %192
  %v194 = vsel %vm169, %v189, 0.0
  %195 = vadd.xlane.f32.xlu0 %v194
  %v196 = vpop.xlane.xlu0 %195
  %v197 = vsel %vm169, %v190, 0.0
  %198 = vadd.xlane.f32.xlu0 %v197
  %v199 = vpop.xlane.xlu0 %198
  %v200 = vadd.f32 %v185, %v193
  %v201 = vadd.f32 %v186, %v196
  %v202 = vadd.f32 %v187, %v199
  %203 = vst [vmem:[%s4] sm:$0xff] %v200
  %204 = vst [vmem:[%s4 + $0x8] sm:$0xff] %v201
  %205 = vst [vmem:[%s4 + $0x10] sm:$0xff] %v202
  %s206 = sadd.s32 0, 0
  %p207 = scmp.lt.s32.totalorder %s206, 0
  %s208 = scalar_select %p207, %s206, 0
  %s209 = smul.addr %s208, 4
  %s210 = scalar_lea.vmem %s2, %s209
  // Predicated region
  $region14: #{osnet_forward.16} parent=0 // pred_check
    _
  $region15: #{osnet_forward.16} parent=0 // pred_check_branch
    %212 = sbr.rel (0) target = $region17
  $region16: #{osnet_forward.16} parent=0 // pred_region
    %s213 = sadd.s32 0, 0
  $region17: #{osnet_forward.16} parent=0 // pred_fallthru
    _
  // Predicated region
  $region18: #{osnet_forward.16} parent=0 // pred_check
    _
  $region19: #{osnet_forward.16} parent=0 // pred_check_branch
    %215 = sbr.rel (0) target = $region21
  $region20: #{osnet_forward.16} parent=0 // pred_region
    _
  $region21: #{osnet_forward.16} parent=0 // pred_fallthru
    _
  // Predicated region
  $region22: #{osnet_forward.16} parent=0 // pred_check
    _
  $region23: #{osnet_forward.16} parent=0 // pred_check_branch
    %217 = sbr.rel (0) target = $region25
  $region24: #{osnet_forward.16} parent=0 // pred_region
    _
  $region25: #{osnet_forward.16} parent=0 // pred_fallthru
    _
  // Predicated region
  $region26: #{osnet_forward.16} parent=0 // pred_check
    _
  $region27: #{osnet_forward.16} parent=0 // pred_check_branch
    %219 = sbr.rel (0) target = $region29
  $region28: #{osnet_forward.16} parent=0 // pred_region
    %s220 = sadd.s32 0, 0
    %p221 = scmp.lt.s32.totalorder %s220, 0
    %s222 = scalar_select %p221, %s220, 0
    %s223 = smul.addr %s222, 4
    %s224 = scalar_lea.vmem %s2, %s223
  $region29: #{osnet_forward.16} parent=0 // pred_fallthru
    _
  // Predicated region
  $region30: #{osnet_forward.16} parent=0 // pred_check
    _
  $region31: #{osnet_forward.16} parent=0 // pred_check_branch
    %226 = sbr.rel (0) target = $region33
  $region32: #{osnet_forward.16} parent=0 // pred_region
    _
  $region33: #{osnet_forward.16} parent=0 // pred_fallthru
    _
  // Predicated region
  $region34: #{osnet_forward.16} parent=0 // pred_check
    _
  $region35: #{osnet_forward.16} parent=0 // pred_check_branch
    %228 = sbr.rel (0) target = $region37
  $region36: #{osnet_forward.16} parent=0 // pred_region
    _
  $region37: #{osnet_forward.16} parent=0 // pred_fallthru
    _

// kernel: osnet_forward.17
$region0: #{osnet_forward.17}
  #allocation0 [shape = 'u32[]', space=smem, size = 0x4, offset = 0x4, fixed_abs, tag = 'smem constant byte address 0x4 - core index']
  #allocation1 [shape = 'u32[144,128]{1,0:T(1,128)}', space=vmem, size = 0x12000, scoped, tag = 'internal scratch']
  %s0 = inlined_call_operand.vmem [shape: f32[24,24], index: 0, kind: input, shape index: {}]
  %s1 = inlined_call_operand.vmem [shape: bf16[1,24,32], index: 1, kind: input, shape index: {}]
  %s2 = inlined_call_operand.vmem [shape: f32[1,24,1], index: 2, kind: input, shape index: {}]
  %s3 = inlined_call_operand.vmem [shape: f32[1,24,1], index: 3, kind: input, shape index: {}]
  %s4 = inlined_call_operand.vmem [shape: bf16[1,24,32], index: 4, kind: output, shape index: {0}]
  %s5 = inlined_call_operand.vmem [shape: f32[1,1,24,128], index: 5, kind: output, shape index: {1}]
  %s6 = inlined_call_operand.vmem [shape: f32[1,1,24,128], index: 6, kind: output, shape index: {2}]
  %7 = xla_tuple %s4, %s5, %s6
  %s8 = sld [smem:[#allocation0]]
  $region46: #{osnet_forward.17} parent=0
    _
  %s10 = ssub.s32 1, %s8
  %s11 = scalar_select 0, %s10, %s8
  // Predicated region
  $region2: #{osnet_forward.17} parent=0 // pred_check
    _
  $region3: #{osnet_forward.17} parent=0 // pred_check_branch
    %13 = sbr.rel (0) target = $region5
  $region4: #{osnet_forward.17} parent=0 // pred_region
    _
  $region5: #{osnet_forward.17} parent=0 // pred_fallthru
    _
  // Predicated region
  $region6: #{osnet_forward.17} parent=0 // pred_check
    _
  $region7: #{osnet_forward.17} parent=0 // pred_check_branch
    %15 = sbr.rel (0) target = $region9
  $region8: #{osnet_forward.17} parent=0 // pred_region
    %s16 = sadd.s32 0, 0
    %p17 = scmp.lt.s32.totalorder %s16, 0
    %s18 = scalar_select %p17, %s16, 0
    %s19 = smul.addr %s18, 4
    %s20 = scalar_lea.vmem %s1, %s19
    %s21 = sadd.s32 0, 0
  $region9: #{osnet_forward.17} parent=0 // pred_fallthru
    _
  // Predicated region
  $region10: #{osnet_forward.17} parent=0 // pred_check
    _
  $region11: #{osnet_forward.17} parent=0 // pred_check_branch
    %23 = sbr.rel (0) target = $region13
  $region12: #{osnet_forward.17} parent=0 // pred_region
    _
  $region13: #{osnet_forward.17} parent=0 // pred_fallthru
    _
  // Predicated region
  $region14: #{osnet_forward.17} parent=0 // pred_check
    _
  $region15: #{osnet_forward.17} parent=0 // pred_check_branch
    %25 = sbr.rel (0) target = $region17
  $region16: #{osnet_forward.17} parent=0 // pred_region
    _
  $region17: #{osnet_forward.17} parent=0 // pred_fallthru
    _
  %s26 = sadd.s32 0, 0
  %p27 = scmp.lt.s32.totalorder %s26, 0
  %s28 = scalar_select %p27, %s26, 0
  %s29 = smul.addr %s28, 4
  %s30 = scalar_lea.vmem %s1, %s29
  %s31 = sadd.s32 0, 0
  %p32 = scmp.lt.s32.totalorder %s31, 0
  %s33 = scalar_select %p32, %s31, 0
  %s34 = smul.addr %s33, 4
  %s35 = scalar_lea.vmem %s4, %s34
  %s36 = sadd.s32 0, 0
  %p37 = scmp.lt.s32.totalorder %s36, 0
  %s38 = scalar_select %p37, %s36, 0
  %s39 = smul.addr %s38, 4
  %s40 = scalar_lea.vmem %s1, %s39
  %s41 = sadd.s32 0, 0
  %s42 = sadd.s32 0, 0
  %p43 = scmp.lt.s32.totalorder %s42, 0
  %s44 = scalar_select %p43, %s42, 0
  %s45 = smul.addr %s44, 4
  %s46 = scalar_lea.vmem %s4, %s45
  %s47 = sadd.s32 0, 0
  %v48 = vld [vmem:[%s40] sm:$0xf]
  %v49 = vld [vmem:[%s40 + $0x4] sm:$0xf]
  %v50 = vld [vmem:[%s40 + $0x8] sm:$0xf]
  %v51 = vunpack.c.l.bf16 %v48
  %v52 = vunpack.c.l.bf16 %v49
  %v53 = vunpack.c.l.bf16 %v50
  %v54 = vld [vmem:[%s2] sm:$0xff]
  %v55 = vld [vmem:[%s2 + $0x8] sm:$0xff]
  %v56 = vld [vmem:[%s2 + $0x10] sm:$0xff]
  %58 = vset.pattern.permute.xlu0 0
  %59 = vperm.xlu0 %58, %v54
  %v60 = vpop.permute.xlu0 %59
  %63 = vset.pattern.permute.xlu0 0
  %64 = vperm.xlu0 %63, %v55
  %v65 = vpop.permute.xlu0 %64
  %68 = vset.pattern.permute.xlu0 0
  %69 = vperm.xlu0 %68, %v56
  %v70 = vpop.permute.xlu0 %69
  %v72 = vmul.f32 %v51, %v60
  %v73 = vmul.f32 %v52, %v65
  %v74 = vmul.f32 %v53, %v70
  %v75 = vld [vmem:[%s3] sm:$0xff]
  %v76 = vld [vmem:[%s3 + $0x8] sm:$0xff]
  %v77 = vld [vmem:[%s3 + $0x10] sm:$0xff]
  %79 = vset.pattern.permute.xlu0 0
  %80 = vperm.xlu0 %79, %v75
  %v81 = vpop.permute.xlu0 %80
  %84 = vset.pattern.permute.xlu0 0
  %85 = vperm.xlu0 %84, %v76
  %v86 = vpop.permute.xlu0 %85
  %89 = vset.pattern.permute.xlu0 0
  %90 = vperm.xlu0 %89, %v77
  %v91 = vpop.permute.xlu0 %90
  %v93 = vadd.f32 %v72, %v81
  %v94 = vadd.f32 %v73, %v86
  %v95 = vadd.f32 %v74, %v91
  %v96 = vmax.f32 %v93, 0.0
  %v97 = vmax.f32 %v94, 0.0
  %v98 = vmax.f32 %v95, 0.0
  %v99 = vld [vmem:[%s0] sm:$0xff]
  %v100 = vld [vmem:[%s0 + $0x8] sm:$0xff]
  %v101 = vld [vmem:[%s0 + $0x10] sm:$0xff]
  %vm102 = vcmask 195584
  %v104 = vsel %vm102, %v99, 0
  %v107 = vsel %vm102, %v100, 0
  %v110 = vsel %vm102, %v101, 0
  %112 = vmatprep.subr.mxu0 0.0
  %113 = vmatpush1.msra.mxu0 %v96
  %114 = vmatprep.subr.mxu0 0.0
  %115 = vmatpush1.msra.mxu0 %v97
  %116 = vmatprep.subr.mxu0 0.0
  %117 = vmatpush1.msra.mxu0 %v98
  %118 = vmatprep.subr.mxu0 0.0
  %119 = vmatpush1.msra.mxu0 0.0
  %120 = vmatprep.subr.mxu0 0.0
  %121 = vmatpush1.msra.mxu0 0.0
  %122 = vmatprep.subr.mxu0 0.0
  %123 = vmatpush1.msra.mxu0 0.0
  %124 = vmatprep.subr.mxu0 0.0
  %125 = vmatpush1.msra.mxu0 0.0
  %126 = vmatprep.subr.mxu0 0.0
  %127 = vmatpush1.msra.mxu0 0.0
  %128 = vmatprep.subr.mxu0 0.0
  %129 = vmatpush1.msra.mxu0 0.0
  %130 = vmatprep.subr.mxu0 0.0
  %131 = vmatpush1.msra.mxu0 0.0
  %132 = vmatprep.subr.mxu0 0.0
  %133 = vmatpush1.msra.mxu0 0.0
  %134 = vmatprep.subr.mxu0 0.0
  %135 = vmatpush1.msra.mxu0 0.0
  %136 = vmatprep.subr.mxu0 0.0
  %137 = vmatpush1.msra.mxu0 0.0
  %138 = vmatprep.subr.mxu0 0.0
  %139 = vmatpush1.msra.mxu0 0.0
  %140 = vmatprep.subr.mxu0 0.0
  %141 = vmatpush1.msra.mxu0 0.0
  %142 = vmatprep.subr.mxu0 0.0
  %143 = vmatpush1.msra.mxu0 0.0
  %144 = vmatprep.subr.mxu0 0.0
  %145 = vmatpush1.msra.mxu0 0.0
  %146 = vmatprep.subr.mxu0 0.0
  %147 = vmatpush1.msra.mxu0 0.0
  %148 = vmatprep.subr.mxu0 0.0
  %149 = vmatpush1.msra.mxu0 0.0
  %150 = vmatprep.subr.mxu0 0.0
  %151 = vmatpush1.msra.mxu0 0.0
  %152 = vmatprep.subr.mxu0 0.0
  %153 = vmatpush1.msra.mxu0 0.0
  %154 = vmatprep.subr.mxu0 0.0
  %155 = vmatpush1.msra.mxu0 0.0
  %156 = vmatprep.subr.mxu0 0.0
  %157 = vmatpush1.msra.mxu0 0.0
  %158 = vmatprep.subr.mxu0 0.0
  %159 = vmatpush1.msra.mxu0 0.0
  %160 = vmatprep.subr.mxu0 0.0
  %161 = vmatpush1.msra.mxu0 0.0
  %162 = vmatprep.subr.mxu0 0.0
  %163 = vmatpush1.msra.mxu0 0.0
  %164 = vmatprep.subr.mxu0 0.0
  %165 = vmatpush1.msra.mxu0 0.0
  %166 = vmatprep.subr.mxu0 0.0
  %167 = vmatpush1.msra.mxu0 0.0
  %168 = vmatprep.subr.mxu0 0.0
  %169 = vmatpush1.msra.mxu0 0.0
  %170 = vmatprep.subr.mxu0 0.0
  %171 = vmatpush1.msra.mxu0 0.0
  %172 = vmatprep.subr.mxu0 0.0
  %173 = vmatpush1.msra.mxu0 0.0
  %174 = vmatprep.subr.mxu0 0.0
  %175 = vmatpush1.msra.mxu0 0.0
  %176 = vmatprep.mubr.f32.mxu0 0.0
  %177 = vmatmul.mubr.f32.gmra.mrb[0].mxu0 %v104
  %v178 = vpop.f32.mrb[0].mxu0
  %v179 = vadd.f32 0.0, %v178
  %v180 = vpop.f32.mrb[0].mxu0
  %181 = vmatprep.mubr.f32.mxu0 0.0
  %182 = vmatmul.mubr.f32.gmra.mrb[0].mxu0 %v107
  %v183 = vpop.f32.mrb[0].mxu0
  %v184 = vadd.f32 0.0, %v183
  %v185 = vpop.f32.mrb[0].mxu0
  %186 = vmatprep.mubr.f32.mxu0 0.0
  %187 = vmatmul.mubr.f32.gmra.mrb[0].mxu0 %v110
  %v188 = vpop.f32.mrb[0].mxu0
  %v189 = vadd.f32 0.0, %v188
  %v190 = vpop.f32.mrb[0].mxu0
  %191 = vdwg.mxu0
  %v192 = vpack.c.bf16 %v184, %v179
  %v193 = vpack.c.bf16 %v189, %v189
  %v196 = vunpack.c.l.b16 %v192
  %v197 = vunpack.c.h.b16 %v192
  %v198 = vunpack.c.l.b16 %v193
  %v199 = vpack.c.b16 %v196, %v196
  %v200 = vpack.c.b16 %v197, %v197
  %v201 = vpack.c.b16 %v198, %v198
  %vm205 = vcmask 257024
  %206 = vst.msk [vmem:[%s46] sm:$0xf] %vm205, %v199
  %207 = vst.msk [vmem:[%s46 + $0x4] sm:$0xf] %vm205, %v200
  %208 = vst.msk [vmem:[%s46 + $0x8] sm:$0xf] %vm205, %v201
  %p209 = scmp.eq.s32.totalorder 0, 0
  // Predicated region
  $region18: #{osnet_forward.17} parent=0 // pred_check
    %p210 = pneg %p209
  $region19: #{osnet_forward.17} parent=0 // pred_check_branch
    %212 = sbr.rel (%p210) target = $region21
  $region20: #{osnet_forward.17} parent=0 // pred_region
    %213 = vst [vmem:[%s5] sm:$0xff] 0.0
    %214 = vst [vmem:[%s5 + $0x8] sm:$0xff] 0.0
    %215 = vst [vmem:[%s5 + $0x10] sm:$0xff] 0.0
    %216 = vst [vmem:[%s6] sm:$0xff] 0.0
    %217 = vst [vmem:[%s6 + $0x8] sm:$0xff] 0.0
    %218 = vst [vmem:[%s6 + $0x10] sm:$0xff] 0.0
  $region21: #{osnet_forward.17} parent=0 // pred_fallthru
    _
  %v219 = vld [vmem:[%s5] sm:$0xff]
  %v220 = vld [vmem:[%s5 + $0x8] sm:$0xff]
  %v221 = vld [vmem:[%s5 + $0x10] sm:$0xff]
  %vm222 = vcmask 261120
  %v223 = vsel %vm222, %v179, 0.0
  %224 = vadd.xlane.f32.xlu0 %v223
  %v225 = vpop.xlane.xlu0 %224
  %v226 = vsel %vm222, %v184, 0.0
  %227 = vadd.xlane.f32.xlu0 %v226
  %v228 = vpop.xlane.xlu0 %227
  %v229 = vsel %vm222, %v189, 0.0
  %230 = vadd.xlane.f32.xlu0 %v229
  %v231 = vpop.xlane.xlu0 %230
  %v232 = vadd.f32 %v219, %v225
  %v233 = vadd.f32 %v220, %v228
  %v234 = vadd.f32 %v221, %v231
  %235 = vst [vmem:[%s5] sm:$0xff] %v232
  %236 = vst [vmem:[%s5 + $0x8] sm:$0xff] %v233
  %237 = vst [vmem:[%s5 + $0x10] sm:$0xff] %v234
  %v238 = vld [vmem:[%s6] sm:$0xff]
  %v239 = vld [vmem:[%s6 + $0x8] sm:$0xff]
  %v240 = vld [vmem:[%s6 + $0x10] sm:$0xff]
  %v241 = vmul.f32 %v179, %v179
  %v242 = vmul.f32 %v184, %v184
  %v243 = vmul.f32 %v189, %v189
  %v244 = vsel %vm222, %v241, 0.0
  %245 = vadd.xlane.f32.xlu0 %v244
  %v246 = vpop.xlane.xlu0 %245
  %v247 = vsel %vm222, %v242, 0.0
  %248 = vadd.xlane.f32.xlu0 %v247
  %v249 = vpop.xlane.xlu0 %248
  %v250 = vsel %vm222, %v243, 0.0
  %251 = vadd.xlane.f32.xlu0 %v250
  %v252 = vpop.xlane.xlu0 %251
  %v253 = vadd.f32 %v238, %v246
  %v254 = vadd.f32 %v239, %v249
  %v255 = vadd.f32 %v240, %v252
  %256 = vst [vmem:[%s6] sm:$0xff] %v253
  %257 = vst [vmem:[%s6 + $0x8] sm:$0xff] %v254
  %258 = vst [vmem:[%s6 + $0x10] sm:$0xff] %v255
  %s259 = sadd.s32 0, 0
  %p260 = scmp.lt.s32.totalorder %s259, 0
  %s261 = scalar_select %p260, %s259, 0
  %s262 = smul.addr %s261, 4
  %s263 = scalar_lea.vmem %s4, %s262
  // Predicated region
  $region22: #{osnet_forward.17} parent=0 // pred_check
    _
  $region23: #{osnet_forward.17} parent=0 // pred_check_branch
    %265 = sbr.rel (0) target = $region25
  $region24: #{osnet_forward.17} parent=0 // pred_region
    %s266 = sadd.s32 0, 0
  $region25: #{osnet_forward.17} parent=0 // pred_fallthru
    _
  // Predicated region
  $region26: #{osnet_forward.17} parent=0 // pred_check
    _
  $region27: #{osnet_forward.17} parent=0 // pred_check_branch
    %268 = sbr.rel (0) target = $region29
  $region28: #{osnet_forward.17} parent=0 // pred_region
    _
  $region29: #{osnet_forward.17} parent=0 // pred_fallthru
    _
  // Predicated region
  $region30: #{osnet_forward.17} parent=0 // pred_check
    _
  $region31: #{osnet_forward.17} parent=0 // pred_check_branch
    %270 = sbr.rel (0) target = $region33
  $region32: #{osnet_forward.17} parent=0 // pred_region
    _
  $region33: #{osnet_forward.17} parent=0 // pred_fallthru
    _
  // Predicated region
  $region34: #{osnet_forward.17} parent=0 // pred_check
    _
  $region35: #{osnet_forward.17} parent=0 // pred_check_branch
    %272 = sbr.rel (0) target = $region37
  $region36: #{osnet_forward.17} parent=0 // pred_region
    %s273 = sadd.s32 0, 0
    %p274 = scmp.lt.s32.totalorder %s273, 0
    %s275 = scalar_select %p274, %s273, 0
    %s276 = smul.addr %s275, 4
    %s277 = scalar_lea.vmem %s4, %s276
  $region37: #{osnet_forward.17} parent=0 // pred_fallthru
    _
  // Predicated region
  $region38: #{osnet_forward.17} parent=0 // pred_check
    _
  $region39: #{osnet_forward.17} parent=0 // pred_check_branch
    %279 = sbr.rel (0) target = $region41
  $region40: #{osnet_forward.17} parent=0 // pred_region
    _
  $region41: #{osnet_forward.17} parent=0 // pred_fallthru
    _
  // Predicated region
  $region42: #{osnet_forward.17} parent=0 // pred_check
    _
  $region43: #{osnet_forward.17} parent=0 // pred_check_branch
    %281 = sbr.rel (0) target = $region45
  $region44: #{osnet_forward.17} parent=0 // pred_region
    _
  $region45: #{osnet_forward.17} parent=0 // pred_fallthru
    _

// kernel: osnet_forward.18
$region0: #{osnet_forward.18}
  #allocation0 [shape = 'u32[]', space=smem, size = 0x4, offset = 0x4, fixed_abs, tag = 'smem constant byte address 0x4 - core index']
  #allocation1 [shape = 'u32[144,128]{1,0:T(1,128)}', space=vmem, size = 0x12000, scoped, tag = 'internal scratch']
  %s0 = inlined_call_operand.vmem [shape: bf16[4,24,8], index: 0, kind: input, shape index: {}]
  %s1 = inlined_call_operand.vmem [shape: f32[24,1], index: 1, kind: input, shape index: {}]
  %s2 = inlined_call_operand.vmem [shape: f32[24,1], index: 2, kind: input, shape index: {}]
  %s3 = inlined_call_operand.vmem [shape: bf16[24,8], index: 3, kind: output, shape index: {}]
  %s4 = sld [smem:[#allocation0]]
  $region22: #{osnet_forward.18} parent=0
    _
  %s6 = ssub.s32 1, %s4
  %s7 = scalar_select 0, %s6, %s4
  // Predicated region
  $region2: #{osnet_forward.18} parent=0 // pred_check
    _
  $region3: #{osnet_forward.18} parent=0 // pred_check_branch
    %9 = sbr.rel (0) target = $region5
  $region4: #{osnet_forward.18} parent=0 // pred_region
    _
  $region5: #{osnet_forward.18} parent=0 // pred_fallthru
    _
  // Predicated region
  $region6: #{osnet_forward.18} parent=0 // pred_check
    _
  $region7: #{osnet_forward.18} parent=0 // pred_check_branch
    %11 = sbr.rel (0) target = $region9
  $region8: #{osnet_forward.18} parent=0 // pred_region
    _
  $region9: #{osnet_forward.18} parent=0 // pred_fallthru
    _
  // Predicated region
  $region10: #{osnet_forward.18} parent=0 // pred_check
    _
  $region11: #{osnet_forward.18} parent=0 // pred_check_branch
    %13 = sbr.rel (0) target = $region13
  $region12: #{osnet_forward.18} parent=0 // pred_region
    _
  $region13: #{osnet_forward.18} parent=0 // pred_fallthru
    _
  %v14 = vld [vmem:[%s1] sm:$0xff]
  %v15 = vld [vmem:[%s1 + $0x8] sm:$0xff]
  %v16 = vld [vmem:[%s1 + $0x10] sm:$0xff]
  %v17 = vld [vmem:[%s2] sm:$0xff]
  %v18 = vld [vmem:[%s2 + $0x8] sm:$0xff]
  %v19 = vld [vmem:[%s2 + $0x10] sm:$0xff]
  %v20 = vld [vmem:[%s0] sm:$0xf]
  %v21 = vld [vmem:[%s0 + $0x4] sm:$0xf]
  %v22 = vld [vmem:[%s0 + $0x8] sm:$0xf]
  %v23 = vunpack.c.l.bf16 %v20
  %v24 = vunpack.c.l.bf16 %v21
  %v25 = vunpack.c.l.bf16 %v22
  %27 = vset.pattern.permute.xlu0 0
  %28 = vperm.xlu0 %27, %v14
  %v29 = vpop.permute.xlu0 %28
  %32 = vset.pattern.permute.xlu0 0
  %33 = vperm.xlu0 %32, %v15
  %v34 = vpop.permute.xlu0 %33
  %37 = vset.pattern.permute.xlu0 0
  %38 = vperm.xlu0 %37, %v16
  %v39 = vpop.permute.xlu0 %38
  %v41 = vmul.f32 %v23, %v29
  %v42 = vmul.f32 %v24, %v34
  %v43 = vmul.f32 %v25, %v39
  %45 = vset.pattern.permute.xlu0 0
  %46 = vperm.xlu0 %45, %v17
  %v47 = vpop.permute.xlu0 %46
  %50 = vset.pattern.permute.xlu0 0
  %51 = vperm.xlu0 %50, %v18
  %v52 = vpop.permute.xlu0 %51
  %55 = vset.pattern.permute.xlu0 0
  %56 = vperm.xlu0 %55, %v19
  %v57 = vpop.permute.xlu0 %56
  %v59 = vadd.f32 %v41, %v47
  %v60 = vadd.f32 %v42, %v52
  %v61 = vadd.f32 %v43, %v57
  %v62 = vmax.f32 %v59, 0.0
  %v63 = vmax.f32 %v60, 0.0
  %v64 = vmax.f32 %v61, 0.0
  %s65 = scalar_lea.vmem %s0, 12
  %v66 = vld [vmem:[%s65] sm:$0xf]
  %v67 = vld [vmem:[%s65 + $0x4] sm:$0xf]
  %v68 = vld [vmem:[%s65 + $0x8] sm:$0xf]
  %v69 = vunpack.c.l.bf16 %v66
  %v70 = vunpack.c.l.bf16 %v67
  %v71 = vunpack.c.l.bf16 %v68
  %v72 = vmul.f32 %v69, %v29
  %v73 = vmul.f32 %v70, %v34
  %v74 = vmul.f32 %v71, %v39
  %v75 = vadd.f32 %v72, %v47
  %v76 = vadd.f32 %v73, %v52
  %v77 = vadd.f32 %v74, %v57
  %v78 = vmax.f32 %v75, 0.0
  %v79 = vmax.f32 %v76, 0.0
  %v80 = vmax.f32 %v77, 0.0
  %v81 = vadd.f32 %v62, %v78
  %v82 = vadd.f32 %v63, %v79
  %v83 = vadd.f32 %v64, %v80
  %s84 = scalar_lea.vmem %s0, 24
  %v85 = vld [vmem:[%s84] sm:$0xf]
  %v86 = vld [vmem:[%s84 + $0x4] sm:$0xf]
  %v87 = vld [vmem:[%s84 + $0x8] sm:$0xf]
  %v88 = vunpack.c.l.bf16 %v85
  %v89 = vunpack.c.l.bf16 %v86
  %v90 = vunpack.c.l.bf16 %v87
  %v91 = vmul.f32 %v88, %v29
  %v92 = vmul.f32 %v89, %v34
  %v93 = vmul.f32 %v90, %v39
  %v94 = vadd.f32 %v91, %v47
  %v95 = vadd.f32 %v92, %v52
  %v96 = vadd.f32 %v93, %v57
  %v97 = vmax.f32 %v94, 0.0
  %v98 = vmax.f32 %v95, 0.0
  %v99 = vmax.f32 %v96, 0.0
  %v100 = vadd.f32 %v81, %v97
  %v101 = vadd.f32 %v82, %v98
  %v102 = vadd.f32 %v83, %v99
  %s103 = scalar_lea.vmem %s0, 36
  %v104 = vld [vmem:[%s103] sm:$0xf]
  %v105 = vld [vmem:[%s103 + $0x4] sm:$0xf]
  %v106 = vld [vmem:[%s103 + $0x8] sm:$0xf]
  %v107 = vunpack.c.l.bf16 %v104
  %v108 = vunpack.c.l.bf16 %v105
  %v109 = vunpack.c.l.bf16 %v106
  %v110 = vmul.f32 %v107, %v29
  %v111 = vmul.f32 %v108, %v34
  %v112 = vmul.f32 %v109, %v39
  %v113 = vadd.f32 %v110, %v47
  %v114 = vadd.f32 %v111, %v52
  %v115 = vadd.f32 %v112, %v57
  %v116 = vmax.f32 %v113, 0.0
  %v117 = vmax.f32 %v114, 0.0
  %v118 = vmax.f32 %v115, 0.0
  %v119 = vadd.f32 %v100, %v116
  %v120 = vadd.f32 %v101, %v117
  %v121 = vadd.f32 %v102, %v118
  %v122 = vmul.f32 %v119, 0.25
  %v123 = vmul.f32 %v120, 0.25
  %v124 = vmul.f32 %v121, 0.25
  %v125 = vpack.c.bf16 %v123, %v122
  %v126 = vpack.c.bf16 %v124, %v124
  %v129 = vunpack.c.l.b16 %v125
  %v130 = vunpack.c.h.b16 %v125
  %v131 = vunpack.c.l.b16 %v126
  %v132 = vpack.c.b16 %v129, %v129
  %v133 = vpack.c.b16 %v130, %v130
  %v134 = vpack.c.b16 %v131, %v131
  %vm138 = vcmask 60416
  %139 = vst.msk [vmem:[%s3] sm:$0xf] %vm138, %v132
  %140 = vst.msk [vmem:[%s3 + $0x4] sm:$0xf] %vm138, %v133
  %141 = vst.msk [vmem:[%s3 + $0x8] sm:$0xf] %vm138, %v134
  // Predicated region
  $region14: #{osnet_forward.18} parent=0 // pred_check
    _
  $region15: #{osnet_forward.18} parent=0 // pred_check_branch
    %143 = sbr.rel (0) target = $region17
  $region16: #{osnet_forward.18} parent=0 // pred_region
    _
  $region17: #{osnet_forward.18} parent=0 // pred_fallthru
    _
  // Predicated region
  $region18: #{osnet_forward.18} parent=0 // pred_check
    _
  $region19: #{osnet_forward.18} parent=0 // pred_check_branch
    %145 = sbr.rel (0) target = $region21
  $region20: #{osnet_forward.18} parent=0 // pred_region
    _
  $region21: #{osnet_forward.18} parent=0 // pred_fallthru
    _

// kernel: osnet_forward.19
$region0: #{osnet_forward.19}
  #allocation0 [shape = 'u32[]', space=smem, size = 0x4, offset = 0x4, fixed_abs, tag = 'smem constant byte address 0x4 - core index']
  #allocation1 [shape = 'u32[144,128]{1,0:T(1,128)}', space=vmem, size = 0x12000, scoped, tag = 'internal scratch']
  %s0 = inlined_call_operand.vmem [shape: f32[32,24], index: 0, kind: input, shape index: {}]
  %s1 = inlined_call_operand.vmem [shape: bf16[1,24,8], index: 1, kind: input, shape index: {}]
  %s2 = inlined_call_operand.vmem [shape: bf16[1,32,8], index: 2, kind: output, shape index: {0}]
  %s3 = inlined_call_operand.vmem [shape: f32[1,1,32,128], index: 3, kind: output, shape index: {1}]
  %s4 = inlined_call_operand.vmem [shape: f32[1,1,32,128], index: 4, kind: output, shape index: {2}]
  %5 = xla_tuple %s2, %s3, %s4
  %s6 = sld [smem:[#allocation0]]
  $region38: #{osnet_forward.19} parent=0
    _
  %s8 = ssub.s32 1, %s6
  %s9 = scalar_select 0, %s8, %s6
  // Predicated region
  $region2: #{osnet_forward.19} parent=0 // pred_check
    _
  $region3: #{osnet_forward.19} parent=0 // pred_check_branch
    %11 = sbr.rel (0) target = $region5
  $region4: #{osnet_forward.19} parent=0 // pred_region
    _
  $region5: #{osnet_forward.19} parent=0 // pred_fallthru
    _
  // Predicated region
  $region6: #{osnet_forward.19} parent=0 // pred_check
    _
  $region7: #{osnet_forward.19} parent=0 // pred_check_branch
    %13 = sbr.rel (0) target = $region9
  $region8: #{osnet_forward.19} parent=0 // pred_region
    %s14 = sadd.s32 0, 0
    %p15 = scmp.lt.s32.totalorder %s14, 0
    %s16 = scalar_select %p15, %s14, 0
    %s17 = smul.addr %s16, 4
    %s18 = scalar_lea.vmem %s1, %s17
    %s19 = sadd.s32 0, 0
  $region9: #{osnet_forward.19} parent=0 // pred_fallthru
    _
  %s20 = sadd.s32 0, 0
  %p21 = scmp.lt.s32.totalorder %s20, 0
  %s22 = scalar_select %p21, %s20, 0
  %s23 = smul.addr %s22, 4
  %s24 = scalar_lea.vmem %s1, %s23
  %s25 = sadd.s32 0, 0
  %p26 = scmp.lt.s32.totalorder %s25, 0
  %s27 = scalar_select %p26, %s25, 0
  %s28 = smul.addr %s27, 4
  %s29 = scalar_lea.vmem %s2, %s28
  %s30 = sadd.s32 0, 0
  %p31 = scmp.lt.s32.totalorder %s30, 0
  %s32 = scalar_select %p31, %s30, 0
  %s33 = smul.addr %s32, 4
  %s34 = scalar_lea.vmem %s1, %s33
  %s35 = sadd.s32 0, 0
  %s36 = sadd.s32 0, 0
  %p37 = scmp.lt.s32.totalorder %s36, 0
  %s38 = scalar_select %p37, %s36, 0
  %s39 = smul.addr %s38, 4
  %s40 = scalar_lea.vmem %s2, %s39
  %s41 = sadd.s32 0, 0
  %v42 = vld [vmem:[%s34] sm:$0xf]
  %v43 = vld [vmem:[%s34 + $0x4] sm:$0xf]
  %v44 = vld [vmem:[%s34 + $0x8] sm:$0xf]
  %v45 = vunpack.c.l.bf16 %v42
  %v46 = vunpack.c.l.bf16 %v43
  %v47 = vunpack.c.l.bf16 %v44
  %v48 = vld [vmem:[%s0] sm:$0xff]
  %v49 = vld [vmem:[%s0 + $0x8] sm:$0xff]
  %v50 = vld [vmem:[%s0 + $0x10] sm:$0xff]
  %v51 = vld [vmem:[%s0 + $0x18] sm:$0xff]
  %vm52 = vcmask 195584
  %v54 = vsel %vm52, %v48, 0
  %v57 = vsel %vm52, %v49, 0
  %v60 = vsel %vm52, %v50, 0
  %v63 = vsel %vm52, %v51, 0
  %65 = vmatprep.subr.mxu0 0.0
  %66 = vmatpush1.msra.mxu0 %v45
  %67 = vmatprep.subr.mxu0 0.0
  %68 = vmatpush1.msra.mxu0 %v46
  %69 = vmatprep.subr.mxu0 0.0
  %70 = vmatpush1.msra.mxu0 %v47
  %71 = vmatprep.subr.mxu0 0.0
  %72 = vmatpush1.msra.mxu0 0.0
  %73 = vmatprep.subr.mxu0 0.0
  %74 = vmatpush1.msra.mxu0 0.0
  %75 = vmatprep.subr.mxu0 0.0
  %76 = vmatpush1.msra.mxu0 0.0
  %77 = vmatprep.subr.mxu0 0.0
  %78 = vmatpush1.msra.mxu0 0.0
  %79 = vmatprep.subr.mxu0 0.0
  %80 = vmatpush1.msra.mxu0 0.0
  %81 = vmatprep.subr.mxu0 0.0
  %82 = vmatpush1.msra.mxu0 0.0
  %83 = vmatprep.subr.mxu0 0.0
  %84 = vmatpush1.msra.mxu0 0.0
  %85 = vmatprep.subr.mxu0 0.0
  %86 = vmatpush1.msra.mxu0 0.0
  %87 = vmatprep.subr.mxu0 0.0
  %88 = vmatpush1.msra.mxu0 0.0
  %89 = vmatprep.subr.mxu0 0.0
  %90 = vmatpush1.msra.mxu0 0.0
  %91 = vmatprep.subr.mxu0 0.0
  %92 = vmatpush1.msra.mxu0 0.0
  %93 = vmatprep.subr.mxu0 0.0
  %94 = vmatpush1.msra.mxu0 0.0
  %95 = vmatprep.subr.mxu0 0.0
  %96 = vmatpush1.msra.mxu0 0.0
  %97 = vmatprep.subr.mxu0 0.0
  %98 = vmatpush1.msra.mxu0 0.0
  %99 = vmatprep.subr.mxu0 0.0
  %100 = vmatpush1.msra.mxu0 0.0
  %101 = vmatprep.subr.mxu0 0.0
  %102 = vmatpush1.msra.mxu0 0.0
  %103 = vmatprep.subr.mxu0 0.0
  %104 = vmatpush1.msra.mxu0 0.0
  %105 = vmatprep.subr.mxu0 0.0
  %106 = vmatpush1.msra.mxu0 0.0
  %107 = vmatprep.subr.mxu0 0.0
  %108 = vmatpush1.msra.mxu0 0.0
  %109 = vmatprep.subr.mxu0 0.0
  %110 = vmatpush1.msra.mxu0 0.0
  %111 = vmatprep.subr.mxu0 0.0
  %112 = vmatpush1.msra.mxu0 0.0
  %113 = vmatprep.subr.mxu0 0.0
  %114 = vmatpush1.msra.mxu0 0.0
  %115 = vmatprep.subr.mxu0 0.0
  %116 = vmatpush1.msra.mxu0 0.0
  %117 = vmatprep.subr.mxu0 0.0
  %118 = vmatpush1.msra.mxu0 0.0
  %119 = vmatprep.subr.mxu0 0.0
  %120 = vmatpush1.msra.mxu0 0.0
  %121 = vmatprep.subr.mxu0 0.0
  %122 = vmatpush1.msra.mxu0 0.0
  %123 = vmatprep.subr.mxu0 0.0
  %124 = vmatpush1.msra.mxu0 0.0
  %125 = vmatprep.subr.mxu0 0.0
  %126 = vmatpush1.msra.mxu0 0.0
  %127 = vmatprep.subr.mxu0 0.0
  %128 = vmatpush1.msra.mxu0 0.0
  %129 = vmatprep.mubr.f32.mxu0 0.0
  %130 = vmatmul.mubr.f32.gmra.mrb[0].mxu0 %v54
  %v131 = vpop.f32.mrb[0].mxu0
  %v132 = vadd.f32 0.0, %v131
  %v133 = vpop.f32.mrb[0].mxu0
  %134 = vmatprep.mubr.f32.mxu0 0.0
  %135 = vmatmul.mubr.f32.gmra.mrb[0].mxu0 %v57
  %v136 = vpop.f32.mrb[0].mxu0
  %v137 = vadd.f32 0.0, %v136
  %v138 = vpop.f32.mrb[0].mxu0
  %139 = vmatprep.mubr.f32.mxu0 0.0
  %140 = vmatmul.mubr.f32.gmra.mrb[0].mxu0 %v60
  %v141 = vpop.f32.mrb[0].mxu0
  %v142 = vadd.f32 0.0, %v141
  %v143 = vpop.f32.mrb[0].mxu0
  %144 = vmatprep.mubr.f32.mxu0 0.0
  %145 = vmatmul.mubr.f32.gmra.mrb[0].mxu0 %v63
  %v146 = vpop.f32.mrb[0].mxu0
  %v147 = vadd.f32 0.0, %v146
  %v148 = vpop.f32.mrb[0].mxu0
  %149 = vdwg.mxu0
  %v150 = vpack.c.bf16 %v137, %v132
  %v151 = vpack.c.bf16 %v147, %v142
  %v154 = vunpack.c.l.b16 %v150
  %v155 = vunpack.c.h.b16 %v150
  %v156 = vunpack.c.l.b16 %v151
  %v157 = vunpack.c.h.b16 %v151
  %v158 = vpack.c.b16 %v154, %v154
  %v159 = vpack.c.b16 %v155, %v155
  %v160 = vpack.c.b16 %v156, %v156
  %v161 = vpack.c.b16 %v157, %v157
  %vm166 = vcmask 60416
  %167 = vst.msk [vmem:[%s40] sm:$0xf] %vm166, %v158
  %168 = vst.msk [vmem:[%s40 + $0x4] sm:$0xf] %vm166, %v159
  %169 = vst.msk [vmem:[%s40 + $0x8] sm:$0xf] %vm166, %v160
  %170 = vst.msk [vmem:[%s40 + $0xc] sm:$0xf] %vm166, %v161
  %p171 = scmp.eq.s32.totalorder 0, 0
  // Predicated region
  $region10: #{osnet_forward.19} parent=0 // pred_check
    %p172 = pneg %p171
  $region11: #{osnet_forward.19} parent=0 // pred_check_branch
    %174 = sbr.rel (%p172) target = $region13
  $region12: #{osnet_forward.19} parent=0 // pred_region
    %175 = vst [vmem:[%s3] sm:$0xff] 0.0
    %176 = vst [vmem:[%s3 + $0x8] sm:$0xff] 0.0
    %177 = vst [vmem:[%s3 + $0x10] sm:$0xff] 0.0
    %178 = vst [vmem:[%s3 + $0x18] sm:$0xff] 0.0
    %179 = vst [vmem:[%s4] sm:$0xff] 0.0
    %180 = vst [vmem:[%s4 + $0x8] sm:$0xff] 0.0
    %181 = vst [vmem:[%s4 + $0x10] sm:$0xff] 0.0
    %182 = vst [vmem:[%s4 + $0x18] sm:$0xff] 0.0
  $region13: #{osnet_forward.19} parent=0 // pred_fallthru
    _
  %v183 = vld [vmem:[%s3] sm:$0xff]
  %v184 = vld [vmem:[%s3 + $0x8] sm:$0xff]
  %v185 = vld [vmem:[%s3 + $0x10] sm:$0xff]
  %v186 = vld [vmem:[%s3 + $0x18] sm:$0xff]
  %vm187 = vcmask 64512
  %v188 = vsel %vm187, %v132, 0.0
  %189 = vadd.xlane.f32.xlu0 %v188
  %v190 = vpop.xlane.xlu0 %189
  %v191 = vsel %vm187, %v137, 0.0
  %192 = vadd.xlane.f32.xlu0 %v191
  %v193 = vpop.xlane.xlu0 %192
  %v194 = vsel %vm187, %v142, 0.0
  %195 = vadd.xlane.f32.xlu0 %v194
  %v196 = vpop.xlane.xlu0 %195
  %v197 = vsel %vm187, %v147, 0.0
  %198 = vadd.xlane.f32.xlu0 %v197
  %v199 = vpop.xlane.xlu0 %198
  %v200 = vadd.f32 %v183, %v190
  %v201 = vadd.f32 %v184, %v193
  %v202 = vadd.f32 %v185, %v196
  %v203 = vadd.f32 %v186, %v199
  %204 = vst [vmem:[%s3] sm:$0xff] %v200
  %205 = vst [vmem:[%s3 + $0x8] sm:$0xff] %v201
  %206 = vst [vmem:[%s3 + $0x10] sm:$0xff] %v202
  %207 = vst [vmem:[%s3 + $0x18] sm:$0xff] %v203
  %v208 = vld [vmem:[%s4] sm:$0xff]
  %v209 = vld [vmem:[%s4 + $0x8] sm:$0xff]
  %v210 = vld [vmem:[%s4 + $0x10] sm:$0xff]
  %v211 = vld [vmem:[%s4 + $0x18] sm:$0xff]
  %v212 = vmul.f32 %v132, %v132
  %v213 = vmul.f32 %v137, %v137
  %v214 = vmul.f32 %v142, %v142
  %v215 = vmul.f32 %v147, %v147
  %v216 = vsel %vm187, %v212, 0.0
  %217 = vadd.xlane.f32.xlu0 %v216
  %v218 = vpop.xlane.xlu0 %217
  %v219 = vsel %vm187, %v213, 0.0
  %220 = vadd.xlane.f32.xlu0 %v219
  %v221 = vpop.xlane.xlu0 %220
  %v222 = vsel %vm187, %v214, 0.0
  %223 = vadd.xlane.f32.xlu0 %v222
  %v224 = vpop.xlane.xlu0 %223
  %v225 = vsel %vm187, %v215, 0.0
  %226 = vadd.xlane.f32.xlu0 %v225
  %v227 = vpop.xlane.xlu0 %226
  %v228 = vadd.f32 %v208, %v218
  %v229 = vadd.f32 %v209, %v221
  %v230 = vadd.f32 %v210, %v224
  %v231 = vadd.f32 %v211, %v227
  %232 = vst [vmem:[%s4] sm:$0xff] %v228
  %233 = vst [vmem:[%s4 + $0x8] sm:$0xff] %v229
  %234 = vst [vmem:[%s4 + $0x10] sm:$0xff] %v230
  %235 = vst [vmem:[%s4 + $0x18] sm:$0xff] %v231
  %s236 = sadd.s32 0, 0
  %p237 = scmp.lt.s32.totalorder %s236, 0
  %s238 = scalar_select %p237, %s236, 0
  %s239 = smul.addr %s238, 4
  %s240 = scalar_lea.vmem %s2, %s239
  // Predicated region
  $region14: #{osnet_forward.19} parent=0 // pred_check
    _
  $region15: #{osnet_forward.19} parent=0 // pred_check_branch
    %242 = sbr.rel (0) target = $region17
  $region16: #{osnet_forward.19} parent=0 // pred_region
    %s243 = sadd.s32 0, 0
  $region17: #{osnet_forward.19} parent=0 // pred_fallthru
    _
  // Predicated region
  $region18: #{osnet_forward.19} parent=0 // pred_check
    _
  $region19: #{osnet_forward.19} parent=0 // pred_check_branch
    %245 = sbr.rel (0) target = $region21
  $region20: #{osnet_forward.19} parent=0 // pred_region
    _
  $region21: #{osnet_forward.19} parent=0 // pred_fallthru
    _
  // Predicated region
  $region22: #{osnet_forward.19} parent=0 // pred_check
    _
  $region23: #{osnet_forward.19} parent=0 // pred_check_branch
    %247 = sbr.rel (0) target = $region25
  $region24: #{osnet_forward.19} parent=0 // pred_region
    _
  $region25: #{osnet_forward.19} parent=0 // pred_fallthru
    _
  // Predicated region
  $region26: #{osnet_forward.19} parent=0 // pred_check
    _
  $region27: #{osnet_forward.19} parent=0 // pred_check_branch
    %249 = sbr.rel (0) target = $region29
  $region28: #{osnet_forward.19} parent=0 // pred_region
    %s250 = sadd.s32 0, 0
    %p251 = scmp.lt.s32.totalorder %s250, 0
    %s252 = scalar_select %p251, %s250, 0
    %s253 = smul.addr %s252, 4
    %s254 = scalar_lea.vmem %s2, %s253
  $region29: #{osnet_forward.19} parent=0 // pred_fallthru
    _
  // Predicated region
  $region30: #{osnet_forward.19} parent=0 // pred_check
    _
  $region31: #{osnet_forward.19} parent=0 // pred_check_branch
    %256 = sbr.rel (0) target = $region33
  $region32: #{osnet_forward.19} parent=0 // pred_region
    _
  $region33: #{osnet_forward.19} parent=0 // pred_fallthru
    _
  // Predicated region
  $region34: #{osnet_forward.19} parent=0 // pred_check
    _
  $region35: #{osnet_forward.19} parent=0 // pred_check_branch
    %258 = sbr.rel (0) target = $region37
  $region36: #{osnet_forward.19} parent=0 // pred_region
    _
  $region37: #{osnet_forward.19} parent=0 // pred_fallthru
    _

// kernel: osnet_forward.20
$region0: #{osnet_forward.20}
  #allocation0 [shape = 'u32[]', space=smem, size = 0x4, offset = 0x4, fixed_abs, tag = 'smem constant byte address 0x4 - core index']
  #allocation1 [shape = 'u32[144,128]{1,0:T(1,128)}', space=vmem, size = 0x12000, scoped, tag = 'internal scratch']
  %s0 = inlined_call_operand.vmem [shape: f32[32,32], index: 0, kind: input, shape index: {}]
  %s1 = inlined_call_operand.vmem [shape: bf16[1,32,8], index: 1, kind: input, shape index: {}]
  %s2 = inlined_call_operand.vmem [shape: f32[1,32,1], index: 2, kind: input, shape index: {}]
  %s3 = inlined_call_operand.vmem [shape: f32[1,32,1], index: 3, kind: input, shape index: {}]
  %s4 = inlined_call_operand.vmem [shape: bf16[1,32,8], index: 4, kind: output, shape index: {0}]
  %s5 = inlined_call_operand.vmem [shape: f32[1,1,32,128], index: 5, kind: output, shape index: {1}]
  %s6 = inlined_call_operand.vmem [shape: f32[1,1,32,128], index: 6, kind: output, shape index: {2}]
  %7 = xla_tuple %s4, %s5, %s6
  %s8 = sld [smem:[#allocation0]]
  $region46: #{osnet_forward.20} parent=0
    _
  %s10 = ssub.s32 1, %s8
  %s11 = scalar_select 0, %s10, %s8
  // Predicated region
  $region2: #{osnet_forward.20} parent=0 // pred_check
    _
  $region3: #{osnet_forward.20} parent=0 // pred_check_branch
    %13 = sbr.rel (0) target = $region5
  $region4: #{osnet_forward.20} parent=0 // pred_region
    _
  $region5: #{osnet_forward.20} parent=0 // pred_fallthru
    _
  // Predicated region
  $region6: #{osnet_forward.20} parent=0 // pred_check
    _
  $region7: #{osnet_forward.20} parent=0 // pred_check_branch
    %15 = sbr.rel (0) target = $region9
  $region8: #{osnet_forward.20} parent=0 // pred_region
    %s16 = sadd.s32 0, 0
    %p17 = scmp.lt.s32.totalorder %s16, 0
    %s18 = scalar_select %p17, %s16, 0
    %s19 = smul.addr %s18, 4
    %s20 = scalar_lea.vmem %s1, %s19
    %s21 = sadd.s32 0, 0
  $region9: #{osnet_forward.20} parent=0 // pred_fallthru
    _
  // Predicated region
  $region10: #{osnet_forward.20} parent=0 // pred_check
    _
  $region11: #{osnet_forward.20} parent=0 // pred_check_branch
    %23 = sbr.rel (0) target = $region13
  $region12: #{osnet_forward.20} parent=0 // pred_region
    _
  $region13: #{osnet_forward.20} parent=0 // pred_fallthru
    _
  // Predicated region
  $region14: #{osnet_forward.20} parent=0 // pred_check
    _
  $region15: #{osnet_forward.20} parent=0 // pred_check_branch
    %25 = sbr.rel (0) target = $region17
  $region16: #{osnet_forward.20} parent=0 // pred_region
    _
  $region17: #{osnet_forward.20} parent=0 // pred_fallthru
    _
  %s26 = sadd.s32 0, 0
  %p27 = scmp.lt.s32.totalorder %s26, 0
  %s28 = scalar_select %p27, %s26, 0
  %s29 = smul.addr %s28, 4
  %s30 = scalar_lea.vmem %s1, %s29
  %s31 = sadd.s32 0, 0
  %p32 = scmp.lt.s32.totalorder %s31, 0
  %s33 = scalar_select %p32, %s31, 0
  %s34 = smul.addr %s33, 4
  %s35 = scalar_lea.vmem %s4, %s34
  %s36 = sadd.s32 0, 0
  %p37 = scmp.lt.s32.totalorder %s36, 0
  %s38 = scalar_select %p37, %s36, 0
  %s39 = smul.addr %s38, 4
  %s40 = scalar_lea.vmem %s1, %s39
  %s41 = sadd.s32 0, 0
  %s42 = sadd.s32 0, 0
  %p43 = scmp.lt.s32.totalorder %s42, 0
  %s44 = scalar_select %p43, %s42, 0
  %s45 = smul.addr %s44, 4
  %s46 = scalar_lea.vmem %s4, %s45
  %s47 = sadd.s32 0, 0
  %v48 = vld [vmem:[%s40] sm:$0xf]
  %v49 = vld [vmem:[%s40 + $0x4] sm:$0xf]
  %v50 = vld [vmem:[%s40 + $0x8] sm:$0xf]
  %v51 = vld [vmem:[%s40 + $0xc] sm:$0xf]
  %v52 = vunpack.c.l.bf16 %v48
  %v53 = vunpack.c.l.bf16 %v49
  %v54 = vunpack.c.l.bf16 %v50
  %v55 = vunpack.c.l.bf16 %v51
  %v56 = vld [vmem:[%s2] sm:$0xff]
  %v57 = vld [vmem:[%s2 + $0x8] sm:$0xff]
  %v58 = vld [vmem:[%s2 + $0x10] sm:$0xff]
  %v59 = vld [vmem:[%s2 + $0x18] sm:$0xff]
  %61 = vset.pattern.permute.xlu0 0
  %62 = vperm.xlu0 %61, %v56
  %v63 = vpop.permute.xlu0 %62
  %66 = vset.pattern.permute.xlu0 0
  %67 = vperm.xlu0 %66, %v57
  %v68 = vpop.permute.xlu0 %67
  %71 = vset.pattern.permute.xlu0 0
  %72 = vperm.xlu0 %71, %v58
  %v73 = vpop.permute.xlu0 %72
  %76 = vset.pattern.permute.xlu0 0
  %77 = vperm.xlu0 %76, %v59
  %v78 = vpop.permute.xlu0 %77
  %v80 = vmul.f32 %v52, %v63
  %v81 = vmul.f32 %v53, %v68
  %v82 = vmul.f32 %v54, %v73
  %v83 = vmul.f32 %v55, %v78
  %v84 = vld [vmem:[%s3] sm:$0xff]
  %v85 = vld [vmem:[%s3 + $0x8] sm:$0xff]
  %v86 = vld [vmem:[%s3 + $0x10] sm:$0xff]
  %v87 = vld [vmem:[%s3 + $0x18] sm:$0xff]
  %89 = vset.pattern.permute.xlu0 0
  %90 = vperm.xlu0 %89, %v84
  %v91 = vpop.permute.xlu0 %90
  %94 = vset.pattern.permute.xlu0 0
  %95 = vperm.xlu0 %94, %v85
  %v96 = vpop.permute.xlu0 %95
  %99 = vset.pattern.permute.xlu0 0
  %100 = vperm.xlu0 %99, %v86
  %v101 = vpop.permute.xlu0 %100
  %104 = vset.pattern.permute.xlu0 0
  %105 = vperm.xlu0 %104, %v87
  %v106 = vpop.permute.xlu0 %105
  %v108 = vadd.f32 %v80, %v91
  %v109 = vadd.f32 %v81, %v96
  %v110 = vadd.f32 %v82, %v101
  %v111 = vadd.f32 %v83, %v106
  %v112 = vmax.f32 %v108, 0.0
  %v113 = vmax.f32 %v109, 0.0
  %v114 = vmax.f32 %v110, 0.0
  %v115 = vmax.f32 %v111, 0.0
  %v116 = vld [vmem:[%s0] sm:$0xff]
  %v117 = vld [vmem:[%s0 + $0x8] sm:$0xff]
  %v118 = vld [vmem:[%s0 + $0x10] sm:$0xff]
  %v119 = vld [vmem:[%s0 + $0x18] sm:$0xff]
  %vm120 = vcmask 261120
  %v122 = vsel %vm120, %v116, 0
  %v125 = vsel %vm120, %v117, 0
  %v128 = vsel %vm120, %v118, 0
  %v131 = vsel %vm120, %v119, 0
  %133 = vmatprep.subr.mxu0 0.0
  %134 = vmatpush1.msra.mxu0 %v112
  %135 = vmatprep.subr.mxu0 0.0
  %136 = vmatpush1.msra.mxu0 %v113
  %137 = vmatprep.subr.mxu0 0.0
  %138 = vmatpush1.msra.mxu0 %v114
  %139 = vmatprep.subr.mxu0 0.0
  %140 = vmatpush1.msra.mxu0 %v115
  %141 = vmatprep.subr.mxu0 0.0
  %142 = vmatpush1.msra.mxu0 0.0
  %143 = vmatprep.subr.mxu0 0.0
  %144 = vmatpush1.msra.mxu0 0.0
  %145 = vmatprep.subr.mxu0 0.0
  %146 = vmatpush1.msra.mxu0 0.0
  %147 = vmatprep.subr.mxu0 0.0
  %148 = vmatpush1.msra.mxu0 0.0
  %149 = vmatprep.subr.mxu0 0.0
  %150 = vmatpush1.msra.mxu0 0.0
  %151 = vmatprep.subr.mxu0 0.0
  %152 = vmatpush1.msra.mxu0 0.0
  %153 = vmatprep.subr.mxu0 0.0
  %154 = vmatpush1.msra.mxu0 0.0
  %155 = vmatprep.subr.mxu0 0.0
  %156 = vmatpush1.msra.mxu0 0.0
  %157 = vmatprep.subr.mxu0 0.0
  %158 = vmatpush1.msra.mxu0 0.0
  %159 = vmatprep.subr.mxu0 0.0
  %160 = vmatpush1.msra.mxu0 0.0
  %161 = vmatprep.subr.mxu0 0.0
  %162 = vmatpush1.msra.mxu0 0.0
  %163 = vmatprep.subr.mxu0 0.0
  %164 = vmatpush1.msra.mxu0 0.0
  %165 = vmatprep.subr.mxu0 0.0
  %166 = vmatpush1.msra.mxu0 0.0
  %167 = vmatprep.subr.mxu0 0.0
  %168 = vmatpush1.msra.mxu0 0.0
  %169 = vmatprep.subr.mxu0 0.0
  %170 = vmatpush1.msra.mxu0 0.0
  %171 = vmatprep.subr.mxu0 0.0
  %172 = vmatpush1.msra.mxu0 0.0
  %173 = vmatprep.subr.mxu0 0.0
  %174 = vmatpush1.msra.mxu0 0.0
  %175 = vmatprep.subr.mxu0 0.0
  %176 = vmatpush1.msra.mxu0 0.0
  %177 = vmatprep.subr.mxu0 0.0
  %178 = vmatpush1.msra.mxu0 0.0
  %179 = vmatprep.subr.mxu0 0.0
  %180 = vmatpush1.msra.mxu0 0.0
  %181 = vmatprep.subr.mxu0 0.0
  %182 = vmatpush1.msra.mxu0 0.0
  %183 = vmatprep.subr.mxu0 0.0
  %184 = vmatpush1.msra.mxu0 0.0
  %185 = vmatprep.subr.mxu0 0.0
  %186 = vmatpush1.msra.mxu0 0.0
  %187 = vmatprep.subr.mxu0 0.0
  %188 = vmatpush1.msra.mxu0 0.0
  %189 = vmatprep.subr.mxu0 0.0
  %190 = vmatpush1.msra.mxu0 0.0
  %191 = vmatprep.subr.mxu0 0.0
  %192 = vmatpush1.msra.mxu0 0.0
  %193 = vmatprep.subr.mxu0 0.0
  %194 = vmatpush1.msra.mxu0 0.0
  %195 = vmatprep.subr.mxu0 0.0
  %196 = vmatpush1.msra.mxu0 0.0
  %197 = vmatprep.mubr.f32.mxu0 0.0
  %198 = vmatmul.mubr.f32.gmra.mrb[0].mxu0 %v122
  %v199 = vpop.f32.mrb[0].mxu0
  %v200 = vadd.f32 0.0, %v199
  %v201 = vpop.f32.mrb[0].mxu0
  %202 = vmatprep.mubr.f32.mxu0 0.0
  %203 = vmatmul.mubr.f32.gmra.mrb[0].mxu0 %v125
  %v204 = vpop.f32.mrb[0].mxu0
  %v205 = vadd.f32 0.0, %v204
  %v206 = vpop.f32.mrb[0].mxu0
  %207 = vmatprep.mubr.f32.mxu0 0.0
  %208 = vmatmul.mubr.f32.gmra.mrb[0].mxu0 %v128
  %v209 = vpop.f32.mrb[0].mxu0
  %v210 = vadd.f32 0.0, %v209
  %v211 = vpop.f32.mrb[0].mxu0
  %212 = vmatprep.mubr.f32.mxu0 0.0
  %213 = vmatmul.mubr.f32.gmra.mrb[0].mxu0 %v131
  %v214 = vpop.f32.mrb[0].mxu0
  %v215 = vadd.f32 0.0, %v214
  %v216 = vpop.f32.mrb[0].mxu0
  %217 = vdwg.mxu0
  %v218 = vpack.c.bf16 %v205, %v200
  %v219 = vpack.c.bf16 %v215, %v210
  %v222 = vunpack.c.l.b16 %v218
  %v223 = vunpack.c.h.b16 %v218
  %v224 = vunpack.c.l.b16 %v219
  %v225 = vunpack.c.h.b16 %v219
  %v226 = vpack.c.b16 %v222, %v222
  %v227 = vpack.c.b16 %v223, %v223
  %v228 = vpack.c.b16 %v224, %v224
  %v229 = vpack.c.b16 %v225, %v225
  %vm234 = vcmask 60416
  %235 = vst.msk [vmem:[%s46] sm:$0xf] %vm234, %v226
  %236 = vst.msk [vmem:[%s46 + $0x4] sm:$0xf] %vm234, %v227
  %237 = vst.msk [vmem:[%s46 + $0x8] sm:$0xf] %vm234, %v228
  %238 = vst.msk [vmem:[%s46 + $0xc] sm:$0xf] %vm234, %v229
  %p239 = scmp.eq.s32.totalorder 0, 0
  // Predicated region
  $region18: #{osnet_forward.20} parent=0 // pred_check
    %p240 = pneg %p239
  $region19: #{osnet_forward.20} parent=0 // pred_check_branch
    %242 = sbr.rel (%p240) target = $region21
  $region20: #{osnet_forward.20} parent=0 // pred_region
    %243 = vst [vmem:[%s5] sm:$0xff] 0.0
    %244 = vst [vmem:[%s5 + $0x8] sm:$0xff] 0.0
    %245 = vst [vmem:[%s5 + $0x10] sm:$0xff] 0.0
    %246 = vst [vmem:[%s5 + $0x18] sm:$0xff] 0.0
    %247 = vst [vmem:[%s6] sm:$0xff] 0.0
    %248 = vst [vmem:[%s6 + $0x8] sm:$0xff] 0.0
    %249 = vst [vmem:[%s6 + $0x10] sm:$0xff] 0.0
    %250 = vst [vmem:[%s6 + $0x18] sm:$0xff] 0.0
  $region21: #{osnet_forward.20} parent=0 // pred_fallthru
    _
  %v251 = vld [vmem:[%s5] sm:$0xff]
  %v252 = vld [vmem:[%s5 + $0x8] sm:$0xff]
  %v253 = vld [vmem:[%s5 + $0x10] sm:$0xff]
  %v254 = vld [vmem:[%s5 + $0x18] sm:$0xff]
  %vm255 = vcmask 64512
  %v256 = vsel %vm255, %v200, 0.0
  %257 = vadd.xlane.f32.xlu0 %v256
  %v258 = vpop.xlane.xlu0 %257
  %v259 = vsel %vm255, %v205, 0.0
  %260 = vadd.xlane.f32.xlu0 %v259
  %v261 = vpop.xlane.xlu0 %260
  %v262 = vsel %vm255, %v210, 0.0
  %263 = vadd.xlane.f32.xlu0 %v262
  %v264 = vpop.xlane.xlu0 %263
  %v265 = vsel %vm255, %v215, 0.0
  %266 = vadd.xlane.f32.xlu0 %v265
  %v267 = vpop.xlane.xlu0 %266
  %v268 = vadd.f32 %v251, %v258
  %v269 = vadd.f32 %v252, %v261
  %v270 = vadd.f32 %v253, %v264
  %v271 = vadd.f32 %v254, %v267
  %272 = vst [vmem:[%s5] sm:$0xff] %v268
  %273 = vst [vmem:[%s5 + $0x8] sm:$0xff] %v269
  %274 = vst [vmem:[%s5 + $0x10] sm:$0xff] %v270
  %275 = vst [vmem:[%s5 + $0x18] sm:$0xff] %v271
  %v276 = vld [vmem:[%s6] sm:$0xff]
  %v277 = vld [vmem:[%s6 + $0x8] sm:$0xff]
  %v278 = vld [vmem:[%s6 + $0x10] sm:$0xff]
  %v279 = vld [vmem:[%s6 + $0x18] sm:$0xff]
  %v280 = vmul.f32 %v200, %v200
  %v281 = vmul.f32 %v205, %v205
  %v282 = vmul.f32 %v210, %v210
  %v283 = vmul.f32 %v215, %v215
  %v284 = vsel %vm255, %v280, 0.0
  %285 = vadd.xlane.f32.xlu0 %v284
  %v286 = vpop.xlane.xlu0 %285
  %v287 = vsel %vm255, %v281, 0.0
  %288 = vadd.xlane.f32.xlu0 %v287
  %v289 = vpop.xlane.xlu0 %288
  %v290 = vsel %vm255, %v282, 0.0
  %291 = vadd.xlane.f32.xlu0 %v290
  %v292 = vpop.xlane.xlu0 %291
  %v293 = vsel %vm255, %v283, 0.0
  %294 = vadd.xlane.f32.xlu0 %v293
  %v295 = vpop.xlane.xlu0 %294
  %v296 = vadd.f32 %v276, %v286
  %v297 = vadd.f32 %v277, %v289
  %v298 = vadd.f32 %v278, %v292
  %v299 = vadd.f32 %v279, %v295
  %300 = vst [vmem:[%s6] sm:$0xff] %v296
  %301 = vst [vmem:[%s6 + $0x8] sm:$0xff] %v297
  %302 = vst [vmem:[%s6 + $0x10] sm:$0xff] %v298
  %303 = vst [vmem:[%s6 + $0x18] sm:$0xff] %v299
  %s304 = sadd.s32 0, 0
  %p305 = scmp.lt.s32.totalorder %s304, 0
  %s306 = scalar_select %p305, %s304, 0
  %s307 = smul.addr %s306, 4
  %s308 = scalar_lea.vmem %s4, %s307
  // Predicated region
  $region22: #{osnet_forward.20} parent=0 // pred_check
    _
  $region23: #{osnet_forward.20} parent=0 // pred_check_branch
    %310 = sbr.rel (0) target = $region25
  $region24: #{osnet_forward.20} parent=0 // pred_region
    %s311 = sadd.s32 0, 0
  $region25: #{osnet_forward.20} parent=0 // pred_fallthru
    _
  // Predicated region
  $region26: #{osnet_forward.20} parent=0 // pred_check
    _
  $region27: #{osnet_forward.20} parent=0 // pred_check_branch
    %313 = sbr.rel (0) target = $region29
  $region28: #{osnet_forward.20} parent=0 // pred_region
    _
  $region29: #{osnet_forward.20} parent=0 // pred_fallthru
    _
  // Predicated region
  $region30: #{osnet_forward.20} parent=0 // pred_check
    _
  $region31: #{osnet_forward.20} parent=0 // pred_check_branch
    %315 = sbr.rel (0) target = $region33
  $region32: #{osnet_forward.20} parent=0 // pred_region
    _
  $region33: #{osnet_forward.20} parent=0 // pred_fallthru
    _
  // Predicated region
  $region34: #{osnet_forward.20} parent=0 // pred_check
    _
  $region35: #{osnet_forward.20} parent=0 // pred_check_branch
    %317 = sbr.rel (0) target = $region37
  $region36: #{osnet_forward.20} parent=0 // pred_region
    %s318 = sadd.s32 0, 0
    %p319 = scmp.lt.s32.totalorder %s318, 0
    %s320 = scalar_select %p319, %s318, 0
    %s321 = smul.addr %s320, 4
    %s322 = scalar_lea.vmem %s4, %s321
  $region37: #{osnet_forward.20} parent=0 // pred_fallthru
    _
  // Predicated region
  $region38: #{osnet_forward.20} parent=0 // pred_check
    _
  $region39: #{osnet_forward.20} parent=0 // pred_check_branch
    %324 = sbr.rel (0) target = $region41
  $region40: #{osnet_forward.20} parent=0 // pred_region
    _
  $region41: #{osnet_forward.20} parent=0 // pred_fallthru
    _
  // Predicated region
  $region42: #{osnet_forward.20} parent=0 // pred_check
    _
  $region43: #{osnet_forward.20} parent=0 // pred_check_branch
    %326 = sbr.rel (0) target = $region45
  $region44: #{osnet_forward.20} parent=0 // pred_region
    _
  $region45: #{osnet_forward.20} parent=0 // pred_fallthru
    _

// kernel: osnet_forward.21
$region0: #{osnet_forward.21}
  #allocation0 [shape = 'u32[]', space=smem, size = 0x4, offset = 0x4, fixed_abs, tag = 'smem constant byte address 0x4 - core index']
  #allocation1 [shape = 'u32[144,128]{1,0:T(1,128)}', space=vmem, size = 0x12000, scoped, tag = 'internal scratch']
  %s0 = inlined_call_operand.vmem [shape: bf16[1,32,8], index: 0, kind: input, shape index: {}]
  %s1 = inlined_call_operand.vmem [shape: f32[1,32,1], index: 1, kind: input, shape index: {}]
  %s2 = inlined_call_operand.vmem [shape: f32[1,32,1], index: 2, kind: input, shape index: {}]
  %s3 = inlined_call_operand.vmem [shape: f32[1,32,8], index: 3, kind: output, shape index: {}]
  %s4 = sld [smem:[#allocation0]]
  $region22: #{osnet_forward.21} parent=0
    _
  %s6 = ssub.s32 1, %s4
  %s7 = scalar_select 0, %s6, %s4
  // Predicated region
  $region2: #{osnet_forward.21} parent=0 // pred_check
    _
  $region3: #{osnet_forward.21} parent=0 // pred_check_branch
    %9 = sbr.rel (0) target = $region5
  $region4: #{osnet_forward.21} parent=0 // pred_region
    _
  $region5: #{osnet_forward.21} parent=0 // pred_fallthru
    _
  // Predicated region
  $region6: #{osnet_forward.21} parent=0 // pred_check
    _
  $region7: #{osnet_forward.21} parent=0 // pred_check_branch
    %11 = sbr.rel (0) target = $region9
  $region8: #{osnet_forward.21} parent=0 // pred_region
    _
  $region9: #{osnet_forward.21} parent=0 // pred_fallthru
    _
  // Predicated region
  $region10: #{osnet_forward.21} parent=0 // pred_check
    _
  $region11: #{osnet_forward.21} parent=0 // pred_check_branch
    %13 = sbr.rel (0) target = $region13
  $region12: #{osnet_forward.21} parent=0 // pred_region
    _
  $region13: #{osnet_forward.21} parent=0 // pred_fallthru
    _
  %v14 = vld [vmem:[%s0] sm:$0xf]
  %v15 = vld [vmem:[%s0 + $0x4] sm:$0xf]
  %v16 = vld [vmem:[%s0 + $0x8] sm:$0xf]
  %v17 = vld [vmem:[%s0 + $0xc] sm:$0xf]
  %v18 = vunpack.c.l.bf16 %v14
  %v19 = vunpack.c.l.bf16 %v15
  %v20 = vunpack.c.l.bf16 %v16
  %v21 = vunpack.c.l.bf16 %v17
  %v22 = vld [vmem:[%s1] sm:$0xff]
  %v23 = vld [vmem:[%s1 + $0x8] sm:$0xff]
  %v24 = vld [vmem:[%s1 + $0x10] sm:$0xff]
  %v25 = vld [vmem:[%s1 + $0x18] sm:$0xff]
  %27 = vset.pattern.permute.xlu0 0
  %28 = vperm.xlu0 %27, %v22
  %v29 = vpop.permute.xlu0 %28
  %32 = vset.pattern.permute.xlu0 0
  %33 = vperm.xlu0 %32, %v23
  %v34 = vpop.permute.xlu0 %33
  %37 = vset.pattern.permute.xlu0 0
  %38 = vperm.xlu0 %37, %v24
  %v39 = vpop.permute.xlu0 %38
  %42 = vset.pattern.permute.xlu0 0
  %43 = vperm.xlu0 %42, %v25
  %v44 = vpop.permute.xlu0 %43
  %v46 = vmul.f32 %v18, %v29
  %v47 = vmul.f32 %v19, %v34
  %v48 = vmul.f32 %v20, %v39
  %v49 = vmul.f32 %v21, %v44
  %v50 = vld [vmem:[%s2] sm:$0xff]
  %v51 = vld [vmem:[%s2 + $0x8] sm:$0xff]
  %v52 = vld [vmem:[%s2 + $0x10] sm:$0xff]
  %v53 = vld [vmem:[%s2 + $0x18] sm:$0xff]
  %55 = vset.pattern.permute.xlu0 0
  %56 = vperm.xlu0 %55, %v50
  %v57 = vpop.permute.xlu0 %56
  %60 = vset.pattern.permute.xlu0 0
  %61 = vperm.xlu0 %60, %v51
  %v62 = vpop.permute.xlu0 %61
  %65 = vset.pattern.permute.xlu0 0
  %66 = vperm.xlu0 %65, %v52
  %v67 = vpop.permute.xlu0 %66
  %70 = vset.pattern.permute.xlu0 0
  %71 = vperm.xlu0 %70, %v53
  %v72 = vpop.permute.xlu0 %71
  %v74 = vadd.f32 %v46, %v57
  %v75 = vadd.f32 %v47, %v62
  %v76 = vadd.f32 %v48, %v67
  %v77 = vadd.f32 %v49, %v72
  %v78 = vmax.f32 %v74, 0.0
  %v79 = vmax.f32 %v75, 0.0
  %v80 = vmax.f32 %v76, 0.0
  %v81 = vmax.f32 %v77, 0.0
  %vm82 = vcmask 64512
  %83 = vst.msk [vmem:[%s3] sm:$0xff] %vm82, %v78
  %84 = vst.msk [vmem:[%s3 + $0x8] sm:$0xff] %vm82, %v79
  %85 = vst.msk [vmem:[%s3 + $0x10] sm:$0xff] %vm82, %v80
  %86 = vst.msk [vmem:[%s3 + $0x18] sm:$0xff] %vm82, %v81
  // Predicated region
  $region14: #{osnet_forward.21} parent=0 // pred_check
    _
  $region15: #{osnet_forward.21} parent=0 // pred_check_branch
    %88 = sbr.rel (0) target = $region17
  $region16: #{osnet_forward.21} parent=0 // pred_region
    _
  $region17: #{osnet_forward.21} parent=0 // pred_fallthru
    _
  // Predicated region
  $region18: #{osnet_forward.21} parent=0 // pred_check
    _
  $region19: #{osnet_forward.21} parent=0 // pred_check_branch
    %90 = sbr.rel (0) target = $region21
  $region20: #{osnet_forward.21} parent=0 // pred_region
    _
  $region21: #{osnet_forward.21} parent=0 // pred_fallthru
    _

</llo_original>
